<compile_context>
chip_gen: v5e
topology: v5e:2x2
jax: 0.10.0
libtpu: 0.0.40
codegen_flags: <defaults>
</compile_context>

<pallas_src>
import math
import functools

import jax
import jax.numpy as jnp
from jax.experimental import pallas as pl
from jax.experimental.pallas import tpu as pltpu


# ---------------------------------------------------------------------------
# In-kernel helpers (traced inside the Pallas kernel body)
# ---------------------------------------------------------------------------

def _row_norm(x, alpha, bias, eps):
    # Reference Norm: alpha * (x - mean) / (std + eps) + bias,
    # torch.std's UNBIASED estimator (divide by d - 1).  Exact divide (the
    # approx reciprocal is reserved for softmax only).
    d = x.shape[-1]
    mean = jnp.mean(x, axis=-1, keepdims=True)
    xm = x - mean
    var = jnp.sum(xm * xm, axis=-1, keepdims=True) * (1.0 / (d - 1))
    return alpha * (xm / (jnp.sqrt(var) + eps)) + bias


def _attention(q_src, q_off, kv_src, k_off, v_off, bias_ref, wo_ref, bias_out,
               *, Bt, Sq, Sk, heads, dk):
    # q_src:  (Bt*Sq, >=D) f32; query projection at column q_off (already
    #         scaled by 1/sqrt(dk) -- folded into the weights).
    # kv_src: (Bt*Sk, >=2D) f32; K at column k_off, V at column v_off.
    # bias_ref: (Bt, Mq, Sk) additive mask bias ref (0 keep / -1e9 masked).
    # wo_ref: (D, D) bf16 output-projection weight ref.
    # Returns (Bt*Sq, D) f32 = concat_h(softmax(q_h k_h^T) v_h) @ Wo + bo
    D = heads * dk
    rows = []
    for b in range(Bt):                               # static unroll (batch tile)
        qb = q_src[b * Sq:(b + 1) * Sq, :]
        kvb = kv_src[b * Sk:(b + 1) * Sk, :]
        bb = bias_ref[b]                              # (Mq, Sk), broadcasts
        head_outs = []
        for h in range(heads):                        # static unroll (heads)
            qh = qb[:, q_off + h * dk: q_off + (h + 1) * dk]
            kh = kvb[:, k_off + h * dk: k_off + (h + 1) * dk]
            vh = kvb[:, v_off + h * dk: v_off + (h + 1) * dk]
            s = jnp.dot(qh.astype(jnp.bfloat16), kh.astype(jnp.bfloat16).T,
                        preferred_element_type=jnp.float32) + bb
            s = s - jnp.max(s, axis=-1, keepdims=True)
            p = jnp.exp(s)
            p = p * pl.reciprocal(jnp.sum(p, axis=-1, keepdims=True),
                                  approx=True)        # EUP slot
            head_outs.append(
                jnp.dot(p.astype(jnp.bfloat16), vh.astype(jnp.bfloat16),
                        preferred_element_type=jnp.float32))
        rows.append(jnp.concatenate(head_outs, axis=-1))      # (Sq, D)
    o = rows[0] if Bt == 1 else jnp.concatenate(rows, axis=0)  # (Bt*Sq, D)
    # Single full-D output-projection matmul (lane-dense, full MXU contraction).
    return jnp.dot(o.astype(jnp.bfloat16), wo_ref[...],
                   preferred_element_type=jnp.float32) + bias_out


# ---------------------------------------------------------------------------
# Fused decoder-stack kernel.  grid = (batch_tile, layer)
# ---------------------------------------------------------------------------

def _decoder_stack_kernel(
        # per-batch-tile inputs
        x_ref, pe_ref, e_ref, sbias_ref, tbias_ref,
        # per-layer weights (leading layer dim handled by BlockSpec)
        na_ref, nb_ref,
        wqkv_ref, bqkv_ref, wo1_ref, bo1_ref,
        wq2_ref, bq2_ref, wkv2_ref, bkv2_ref, wo2_ref, bo2_ref,
        w1_ref, b1_ref, w2_ref, b2_ref,
        # final norm
        fa_ref, fb_ref,
        # output + scratch
        o_ref, x_sc,
        *, Bt, S, Ssrc, heads, d_model, eps):
    layer = pl.program_id(1)
    D = d_model
    dk = D // heads
    R = Bt * S

    @pl.when(layer == 0)
    def _init():
        # Embedder scale + PositionalEncoder add (dropout == identity).
        x0 = (x_ref[...].astype(jnp.float32) * jnp.float32(math.sqrt(D))
              + pe_ref[...].astype(jnp.float32)[None, :, :])
        x_sc[...] = x0.reshape(R, D)

    x = x_sc[...]

    # ---- sub-layer 1: masked self-attention ---------------------------------
    x2 = _row_norm(x, na_ref[0:1, :], nb_ref[0:1, :], eps)
    qkv = (jnp.dot(x2.astype(jnp.bfloat16), wqkv_ref[...],
                   preferred_element_type=jnp.float32)
           + bqkv_ref[...])                                   # (R, 3D) f32
    x = x + _attention(qkv, 0, qkv, D, 2 * D, tbias_ref, wo1_ref, bo1_ref[...],
                       Bt=Bt, Sq=S, Sk=S, heads=heads, dk=dk)

    # ---- sub-layer 2: encoder-decoder cross-attention ------------------------
    x2 = _row_norm(x, na_ref[1:2, :], nb_ref[1:2, :], eps)
    q2 = (jnp.dot(x2.astype(jnp.bfloat16), wq2_ref[...],
                  preferred_element_type=jnp.float32)
          + bq2_ref[...])                                     # (R, D) f32
    e = e_ref[...].reshape(Bt * Ssrc, D)                      # bf16
    kv = (jnp.dot(e, wkv2_ref[...], preferred_element_type=jnp.float32)
          + bkv2_ref[...])                                    # (Bt*Ssrc, 2D) f32
    x = x + _attention(q2, 0, kv, 0, D, sbias_ref, wo2_ref, bo2_ref[...],
                       Bt=Bt, Sq=S, Sk=Ssrc, heads=heads, dk=dk)

    # ---- sub-layer 3: feed-forward -------------------------------------------
    x2 = _row_norm(x, na_ref[2:3, :], nb_ref[2:3, :], eps)
    h = (jnp.dot(x2.astype(jnp.bfloat16), w1_ref[...],
                 preferred_element_type=jnp.float32) + b1_ref[...])
    h = jnp.maximum(h, 0.0)
    x = x + (jnp.dot(h.astype(jnp.bfloat16), w2_ref[...],
                     preferred_element_type=jnp.float32) + b2_ref[...])

    x_sc[...] = x

    @pl.when(layer == pl.num_programs(1) - 1)
    def _finalize():
        y = _row_norm(x, fa_ref[...], fb_ref[...], eps)
        o_ref[...] = y.reshape(Bt, S, D).astype(o_ref.dtype)


def _pick_batch_tile(B, max_bt=8):
    bt = 1
    for cand in range(1, min(B, max_bt) + 1):
        if B % cand == 0:
            bt = cand
    return bt


def _decoder_stack(x_emb, pe, e_bf16, src_bias, trg_bias, params,
                   *, d_model, heads):
    B, S, D = x_emb.shape
    assert D == d_model and D % heads == 0
    Ssrc = e_bf16.shape[1]
    n_layers = params["wqkv"].shape[0]
    F = params["w1"].shape[-1]
    Mq_s = src_bias.shape[1]
    Mq_t = trg_bias.shape[1]
    dk = D // heads

    # Batch tile: amortize per-layer weight DMA over Bt batch elements.
    Bt = _pick_batch_tile(B)
    n_tiles = B // Bt

    # Fold 1/sqrt(dk) into the (constant) query projection weights/biases.
    qs = 1.0 / math.sqrt(dk)
    wqkv = jnp.concatenate([params["wqkv"][..., :D] * qs,
                            params["wqkv"][..., D:]], axis=-1)
    bqkv = jnp.concatenate([params["bqkv"][..., :D] * qs,
                            params["bqkv"][..., D:]], axis=-1)
    wq2 = params["wq2"] * qs
    bq2 = params["bq2"] * qs

    def bmap(b, l):   # per-batch-tile tensors (DMA elided while b unchanged)
        return (b, 0, 0)

    def lmap(b, l):   # per-layer weights, streamed through the pipeline
        return (l, 0, 0)

    def gmap(b, l):   # globals (PE table, final norm)
        return (0, 0)

    in_specs = [
        pl.BlockSpec((Bt, S, D), bmap),            # embedded target tokens (f32)
        pl.BlockSpec((S, D), gmap),                # positional-encoding table
        pl.BlockSpec((Bt, Ssrc, D), bmap),         # encoder outputs (bf16)
        pl.BlockSpec((Bt, Mq_s, Ssrc), bmap),      # src additive mask bias
        pl.BlockSpec((Bt, Mq_t, S), bmap),         # trg additive mask bias
        pl.BlockSpec((None, 3, D), lmap),          # norm alphas (3 sub-layers)
        pl.BlockSpec((None, 3, D), lmap),          # norm biases
        pl.BlockSpec((None, D, 3 * D), lmap),      # fused Wq|Wk|Wv (bf16)
        pl.BlockSpec((None, 1, 3 * D), lmap),      # fused bq|bk|bv
        pl.BlockSpec((None, D, D), lmap),          # Wo self-attn (bf16)
        pl.BlockSpec((None, 1, D), lmap),          # bo
        pl.BlockSpec((None, D, D), lmap),          # Wq cross-attn (bf16)
        pl.BlockSpec((None, 1, D), lmap),          # bq
        pl.BlockSpec((None, D, 2 * D), lmap),      # fused Wk|Wv cross (bf16)
        pl.BlockSpec((None, 1, 2 * D), lmap),      # fused bk|bv
        pl.BlockSpec((None, D, D), lmap),          # Wo cross-attn (bf16)
        pl.BlockSpec((None, 1, D), lmap),          # bo
        pl.BlockSpec((None, D, F), lmap),          # FF W1 (bf16)
        pl.BlockSpec((None, 1, F), lmap),          # FF b1
        pl.BlockSpec((None, F, D), lmap),          # FF W2 (bf16)
        pl.BlockSpec((None, 1, D), lmap),          # FF b2
        pl.BlockSpec((1, D), gmap),                # final norm alpha
        pl.BlockSpec((1, D), gmap),                # final norm bias
    ]

    # --- VMEM budget derived from the actual block sizes (double-buffered). ---
    bf2, f4 = 2, 4
    blk_bytes = (
        Bt * S * D * f4 + S * D * f4 + Bt * Ssrc * D * bf2
        + Bt * Mq_s * Ssrc * f4 + Bt * Mq_t * S * f4
        + 2 * 3 * D * f4
        + D * 3 * D * bf2 + 3 * D * f4 + D * D * bf2 + D * f4
        + D * D * bf2 + D * f4 + D * 2 * D * bf2 + 2 * D * f4
        + D * D * bf2 + D * f4
        + D * F * bf2 + F * f4 + F * D * bf2 + D * f4
        + 2 * D * f4
        + Bt * S * D * f4)                     # output block
    vmem_needed = 2 * blk_bytes + Bt * S * D * f4 + (4 << 20)
    # Clamp so the same setting is legal on v5e/v6e (128 MiB) and v7x (64 MiB).
    vmem_limit = int(min(max(vmem_needed, 32 << 20), 64 << 20))

    flops_layer = (2 * S * D * 3 * D + 4 * S * S * D + 2 * S * D * D
                   + 2 * S * D * D + 2 * Ssrc * D * 2 * D + 4 * S * Ssrc * D
                   + 2 * S * D * D + 4 * S * D * F)
    weight_bytes_layer = (2 * (D * 3 * D + 3 * D * D + D * 2 * D + 2 * D * F)
                          + 4 * (6 * D + 3 * D + 6 * D + 2 * F + D))
    cost = pl.CostEstimate(
        flops=int(B * n_layers * flops_layer),
        transcendentals=int(B * n_layers * heads * (S * S + S * Ssrc)),
        bytes_accessed=int(n_tiles * n_layers * weight_bytes_layer
                           + 4 * (2 * B * S * D + src_bias.size + trg_bias.size
                                  + S * D)
                           + 2 * B * Ssrc * D),
    )

    kernel = functools.partial(_decoder_stack_kernel, Bt=Bt, S=S, Ssrc=Ssrc,
                               heads=heads, d_model=D, eps=1e-6)

    return pl.pallas_call(
        kernel,
        out_shape=jax.ShapeDtypeStruct((B, S, D), jnp.float32),
        grid=(n_tiles, n_layers),
        in_specs=in_specs,
        out_specs=pl.BlockSpec((Bt, S, D), bmap),   # resident across layers
        scratch_shapes=[pltpu.VMEM((Bt * S, D), jnp.float32)],
        compiler_params=pltpu.CompilerParams(
            dimension_semantics=("parallel", "arbitrary"),
            vmem_limit_bytes=vmem_limit),
        cost_estimate=cost,
    )(x_emb, pe, e_bf16, src_bias, trg_bias,
      params["norm_a"], params["norm_b"],
      wqkv, bqkv, params["wo1"], params["bo1"],
      wq2, bq2, params["wkv2"], params["bkv2"],
      params["wo2"], params["bo2"],
      params["w1"], params["b1"], params["w2"], params["b2"],
      params["fnorm_a"], params["fnorm_b"])


def decoder_forward(params, trg, e_outputs, src_mask, trg_mask, *, d_model, heads):
    B, S = trg.shape
    Ssrc = e_outputs.shape[1]
    # Embedder: data-dependent gather stays in plain JAX.
    # TODO(synk): could be a scalar-prefetch DMA-gather kernel if needed.
    x_emb = jnp.take(params["embed"], trg, axis=0).astype(jnp.float32)
    pe = params["pe"][:S].astype(jnp.float32)
    # Masks -> additive biases once (0 keep / -1e9 masked); no per-head select.
    src_bias = jnp.where(jnp.asarray(src_mask, jnp.float32) == 0.0,
                         jnp.float32(-1e9), jnp.float32(0.0)).reshape(B, -1, Ssrc)
    trg_bias = jnp.where(jnp.asarray(trg_mask, jnp.float32) == 0.0,
                         jnp.float32(-1e9), jnp.float32(0.0)).reshape(B, -1, S)
    e_bf16 = e_outputs.astype(jnp.bfloat16)
    return _decoder_stack(x_emb, pe, e_bf16, src_bias, trg_bias, params,
                          d_model=d_model, heads=heads)


# ---------------------------------------------------------------------------
# Pure-JAX reference (numerical cross-check; f32 math, bf16-stored weights)
# ---------------------------------------------------------------------------

def _norm_ref(x, a, b, eps=1e-6):
    mean = jnp.mean(x, axis=-1, keepdims=True)
    xm = x - mean
    var = jnp.sum(xm * xm, axis=-1, keepdims=True) / (x.shape[-1] - 1)
    return a * xm / (jnp.sqrt(var) + eps) + b


def _attn_ref(q, k, v, mask, heads):
    B, Sq, D = q.shape
    Sk = k.shape[1]
    dk = D // heads
    qh = q.reshape(B, Sq, heads, dk).transpose(0, 2, 1, 3)
    kh = k.reshape(B, Sk, heads, dk).transpose(0, 2, 1, 3)
    vh = v.reshape(B, Sk, heads, dk).transpose(0, 2, 1, 3)
    s = jnp.einsum("bhqd,bhkd->bhqk", qh, kh) / math.sqrt(dk)
    s = jnp.where(mask[:, None] == 0, -1e9, s)
    p = jax.nn.softmax(s, axis=-1)
    o = jnp.einsum("bhqk,bhkd->bhqd", p, vh)
    return o.transpose(0, 2, 1, 3).reshape(B, Sq, D)


def decoder_reference(params, trg, e_outputs, src_mask, trg_mask, *, d_model, heads):
    B, S = trg.shape
    D = d_model
    Ssrc = e_outputs.shape[1]
    n_layers = params["wqkv"].shape[0]
    f32 = lambda a: a.astype(jnp.float32)
    x = jnp.take(params["embed"], trg, axis=0) * math.sqrt(D) + params["pe"][:S]
    srcm = jnp.asarray(src_mask, jnp.float32).reshape(B, -1, Ssrc)
    trgm = jnp.asarray(trg_mask, jnp.float32).reshape(B, -1, S)
    e = e_outputs.astype(jnp.float32)
    for l in range(n_layers):
        x2 = _norm_ref(x, params["norm_a"][l, 0], params["norm_b"][l, 0])
        qkv = x2 @ f32(params["wqkv"][l]) + params["bqkv"][l]
        q, k, v = qkv[..., :D], qkv[..., D:2 * D], qkv[..., 2 * D:]
        x = x + _attn_ref(q, k, v, trgm, heads) @ f32(params["wo1"][l]) + params["bo1"][l]
        x2 = _norm_ref(x, params["norm_a"][l, 1], params["norm_b"][l, 1])
        q2 = x2 @ f32(params["wq2"][l]) + params["bq2"][l]
        kv = e @ f32(params["wkv2"][l]) + params["bkv2"][l]
        k2, v2 = kv[..., :D], kv[..., D:]
        x = x + _attn_ref(q2, k2, v2, srcm, heads) @ f32(params["wo2"][l]) + params["bo2"][l]
        x2 = _norm_ref(x, params["norm_a"][l, 2], params["norm_b"][l, 2])
        h = jax.nn.relu(x2 @ f32(params["w1"][l]) + params["b1"][l])
        x = x + h @ f32(params["w2"][l]) + params["b2"][l]
    return _norm_ref(x, params["fnorm_a"], params["fnorm_b"])


# ---------------------------------------------------------------------------
# Deterministic parameter init (bf16 matrices, stacked per-layer, fused QKV/KV)
# ---------------------------------------------------------------------------

def make_pe_table(max_len, d_model):
    # Standard pair-wise exponent: angle = pos / 10000^(2*floor(i/2)/d_model).
    pos = jnp.arange(max_len, dtype=jnp.float32)[:, None]
    col = jnp.arange(d_model)[None, :]
    pair = (col // 2).astype(jnp.float32)
    ang = pos / jnp.power(10000.0, 2.0 * pair / d_model)
    return jnp.where(col % 2 == 0, jnp.sin(ang), jnp.cos(ang)).astype(jnp.float32)


def init_params(key, vocab_size, d_model, n_layers, d_ff, max_seq_len):
    D = d_model
    keys = iter(jax.random.split(key, 12 * n_layers + 4))

    def w(shape, scale=0.02, dtype=jnp.bfloat16):
        return (scale * jax.random.normal(next(keys), shape, jnp.float32)).astype(dtype)

    def stack(fn):
        return jnp.stack([fn() for _ in range(n_layers)], axis=0)

    return {
        "embed": w((vocab_size, D), scale=1.0, dtype=jnp.float32),
        "pe": make_pe_table(max_seq_len, D),
        "norm_a": jnp.ones((n_layers, 3, D), jnp.float32),
        "norm_b": jnp.zeros((n_layers, 3, D), jnp.float32),
        "wqkv": stack(lambda: jnp.concatenate([w((D, D)), w((D, D)), w((D, D))], axis=1)),
        "bqkv": jnp.zeros((n_layers, 1, 3 * D), jnp.float32),
        "wo1": stack(lambda: w((D, D))),
        "bo1": jnp.zeros((n_layers, 1, D), jnp.float32),
        "wq2": stack(lambda: w((D, D))),
        "bq2": jnp.zeros((n_layers, 1, D), jnp.float32),
        "wkv2": stack(lambda: jnp.concatenate([w((D, D)), w((D, D))], axis=1)),
        "bkv2": jnp.zeros((n_layers, 1, 2 * D), jnp.float32),
        "wo2": stack(lambda: w((D, D))),
        "bo2": jnp.zeros((n_layers, 1, D), jnp.float32),
        "w1": stack(lambda: w((D, d_ff))),
        "b1": jnp.zeros((n_layers, 1, d_ff), jnp.float32),
        "w2": stack(lambda: w((d_ff, D))),
        "b2": jnp.zeros((n_layers, 1, D), jnp.float32),
        "fnorm_a": jnp.ones((1, D), jnp.float32),
        "fnorm_b": jnp.zeros((1, D), jnp.float32),
    }


# ---------------------------------------------------------------------------

if __name__ == "__main__":
    # Decoder(vocab_size, d_model, N, heads, dropout)
    vocab_size, d_model, n_layers, heads = 16, 32, 2, 4
    d_ff = 64                 # FeedForward hidden width (default 2048, shrunk for demo)
    B, S_trg, S_src = 2, 8, 8
    max_seq_len = 32

    key = jax.random.PRNGKey(0)
    k_params, k_trg, k_enc = jax.random.split(key, 3)

    params = init_params(k_params, vocab_size, d_model, n_layers, d_ff, max_seq_len)

    trg = jax.random.randint(k_trg, (B, S_trg), 0, vocab_size, dtype=jnp.int32)
    e_outputs = jax.random.normal(k_enc, (B, S_src, d_model), jnp.float32)
    src_mask = jnp.ones((B, 1, S_src), jnp.float32)                          # no src padding
    trg_mask = jnp.broadcast_to(
        jnp.tril(jnp.ones((S_trg, S_trg), jnp.float32)), (B, S_trg, S_trg))  # causal

    # TODO(synk): dropout layers are identity here (inference / eval() semantics).
    fwd = jax.jit(functools.partial(decoder_forward, d_model=d_model, heads=heads))
    out = fwd(params, trg, e_outputs, src_mask, trg_mask)
    jax.block_until_ready(out)

    assert out.shape == (B, S_trg, d_model), out.shape
    assert bool(jnp.all(jnp.isfinite(out)))

    # Cross-check vs pure-JAX f32 reference (kernel uses bf16 matmul inputs).
    ref = jax.jit(functools.partial(decoder_reference, d_model=d_model, heads=heads))(
        params, trg, e_outputs, src_mask, trg_mask)
    err = float(jnp.max(jnp.abs(out - ref)))
    assert err < 1e-1, f"mismatch vs reference: max abs err {err}"

    print("KERNEL_OK")
</pallas_src>

<mosaic_0001>
module attributes {stable_mosaic.version = 11 : i64} {
  func.func @_decoder_stack_kernel(%arg0: i32, %arg1: i32, %arg2: memref<2x8x32xf32, #tpu.memory_space<vmem>>, %arg3: memref<8x32xf32, #tpu.memory_space<vmem>>, %arg4: memref<2x8x32xbf16, #tpu.memory_space<vmem>>, %arg5: memref<2x1x8xf32, #tpu.memory_space<vmem>>, %arg6: memref<2x8x8xf32, #tpu.memory_space<vmem>>, %arg7: memref<1x3x32xf32, #tpu.memory_space<vmem>>, %arg8: memref<1x3x32xf32, #tpu.memory_space<vmem>>, %arg9: memref<1x32x96xbf16, #tpu.memory_space<vmem>>, %arg10: memref<1x1x96xf32, #tpu.memory_space<vmem>>, %arg11: memref<1x32x32xbf16, #tpu.memory_space<vmem>>, %arg12: memref<1x1x32xf32, #tpu.memory_space<vmem>>, %arg13: memref<1x32x32xbf16, #tpu.memory_space<vmem>>, %arg14: memref<1x1x32xf32, #tpu.memory_space<vmem>>, %arg15: memref<1x32x64xbf16, #tpu.memory_space<vmem>>, %arg16: memref<1x1x64xf32, #tpu.memory_space<vmem>>, %arg17: memref<1x32x32xbf16, #tpu.memory_space<vmem>>, %arg18: memref<1x1x32xf32, #tpu.memory_space<vmem>>, %arg19: memref<1x32x64xbf16, #tpu.memory_space<vmem>>, %arg20: memref<1x1x64xf32, #tpu.memory_space<vmem>>, %arg21: memref<1x64x32xbf16, #tpu.memory_space<vmem>>, %arg22: memref<1x1x32xf32, #tpu.memory_space<vmem>>, %arg23: memref<1x32xf32, #tpu.memory_space<vmem>>, %arg24: memref<1x32xf32, #tpu.memory_space<vmem>>, %arg25: memref<2x8x32xf32, #tpu.memory_space<vmem>>, %arg26: memref<16x32xf32, #tpu.memory_space<vmem>>) attributes {dimension_semantics = [#tpu.dimension_semantics<parallel>, #tpu.dimension_semantics<arbitrary>], iteration_bounds = array<i64: 1, 2>, scalar_prefetch = 0 : i64, scratch_operands = 1 : i64, tpu.core_type = #tpu.core_type<tc>, window_params = [{transform_indices = @transform_0, window_bounds = array<i64: 2, 8, 32>}, {pipeline_mode = #tpu.pipeline_mode<synchronous>, transform_indices = @transform_1, window_bounds = array<i64: 8, 32>}, {transform_indices = @transform_2, window_bounds = array<i64: 2, 8, 32>}, {transform_indices = @transform_3, window_bounds = array<i64: 2, 1, 8>}, {transform_indices = @transform_4, window_bounds = array<i64: 2, 8, 8>}, {transform_indices = @transform_5, window_bounds = array<i64: 1, 3, 32>}, {transform_indices = @transform_6, window_bounds = array<i64: 1, 3, 32>}, {transform_indices = @transform_7, window_bounds = array<i64: 1, 32, 96>}, {transform_indices = @transform_8, window_bounds = array<i64: 1, 1, 96>}, {transform_indices = @transform_9, window_bounds = array<i64: 1, 32, 32>}, {transform_indices = @transform_10, window_bounds = array<i64: 1, 1, 32>}, {transform_indices = @transform_11, window_bounds = array<i64: 1, 32, 32>}, {transform_indices = @transform_12, window_bounds = array<i64: 1, 1, 32>}, {transform_indices = @transform_13, window_bounds = array<i64: 1, 32, 64>}, {transform_indices = @transform_14, window_bounds = array<i64: 1, 1, 64>}, {transform_indices = @transform_15, window_bounds = array<i64: 1, 32, 32>}, {transform_indices = @transform_16, window_bounds = array<i64: 1, 1, 32>}, {transform_indices = @transform_17, window_bounds = array<i64: 1, 32, 64>}, {transform_indices = @transform_18, window_bounds = array<i64: 1, 1, 64>}, {transform_indices = @transform_19, window_bounds = array<i64: 1, 64, 32>}, {transform_indices = @transform_20, window_bounds = array<i64: 1, 1, 32>}, {pipeline_mode = #tpu.pipeline_mode<synchronous>, transform_indices = @transform_21, window_bounds = array<i64: 1, 32>}, {pipeline_mode = #tpu.pipeline_mode<synchronous>, transform_indices = @transform_22, window_bounds = array<i64: 1, 32>}, {transform_indices = @transform_23, window_bounds = array<i64: 2, 8, 32>}]} {
    %c0_i32 = arith.constant 0 : i32
    %0 = arith.cmpi eq, %arg1, %c0_i32 : i32
    %1 = arith.extui %0 : i1 to i32
    %c0_i32_0 = arith.constant 0 : i32
    %2 = arith.cmpi ne, %1, %c0_i32_0 : i32
    scf.if %2 {
      %c0_164 = arith.constant 0 : index
      %c0_165 = arith.constant 0 : index
      %c0_166 = arith.constant 0 : index
      %508 = vector.load %arg2[%c0_164, %c0_165, %c0_166] : memref<2x8x32xf32, #tpu.memory_space<vmem>>, vector<2x8x32xf32>
      %cst_167 = arith.constant 5.65685415 : f32
      %509 = vector.broadcast %cst_167 : f32 to vector<2x8x32xf32>
      %510 = arith.mulf %508, %509 : vector<2x8x32xf32>
      %c0_168 = arith.constant 0 : index
      %c0_169 = arith.constant 0 : index
      %511 = vector.load %arg3[%c0_168, %c0_169] : memref<8x32xf32, #tpu.memory_space<vmem>>, vector<8x32xf32>
      %512 = vector.shape_cast %511 : vector<8x32xf32> to vector<1x8x32xf32>
      %513 = vector.broadcast %512 : vector<1x8x32xf32> to vector<2x8x32xf32>
      %514 = arith.addf %510, %513 : vector<2x8x32xf32>
      %515 = vector.shape_cast %514 : vector<2x8x32xf32> to vector<16x32xf32>
      %c0_170 = arith.constant 0 : index
      %c0_171 = arith.constant 0 : index
      %516 = vector.load %arg26[%c0_170, %c0_171] : memref<16x32xf32, #tpu.memory_space<vmem>>, vector<16x32xf32>
      tpu.vector_store %arg26[%c0_170, %c0_171], %515 {strides = array<i32>} : memref<16x32xf32, #tpu.memory_space<vmem>>, vector<16x32xf32>,
    } else {
    }
    %c0 = arith.constant 0 : index
    %c0_1 = arith.constant 0 : index
    %3 = vector.load %arg26[%c0, %c0_1] : memref<16x32xf32, #tpu.memory_space<vmem>>, vector<16x32xf32>
    %c0_2 = arith.constant 0 : index
    %c0_3 = arith.constant 0 : index
    %c0_4 = arith.constant 0 : index
    %4 = vector.load %arg7[%c0_2, %c0_3, %c0_4] : memref<1x3x32xf32, #tpu.memory_space<vmem>>, vector<1x1x32xf32>
    %5 = vector.shape_cast %4 : vector<1x1x32xf32> to vector<1x32xf32>
    %c0_5 = arith.constant 0 : index
    %c0_6 = arith.constant 0 : index
    %c0_7 = arith.constant 0 : index
    %6 = vector.load %arg8[%c0_5, %c0_6, %c0_7] : memref<1x3x32xf32, #tpu.memory_space<vmem>>, vector<1x1x32xf32>
    %7 = vector.shape_cast %6 : vector<1x1x32xf32> to vector<1x32xf32>
    %cst = arith.constant dense<0.000000e+00> : vector<16xf32>
    %8 = vector.multi_reduction <add>, %3, %cst [1] : vector<16x32xf32> to vector<16xf32>
    %9 = vector.shape_cast %8 : vector<16xf32> to vector<16x1xf32>
    %cst_8 = arith.constant 3.200000e+01 : f32
    %10 = vector.broadcast %cst_8 : f32 to vector<16x1xf32>
    %11 = arith.divf %9, %10 : vector<16x1xf32>
    %12 = vector.broadcast %11 : vector<16x1xf32> to vector<16x32xf32>
    %13 = arith.subf %3, %12 : vector<16x32xf32>
    %14 = arith.mulf %13, %13 : vector<16x32xf32>
    %cst_9 = arith.constant dense<0.000000e+00> : vector<16xf32>
    %15 = vector.multi_reduction <add>, %14, %cst_9 [1] : vector<16x32xf32> to vector<16xf32>
    %16 = vector.shape_cast %15 : vector<16xf32> to vector<16x1xf32>
    %cst_10 = arith.constant 0.0322580636 : f32
    %17 = vector.broadcast %cst_10 : f32 to vector<16x1xf32>
    %18 = arith.mulf %16, %17 : vector<16x1xf32>
    %19 = math.sqrt %18 : vector<16x1xf32>
    %cst_11 = arith.constant 9.99999997E-7 : f32
    %20 = vector.broadcast %cst_11 : f32 to vector<16x1xf32>
    %21 = arith.addf %19, %20 : vector<16x1xf32>
    %22 = vector.broadcast %21 : vector<16x1xf32> to vector<16x32xf32>
    %23 = arith.divf %13, %22 : vector<16x32xf32>
    %24 = vector.broadcast %5 : vector<1x32xf32> to vector<16x32xf32>
    %25 = arith.mulf %24, %23 : vector<16x32xf32>
    %26 = vector.broadcast %7 : vector<1x32xf32> to vector<16x32xf32>
    %27 = arith.addf %25, %26 : vector<16x32xf32>
    %28 = arith.truncf %27 : vector<16x32xf32> to vector<16x32xbf16>
    %c0_12 = arith.constant 0 : index
    %c0_13 = arith.constant 0 : index
    %c0_14 = arith.constant 0 : index
    %29 = vector.load %arg9[%c0_12, %c0_13, %c0_14] : memref<1x32x96xbf16, #tpu.memory_space<vmem>>, vector<1x32x96xbf16>
    %30 = vector.shape_cast %29 : vector<1x32x96xbf16> to vector<32x96xbf16>
    %cst_15 = arith.constant dense<0.000000e+00> : vector<16x96xf32>
    %31 = tpu.matmul %28, %30, %cst_15 {dimension_numbers = #tpu.dot_dimension_numbers<[1], [0], [0], [1], [0, 0, 1, 1], [], []>} : vector<16x32xbf16>, vector<32x96xbf16>, vector<16x96xf32> -> vector<16x96xf32>
    %c0_16 = arith.constant 0 : index
    %c0_17 = arith.constant 0 : index
    %c0_18 = arith.constant 0 : index
    %32 = vector.load %arg10[%c0_16, %c0_17, %c0_18] : memref<1x1x96xf32, #tpu.memory_space<vmem>>, vector<1x1x96xf32>
    %33 = vector.shape_cast %32 : vector<1x1x96xf32> to vector<1x96xf32>
    %34 = vector.broadcast %33 : vector<1x96xf32> to vector<16x96xf32>
    %35 = arith.addf %31, %34 : vector<16x96xf32>
    %c0_19 = arith.constant 0 : index
    %c0_20 = arith.constant 0 : index
    %c0_21 = arith.constant 0 : index
    %36 = vector.load %arg12[%c0_19, %c0_20, %c0_21] : memref<1x1x32xf32, #tpu.memory_space<vmem>>, vector<1x1x32xf32>
    %37 = vector.shape_cast %36 : vector<1x1x32xf32> to vector<1x32xf32>
    %38 = vector.extract_strided_slice %35 {offsets = [0, 0], sizes = [8, 96], strides = [1, 1]} : vector<16x96xf32> to vector<8x96xf32>
    %39 = vector.extract_strided_slice %35 {offsets = [0, 0], sizes = [8, 96], strides = [1, 1]} : vector<16x96xf32> to vector<8x96xf32>
    %c0_22 = arith.constant 0 : index
    %c0_23 = arith.constant 0 : index
    %c0_24 = arith.constant 0 : index
    %40 = vector.load %arg6[%c0_22, %c0_23, %c0_24] : memref<2x8x8xf32, #tpu.memory_space<vmem>>, vector<1x8x8xf32>
    %41 = vector.shape_cast %40 : vector<1x8x8xf32> to vector<8x8xf32>
    %42 = vector.extract_strided_slice %38 {offsets = [0, 0], sizes = [8, 8], strides = [1, 1]} : vector<8x96xf32> to vector<8x8xf32>
    %43 = vector.extract_strided_slice %39 {offsets = [0, 32], sizes = [8, 8], strides = [1, 1]} : vector<8x96xf32> to vector<8x8xf32>
    %44 = vector.extract_strided_slice %39 {offsets = [0, 64], sizes = [8, 8], strides = [1, 1]} : vector<8x96xf32> to vector<8x8xf32>
    %45 = arith.truncf %42 : vector<8x8xf32> to vector<8x8xbf16>
    %46 = arith.truncf %43 : vector<8x8xf32> to vector<8x8xbf16>
    %47 = tpu.transpose %46, [1, 0] : vector<8x8xbf16> -> vector<8x8xbf16>
    %cst_25 = arith.constant dense<0.000000e+00> : vector<8x8xf32>
    %48 = tpu.matmul %45, %47, %cst_25 {dimension_numbers = #tpu.dot_dimension_numbers<[1], [0], [0], [1], [0, 0, 1, 1], [], []>} : vector<8x8xbf16>, vector<8x8xbf16>, vector<8x8xf32> -> vector<8x8xf32>
    %49 = arith.addf %48, %41 : vector<8x8xf32>
    %cst_26 = arith.constant dense<0xFF800000> : vector<8xf32>
    %50 = vector.multi_reduction <maximumf>, %49, %cst_26 [1] : vector<8x8xf32> to vector<8xf32>
    %51 = vector.shape_cast %50 : vector<8xf32> to vector<8x1xf32>
    %52 = vector.broadcast %51 : vector<8x1xf32> to vector<8x8xf32>
    %53 = arith.subf %49, %52 : vector<8x8xf32>
    %54 = math.exp %53 : vector<8x8xf32>
    %cst_27 = arith.constant dense<0.000000e+00> : vector<8xf32>
    %55 = vector.multi_reduction <add>, %54, %cst_27 [1] : vector<8x8xf32> to vector<8xf32>
    %56 = vector.shape_cast %55 : vector<8xf32> to vector<8x1xf32>
    %57 = tpu.reciprocal %56 {approx = true} : vector<8x1xf32> -> vector<8x1xf32>
    %58 = vector.broadcast %57 : vector<8x1xf32> to vector<8x8xf32>
    %59 = arith.mulf %54, %58 : vector<8x8xf32>
    %60 = arith.truncf %59 : vector<8x8xf32> to vector<8x8xbf16>
    %61 = arith.truncf %44 : vector<8x8xf32> to vector<8x8xbf16>
    %cst_28 = arith.constant dense<0.000000e+00> : vector<8x8xf32>
    %62 = tpu.matmul %60, %61, %cst_28 {dimension_numbers = #tpu.dot_dimension_numbers<[1], [0], [0], [1], [0, 0, 1, 1], [], []>} : vector<8x8xbf16>, vector<8x8xbf16>, vector<8x8xf32> -> vector<8x8xf32>
    %63 = vector.extract_strided_slice %38 {offsets = [0, 8], sizes = [8, 8], strides = [1, 1]} : vector<8x96xf32> to vector<8x8xf32>
    %64 = vector.extract_strided_slice %39 {offsets = [0, 40], sizes = [8, 8], strides = [1, 1]} : vector<8x96xf32> to vector<8x8xf32>
    %65 = vector.extract_strided_slice %39 {offsets = [0, 72], sizes = [8, 8], strides = [1, 1]} : vector<8x96xf32> to vector<8x8xf32>
    %66 = arith.truncf %63 : vector<8x8xf32> to vector<8x8xbf16>
    %67 = arith.truncf %64 : vector<8x8xf32> to vector<8x8xbf16>
    %68 = tpu.transpose %67, [1, 0] : vector<8x8xbf16> -> vector<8x8xbf16>
    %cst_29 = arith.constant dense<0.000000e+00> : vector<8x8xf32>
    %69 = tpu.matmul %66, %68, %cst_29 {dimension_numbers = #tpu.dot_dimension_numbers<[1], [0], [0], [1], [0, 0, 1, 1], [], []>} : vector<8x8xbf16>, vector<8x8xbf16>, vector<8x8xf32> -> vector<8x8xf32>
    %70 = arith.addf %69, %41 : vector<8x8xf32>
    %cst_30 = arith.constant dense<0xFF800000> : vector<8xf32>
    %71 = vector.multi_reduction <maximumf>, %70, %cst_30 [1] : vector<8x8xf32> to vector<8xf32>
    %72 = vector.shape_cast %71 : vector<8xf32> to vector<8x1xf32>
    %73 = vector.broadcast %72 : vector<8x1xf32> to vector<8x8xf32>
    %74 = arith.subf %70, %73 : vector<8x8xf32>
    %75 = math.exp %74 : vector<8x8xf32>
    %cst_31 = arith.constant dense<0.000000e+00> : vector<8xf32>
    %76 = vector.multi_reduction <add>, %75, %cst_31 [1] : vector<8x8xf32> to vector<8xf32>
    %77 = vector.shape_cast %76 : vector<8xf32> to vector<8x1xf32>
    %78 = tpu.reciprocal %77 {approx = true} : vector<8x1xf32> -> vector<8x1xf32>
    %79 = vector.broadcast %78 : vector<8x1xf32> to vector<8x8xf32>
    %80 = arith.mulf %75, %79 : vector<8x8xf32>
    %81 = arith.truncf %80 : vector<8x8xf32> to vector<8x8xbf16>
    %82 = arith.truncf %65 : vector<8x8xf32> to vector<8x8xbf16>
    %cst_32 = arith.constant dense<0.000000e+00> : vector<8x8xf32>
    %83 = tpu.matmul %81, %82, %cst_32 {dimension_numbers = #tpu.dot_dimension_numbers<[1], [0], [0], [1], [0, 0, 1, 1], [], []>} : vector<8x8xbf16>, vector<8x8xbf16>, vector<8x8xf32> -> vector<8x8xf32>
    %84 = vector.extract_strided_slice %38 {offsets = [0, 16], sizes = [8, 8], strides = [1, 1]} : vector<8x96xf32> to vector<8x8xf32>
    %85 = vector.extract_strided_slice %39 {offsets = [0, 48], sizes = [8, 8], strides = [1, 1]} : vector<8x96xf32> to vector<8x8xf32>
    %86 = vector.extract_strided_slice %39 {offsets = [0, 80], sizes = [8, 8], strides = [1, 1]} : vector<8x96xf32> to vector<8x8xf32>
    %87 = arith.truncf %84 : vector<8x8xf32> to vector<8x8xbf16>
    %88 = arith.truncf %85 : vector<8x8xf32> to vector<8x8xbf16>
    %89 = tpu.transpose %88, [1, 0] : vector<8x8xbf16> -> vector<8x8xbf16>
    %cst_33 = arith.constant dense<0.000000e+00> : vector<8x8xf32>
    %90 = tpu.matmul %87, %89, %cst_33 {dimension_numbers = #tpu.dot_dimension_numbers<[1], [0], [0], [1], [0, 0, 1, 1], [], []>} : vector<8x8xbf16>, vector<8x8xbf16>, vector<8x8xf32> -> vector<8x8xf32>
    %91 = arith.addf %90, %41 : vector<8x8xf32>
    %cst_34 = arith.constant dense<0xFF800000> : vector<8xf32>
    %92 = vector.multi_reduction <maximumf>, %91, %cst_34 [1] : vector<8x8xf32> to vector<8xf32>
    %93 = vector.shape_cast %92 : vector<8xf32> to vector<8x1xf32>
    %94 = vector.broadcast %93 : vector<8x1xf32> to vector<8x8xf32>
    %95 = arith.subf %91, %94 : vector<8x8xf32>
    %96 = math.exp %95 : vector<8x8xf32>
    %cst_35 = arith.constant dense<0.000000e+00> : vector<8xf32>
    %97 = vector.multi_reduction <add>, %96, %cst_35 [1] : vector<8x8xf32> to vector<8xf32>
    %98 = vector.shape_cast %97 : vector<8xf32> to vector<8x1xf32>
    %99 = tpu.reciprocal %98 {approx = true} : vector<8x1xf32> -> vector<8x1xf32>
    %100 = vector.broadcast %99 : vector<8x1xf32> to vector<8x8xf32>
    %101 = arith.mulf %96, %100 : vector<8x8xf32>
    %102 = arith.truncf %101 : vector<8x8xf32> to vector<8x8xbf16>
    %103 = arith.truncf %86 : vector<8x8xf32> to vector<8x8xbf16>
    %cst_36 = arith.constant dense<0.000000e+00> : vector<8x8xf32>
    %104 = tpu.matmul %102, %103, %cst_36 {dimension_numbers = #tpu.dot_dimension_numbers<[1], [0], [0], [1], [0, 0, 1, 1], [], []>} : vector<8x8xbf16>, vector<8x8xbf16>, vector<8x8xf32> -> vector<8x8xf32>
    %105 = vector.extract_strided_slice %38 {offsets = [0, 24], sizes = [8, 8], strides = [1, 1]} : vector<8x96xf32> to vector<8x8xf32>
    %106 = vector.extract_strided_slice %39 {offsets = [0, 56], sizes = [8, 8], strides = [1, 1]} : vector<8x96xf32> to vector<8x8xf32>
    %107 = vector.extract_strided_slice %39 {offsets = [0, 88], sizes = [8, 8], strides = [1, 1]} : vector<8x96xf32> to vector<8x8xf32>
    %108 = arith.truncf %105 : vector<8x8xf32> to vector<8x8xbf16>
    %109 = arith.truncf %106 : vector<8x8xf32> to vector<8x8xbf16>
    %110 = tpu.transpose %109, [1, 0] : vector<8x8xbf16> -> vector<8x8xbf16>
    %cst_37 = arith.constant dense<0.000000e+00> : vector<8x8xf32>
    %111 = tpu.matmul %108, %110, %cst_37 {dimension_numbers = #tpu.dot_dimension_numbers<[1], [0], [0], [1], [0, 0, 1, 1], [], []>} : vector<8x8xbf16>, vector<8x8xbf16>, vector<8x8xf32> -> vector<8x8xf32>
    %112 = arith.addf %111, %41 : vector<8x8xf32>
    %cst_38 = arith.constant dense<0xFF800000> : vector<8xf32>
    %113 = vector.multi_reduction <maximumf>, %112, %cst_38 [1] : vector<8x8xf32> to vector<8xf32>
    %114 = vector.shape_cast %113 : vector<8xf32> to vector<8x1xf32>
    %115 = vector.broadcast %114 : vector<8x1xf32> to vector<8x8xf32>
    %116 = arith.subf %112, %115 : vector<8x8xf32>
    %117 = math.exp %116 : vector<8x8xf32>
    %cst_39 = arith.constant dense<0.000000e+00> : vector<8xf32>
    %118 = vector.multi_reduction <add>, %117, %cst_39 [1] : vector<8x8xf32> to vector<8xf32>
    %119 = vector.shape_cast %118 : vector<8xf32> to vector<8x1xf32>
    %120 = tpu.reciprocal %119 {approx = true} : vector<8x1xf32> -> vector<8x1xf32>
    %121 = vector.broadcast %120 : vector<8x1xf32> to vector<8x8xf32>
    %122 = arith.mulf %117, %121 : vector<8x8xf32>
    %123 = arith.truncf %122 : vector<8x8xf32> to vector<8x8xbf16>
    %124 = arith.truncf %107 : vector<8x8xf32> to vector<8x8xbf16>
    %cst_40 = arith.constant dense<0.000000e+00> : vector<8x8xf32>
    %125 = tpu.matmul %123, %124, %cst_40 {dimension_numbers = #tpu.dot_dimension_numbers<[1], [0], [0], [1], [0, 0, 1, 1], [], []>} : vector<8x8xbf16>, vector<8x8xbf16>, vector<8x8xf32> -> vector<8x8xf32>
    %126 = tpu.concatenate %62, %83, %104, %125 in 1 : vector<8x8xf32>, vector<8x8xf32>, vector<8x8xf32>, vector<8x8xf32> -> vector<8x32xf32>
    %127 = vector.extract_strided_slice %35 {offsets = [8, 0], sizes = [8, 96], strides = [1, 1]} : vector<16x96xf32> to vector<8x96xf32>
    %128 = vector.extract_strided_slice %35 {offsets = [8, 0], sizes = [8, 96], strides = [1, 1]} : vector<16x96xf32> to vector<8x96xf32>
    %c1 = arith.constant 1 : index
    %c0_41 = arith.constant 0 : index
    %c0_42 = arith.constant 0 : index
    %129 = vector.load %arg6[%c1, %c0_41, %c0_42] : memref<2x8x8xf32, #tpu.memory_space<vmem>>, vector<1x8x8xf32>
    %130 = vector.shape_cast %129 : vector<1x8x8xf32> to vector<8x8xf32>
    %131 = vector.extract_strided_slice %127 {offsets = [0, 0], sizes = [8, 8], strides = [1, 1]} : vector<8x96xf32> to vector<8x8xf32>
    %132 = vector.extract_strided_slice %128 {offsets = [0, 32], sizes = [8, 8], strides = [1, 1]} : vector<8x96xf32> to vector<8x8xf32>
    %133 = vector.extract_strided_slice %128 {offsets = [0, 64], sizes = [8, 8], strides = [1, 1]} : vector<8x96xf32> to vector<8x8xf32>
    %134 = arith.truncf %131 : vector<8x8xf32> to vector<8x8xbf16>
    %135 = arith.truncf %132 : vector<8x8xf32> to vector<8x8xbf16>
    %136 = tpu.transpose %135, [1, 0] : vector<8x8xbf16> -> vector<8x8xbf16>
    %cst_43 = arith.constant dense<0.000000e+00> : vector<8x8xf32>
    %137 = tpu.matmul %134, %136, %cst_43 {dimension_numbers = #tpu.dot_dimension_numbers<[1], [0], [0], [1], [0, 0, 1, 1], [], []>} : vector<8x8xbf16>, vector<8x8xbf16>, vector<8x8xf32> -> vector<8x8xf32>
    %138 = arith.addf %137, %130 : vector<8x8xf32>
    %cst_44 = arith.constant dense<0xFF800000> : vector<8xf32>
    %139 = vector.multi_reduction <maximumf>, %138, %cst_44 [1] : vector<8x8xf32> to vector<8xf32>
    %140 = vector.shape_cast %139 : vector<8xf32> to vector<8x1xf32>
    %141 = vector.broadcast %140 : vector<8x1xf32> to vector<8x8xf32>
    %142 = arith.subf %138, %141 : vector<8x8xf32>
    %143 = math.exp %142 : vector<8x8xf32>
    %cst_45 = arith.constant dense<0.000000e+00> : vector<8xf32>
    %144 = vector.multi_reduction <add>, %143, %cst_45 [1] : vector<8x8xf32> to vector<8xf32>
    %145 = vector.shape_cast %144 : vector<8xf32> to vector<8x1xf32>
    %146 = tpu.reciprocal %145 {approx = true} : vector<8x1xf32> -> vector<8x1xf32>
    %147 = vector.broadcast %146 : vector<8x1xf32> to vector<8x8xf32>
    %148 = arith.mulf %143, %147 : vector<8x8xf32>
    %149 = arith.truncf %148 : vector<8x8xf32> to vector<8x8xbf16>
    %150 = arith.truncf %133 : vector<8x8xf32> to vector<8x8xbf16>
    %cst_46 = arith.constant dense<0.000000e+00> : vector<8x8xf32>
    %151 = tpu.matmul %149, %150, %cst_46 {dimension_numbers = #tpu.dot_dimension_numbers<[1], [0], [0], [1], [0, 0, 1, 1], [], []>} : vector<8x8xbf16>, vector<8x8xbf16>, vector<8x8xf32> -> vector<8x8xf32>
    %152 = vector.extract_strided_slice %127 {offsets = [0, 8], sizes = [8, 8], strides = [1, 1]} : vector<8x96xf32> to vector<8x8xf32>
    %153 = vector.extract_strided_slice %128 {offsets = [0, 40], sizes = [8, 8], strides = [1, 1]} : vector<8x96xf32> to vector<8x8xf32>
    %154 = vector.extract_strided_slice %128 {offsets = [0, 72], sizes = [8, 8], strides = [1, 1]} : vector<8x96xf32> to vector<8x8xf32>
    %155 = arith.truncf %152 : vector<8x8xf32> to vector<8x8xbf16>
    %156 = arith.truncf %153 : vector<8x8xf32> to vector<8x8xbf16>
    %157 = tpu.transpose %156, [1, 0] : vector<8x8xbf16> -> vector<8x8xbf16>
    %cst_47 = arith.constant dense<0.000000e+00> : vector<8x8xf32>
    %158 = tpu.matmul %155, %157, %cst_47 {dimension_numbers = #tpu.dot_dimension_numbers<[1], [0], [0], [1], [0, 0, 1, 1], [], []>} : vector<8x8xbf16>, vector<8x8xbf16>, vector<8x8xf32> -> vector<8x8xf32>
    %159 = arith.addf %158, %130 : vector<8x8xf32>
    %cst_48 = arith.constant dense<0xFF800000> : vector<8xf32>
    %160 = vector.multi_reduction <maximumf>, %159, %cst_48 [1] : vector<8x8xf32> to vector<8xf32>
    %161 = vector.shape_cast %160 : vector<8xf32> to vector<8x1xf32>
    %162 = vector.broadcast %161 : vector<8x1xf32> to vector<8x8xf32>
    %163 = arith.subf %159, %162 : vector<8x8xf32>
    %164 = math.exp %163 : vector<8x8xf32>
    %cst_49 = arith.constant dense<0.000000e+00> : vector<8xf32>
    %165 = vector.multi_reduction <add>, %164, %cst_49 [1] : vector<8x8xf32> to vector<8xf32>
    %166 = vector.shape_cast %165 : vector<8xf32> to vector<8x1xf32>
    %167 = tpu.reciprocal %166 {approx = true} : vector<8x1xf32> -> vector<8x1xf32>
    %168 = vector.broadcast %167 : vector<8x1xf32> to vector<8x8xf32>
    %169 = arith.mulf %164, %168 : vector<8x8xf32>
    %170 = arith.truncf %169 : vector<8x8xf32> to vector<8x8xbf16>
    %171 = arith.truncf %154 : vector<8x8xf32> to vector<8x8xbf16>
    %cst_50 = arith.constant dense<0.000000e+00> : vector<8x8xf32>
    %172 = tpu.matmul %170, %171, %cst_50 {dimension_numbers = #tpu.dot_dimension_numbers<[1], [0], [0], [1], [0, 0, 1, 1], [], []>} : vector<8x8xbf16>, vector<8x8xbf16>, vector<8x8xf32> -> vector<8x8xf32>
    %173 = vector.extract_strided_slice %127 {offsets = [0, 16], sizes = [8, 8], strides = [1, 1]} : vector<8x96xf32> to vector<8x8xf32>
    %174 = vector.extract_strided_slice %128 {offsets = [0, 48], sizes = [8, 8], strides = [1, 1]} : vector<8x96xf32> to vector<8x8xf32>
    %175 = vector.extract_strided_slice %128 {offsets = [0, 80], sizes = [8, 8], strides = [1, 1]} : vector<8x96xf32> to vector<8x8xf32>
    %176 = arith.truncf %173 : vector<8x8xf32> to vector<8x8xbf16>
    %177 = arith.truncf %174 : vector<8x8xf32> to vector<8x8xbf16>
    %178 = tpu.transpose %177, [1, 0] : vector<8x8xbf16> -> vector<8x8xbf16>
    %cst_51 = arith.constant dense<0.000000e+00> : vector<8x8xf32>
    %179 = tpu.matmul %176, %178, %cst_51 {dimension_numbers = #tpu.dot_dimension_numbers<[1], [0], [0], [1], [0, 0, 1, 1], [], []>} : vector<8x8xbf16>, vector<8x8xbf16>, vector<8x8xf32> -> vector<8x8xf32>
    %180 = arith.addf %179, %130 : vector<8x8xf32>
    %cst_52 = arith.constant dense<0xFF800000> : vector<8xf32>
    %181 = vector.multi_reduction <maximumf>, %180, %cst_52 [1] : vector<8x8xf32> to vector<8xf32>
    %182 = vector.shape_cast %181 : vector<8xf32> to vector<8x1xf32>
    %183 = vector.broadcast %182 : vector<8x1xf32> to vector<8x8xf32>
    %184 = arith.subf %180, %183 : vector<8x8xf32>
    %185 = math.exp %184 : vector<8x8xf32>
    %cst_53 = arith.constant dense<0.000000e+00> : vector<8xf32>
    %186 = vector.multi_reduction <add>, %185, %cst_53 [1] : vector<8x8xf32> to vector<8xf32>
    %187 = vector.shape_cast %186 : vector<8xf32> to vector<8x1xf32>
    %188 = tpu.reciprocal %187 {approx = true} : vector<8x1xf32> -> vector<8x1xf32>
    %189 = vector.broadcast %188 : vector<8x1xf32> to vector<8x8xf32>
    %190 = arith.mulf %185, %189 : vector<8x8xf32>
    %191 = arith.truncf %190 : vector<8x8xf32> to vector<8x8xbf16>
    %192 = arith.truncf %175 : vector<8x8xf32> to vector<8x8xbf16>
    %cst_54 = arith.constant dense<0.000000e+00> : vector<8x8xf32>
    %193 = tpu.matmul %191, %192, %cst_54 {dimension_numbers = #tpu.dot_dimension_numbers<[1], [0], [0], [1], [0, 0, 1, 1], [], []>} : vector<8x8xbf16>, vector<8x8xbf16>, vector<8x8xf32> -> vector<8x8xf32>
    %194 = vector.extract_strided_slice %127 {offsets = [0, 24], sizes = [8, 8], strides = [1, 1]} : vector<8x96xf32> to vector<8x8xf32>
    %195 = vector.extract_strided_slice %128 {offsets = [0, 56], sizes = [8, 8], strides = [1, 1]} : vector<8x96xf32> to vector<8x8xf32>
    %196 = vector.extract_strided_slice %128 {offsets = [0, 88], sizes = [8, 8], strides = [1, 1]} : vector<8x96xf32> to vector<8x8xf32>
    %197 = arith.truncf %194 : vector<8x8xf32> to vector<8x8xbf16>
    %198 = arith.truncf %195 : vector<8x8xf32> to vector<8x8xbf16>
    %199 = tpu.transpose %198, [1, 0] : vector<8x8xbf16> -> vector<8x8xbf16>
    %cst_55 = arith.constant dense<0.000000e+00> : vector<8x8xf32>
    %200 = tpu.matmul %197, %199, %cst_55 {dimension_numbers = #tpu.dot_dimension_numbers<[1], [0], [0], [1], [0, 0, 1, 1], [], []>} : vector<8x8xbf16>, vector<8x8xbf16>, vector<8x8xf32> -> vector<8x8xf32>
    %201 = arith.addf %200, %130 : vector<8x8xf32>
    %cst_56 = arith.constant dense<0xFF800000> : vector<8xf32>
    %202 = vector.multi_reduction <maximumf>, %201, %cst_56 [1] : vector<8x8xf32> to vector<8xf32>
    %203 = vector.shape_cast %202 : vector<8xf32> to vector<8x1xf32>
    %204 = vector.broadcast %203 : vector<8x1xf32> to vector<8x8xf32>
    %205 = arith.subf %201, %204 : vector<8x8xf32>
    %206 = math.exp %205 : vector<8x8xf32>
    %cst_57 = arith.constant dense<0.000000e+00> : vector<8xf32>
    %207 = vector.multi_reduction <add>, %206, %cst_57 [1] : vector<8x8xf32> to vector<8xf32>
    %208 = vector.shape_cast %207 : vector<8xf32> to vector<8x1xf32>
    %209 = tpu.reciprocal %208 {approx = true} : vector<8x1xf32> -> vector<8x1xf32>
    %210 = vector.broadcast %209 : vector<8x1xf32> to vector<8x8xf32>
    %211 = arith.mulf %206, %210 : vector<8x8xf32>
    %212 = arith.truncf %211 : vector<8x8xf32> to vector<8x8xbf16>
    %213 = arith.truncf %196 : vector<8x8xf32> to vector<8x8xbf16>
    %cst_58 = arith.constant dense<0.000000e+00> : vector<8x8xf32>
    %214 = tpu.matmul %212, %213, %cst_58 {dimension_numbers = #tpu.dot_dimension_numbers<[1], [0], [0], [1], [0, 0, 1, 1], [], []>} : vector<8x8xbf16>, vector<8x8xbf16>, vector<8x8xf32> -> vector<8x8xf32>
    %215 = tpu.concatenate %151, %172, %193, %214 in 1 : vector<8x8xf32>, vector<8x8xf32>, vector<8x8xf32>, vector<8x8xf32> -> vector<8x32xf32>
    %216 = tpu.concatenate %126, %215 in 0 : vector<8x32xf32>, vector<8x32xf32> -> vector<16x32xf32>
    %217 = arith.truncf %216 : vector<16x32xf32> to vector<16x32xbf16>
    %c0_59 = arith.constant 0 : index
    %c0_60 = arith.constant 0 : index
    %c0_61 = arith.constant 0 : index
    %218 = vector.load %arg11[%c0_59, %c0_60, %c0_61] : memref<1x32x32xbf16, #tpu.memory_space<vmem>>, vector<1x32x32xbf16>
    %219 = vector.shape_cast %218 : vector<1x32x32xbf16> to vector<32x32xbf16>
    %cst_62 = arith.constant dense<0.000000e+00> : vector<16x32xf32>
    %220 = tpu.matmul %217, %219, %cst_62 {dimension_numbers = #tpu.dot_dimension_numbers<[1], [0], [0], [1], [0, 0, 1, 1], [], []>} : vector<16x32xbf16>, vector<32x32xbf16>, vector<16x32xf32> -> vector<16x32xf32>
    %221 = vector.broadcast %37 : vector<1x32xf32> to vector<16x32xf32>
    %222 = arith.addf %220, %221 : vector<16x32xf32>
    %223 = arith.addf %3, %222 : vector<16x32xf32>
    %c0_63 = arith.constant 0 : index
    %c1_64 = arith.constant 1 : index
    %c0_65 = arith.constant 0 : index
    %224 = vector.load %arg7[%c0_63, %c1_64, %c0_65] : memref<1x3x32xf32, #tpu.memory_space<vmem>>, vector<1x1x32xf32>
    %225 = vector.shape_cast %224 : vector<1x1x32xf32> to vector<1x32xf32>
    %c0_66 = arith.constant 0 : index
    %c1_67 = arith.constant 1 : index
    %c0_68 = arith.constant 0 : index
    %226 = vector.load %arg8[%c0_66, %c1_67, %c0_68] : memref<1x3x32xf32, #tpu.memory_space<vmem>>, vector<1x1x32xf32>
    %227 = vector.shape_cast %226 : vector<1x1x32xf32> to vector<1x32xf32>
    %cst_69 = arith.constant dense<0.000000e+00> : vector<16xf32>
    %228 = vector.multi_reduction <add>, %223, %cst_69 [1] : vector<16x32xf32> to vector<16xf32>
    %229 = vector.shape_cast %228 : vector<16xf32> to vector<16x1xf32>
    %cst_70 = arith.constant 3.200000e+01 : f32
    %230 = vector.broadcast %cst_70 : f32 to vector<16x1xf32>
    %231 = arith.divf %229, %230 : vector<16x1xf32>
    %232 = vector.broadcast %231 : vector<16x1xf32> to vector<16x32xf32>
    %233 = arith.subf %223, %232 : vector<16x32xf32>
    %234 = arith.mulf %233, %233 : vector<16x32xf32>
    %cst_71 = arith.constant dense<0.000000e+00> : vector<16xf32>
    %235 = vector.multi_reduction <add>, %234, %cst_71 [1] : vector<16x32xf32> to vector<16xf32>
    %236 = vector.shape_cast %235 : vector<16xf32> to vector<16x1xf32>
    %cst_72 = arith.constant 0.0322580636 : f32
    %237 = vector.broadcast %cst_72 : f32 to vector<16x1xf32>
    %238 = arith.mulf %236, %237 : vector<16x1xf32>
    %239 = math.sqrt %238 : vector<16x1xf32>
    %cst_73 = arith.constant 9.99999997E-7 : f32
    %240 = vector.broadcast %cst_73 : f32 to vector<16x1xf32>
    %241 = arith.addf %239, %240 : vector<16x1xf32>
    %242 = vector.broadcast %241 : vector<16x1xf32> to vector<16x32xf32>
    %243 = arith.divf %233, %242 : vector<16x32xf32>
    %244 = vector.broadcast %225 : vector<1x32xf32> to vector<16x32xf32>
    %245 = arith.mulf %244, %243 : vector<16x32xf32>
    %246 = vector.broadcast %227 : vector<1x32xf32> to vector<16x32xf32>
    %247 = arith.addf %245, %246 : vector<16x32xf32>
    %248 = arith.truncf %247 : vector<16x32xf32> to vector<16x32xbf16>
    %c0_74 = arith.constant 0 : index
    %c0_75 = arith.constant 0 : index
    %c0_76 = arith.constant 0 : index
    %249 = vector.load %arg13[%c0_74, %c0_75, %c0_76] : memref<1x32x32xbf16, #tpu.memory_space<vmem>>, vector<1x32x32xbf16>
    %250 = vector.shape_cast %249 : vector<1x32x32xbf16> to vector<32x32xbf16>
    %cst_77 = arith.constant dense<0.000000e+00> : vector<16x32xf32>
    %251 = tpu.matmul %248, %250, %cst_77 {dimension_numbers = #tpu.dot_dimension_numbers<[1], [0], [0], [1], [0, 0, 1, 1], [], []>} : vector<16x32xbf16>, vector<32x32xbf16>, vector<16x32xf32> -> vector<16x32xf32>
    %c0_78 = arith.constant 0 : index
    %c0_79 = arith.constant 0 : index
    %c0_80 = arith.constant 0 : index
    %252 = vector.load %arg14[%c0_78, %c0_79, %c0_80] : memref<1x1x32xf32, #tpu.memory_space<vmem>>, vector<1x1x32xf32>
    %253 = vector.shape_cast %252 : vector<1x1x32xf32> to vector<1x32xf32>
    %254 = vector.broadcast %253 : vector<1x32xf32> to vector<16x32xf32>
    %255 = arith.addf %251, %254 : vector<16x32xf32>
    %c0_81 = arith.constant 0 : index
    %c0_82 = arith.constant 0 : index
    %c0_83 = arith.constant 0 : index
    %256 = vector.load %arg4[%c0_81, %c0_82, %c0_83] : memref<2x8x32xbf16, #tpu.memory_space<vmem>>, vector<2x8x32xbf16>
    %257 = vector.shape_cast %256 : vector<2x8x32xbf16> to vector<16x32xbf16>
    %c0_84 = arith.constant 0 : index
    %c0_85 = arith.constant 0 : index
    %c0_86 = arith.constant 0 : index
    %258 = vector.load %arg15[%c0_84, %c0_85, %c0_86] : memref<1x32x64xbf16, #tpu.memory_space<vmem>>, vector<1x32x64xbf16>
    %259 = vector.shape_cast %258 : vector<1x32x64xbf16> to vector<32x64xbf16>
    %cst_87 = arith.constant dense<0.000000e+00> : vector<16x64xf32>
    %260 = tpu.matmul %257, %259, %cst_87 {dimension_numbers = #tpu.dot_dimension_numbers<[1], [0], [0], [1], [0, 0, 1, 1], [], []>} : vector<16x32xbf16>, vector<32x64xbf16>, vector<16x64xf32> -> vector<16x64xf32>
    %c0_88 = arith.constant 0 : index
    %c0_89 = arith.constant 0 : index
    %c0_90 = arith.constant 0 : index
    %261 = vector.load %arg16[%c0_88, %c0_89, %c0_90] : memref<1x1x64xf32, #tpu.memory_space<vmem>>, vector<1x1x64xf32>
    %262 = vector.shape_cast %261 : vector<1x1x64xf32> to vector<1x64xf32>
    %263 = vector.broadcast %262 : vector<1x64xf32> to vector<16x64xf32>
    %264 = arith.addf %260, %263 : vector<16x64xf32>
    %c0_91 = arith.constant 0 : index
    %c0_92 = arith.constant 0 : index
    %c0_93 = arith.constant 0 : index
    %265 = vector.load %arg18[%c0_91, %c0_92, %c0_93] : memref<1x1x32xf32, #tpu.memory_space<vmem>>, vector<1x1x32xf32>
    %266 = vector.shape_cast %265 : vector<1x1x32xf32> to vector<1x32xf32>
    %267 = vector.extract_strided_slice %255 {offsets = [0, 0], sizes = [8, 32], strides = [1, 1]} : vector<16x32xf32> to vector<8x32xf32>
    %268 = vector.extract_strided_slice %264 {offsets = [0, 0], sizes = [8, 64], strides = [1, 1]} : vector<16x64xf32> to vector<8x64xf32>
    %c0_94 = arith.constant 0 : index
    %c0_95 = arith.constant 0 : index
    %c0_96 = arith.constant 0 : index
    %269 = vector.load %arg5[%c0_94, %c0_95, %c0_96] : memref<2x1x8xf32, #tpu.memory_space<vmem>>, vector<1x1x8xf32>
    %270 = vector.shape_cast %269 : vector<1x1x8xf32> to vector<1x8xf32>
    %271 = vector.extract_strided_slice %267 {offsets = [0, 0], sizes = [8, 8], strides = [1, 1]} : vector<8x32xf32> to vector<8x8xf32>
    %272 = vector.extract_strided_slice %268 {offsets = [0, 0], sizes = [8, 8], strides = [1, 1]} : vector<8x64xf32> to vector<8x8xf32>
    %273 = vector.extract_strided_slice %268 {offsets = [0, 32], sizes = [8, 8], strides = [1, 1]} : vector<8x64xf32> to vector<8x8xf32>
    %274 = arith.truncf %271 : vector<8x8xf32> to vector<8x8xbf16>
    %275 = arith.truncf %272 : vector<8x8xf32> to vector<8x8xbf16>
    %276 = tpu.transpose %275, [1, 0] : vector<8x8xbf16> -> vector<8x8xbf16>
    %cst_97 = arith.constant dense<0.000000e+00> : vector<8x8xf32>
    %277 = tpu.matmul %274, %276, %cst_97 {dimension_numbers = #tpu.dot_dimension_numbers<[1], [0], [0], [1], [0, 0, 1, 1], [], []>} : vector<8x8xbf16>, vector<8x8xbf16>, vector<8x8xf32> -> vector<8x8xf32>
    %278 = vector.broadcast %270 : vector<1x8xf32> to vector<8x8xf32>
    %279 = arith.addf %277, %278 : vector<8x8xf32>
    %cst_98 = arith.constant dense<0xFF800000> : vector<8xf32>
    %280 = vector.multi_reduction <maximumf>, %279, %cst_98 [1] : vector<8x8xf32> to vector<8xf32>
    %281 = vector.shape_cast %280 : vector<8xf32> to vector<8x1xf32>
    %282 = vector.broadcast %281 : vector<8x1xf32> to vector<8x8xf32>
    %283 = arith.subf %279, %282 : vector<8x8xf32>
    %284 = math.exp %283 : vector<8x8xf32>
    %cst_99 = arith.constant dense<0.000000e+00> : vector<8xf32>
    %285 = vector.multi_reduction <add>, %284, %cst_99 [1] : vector<8x8xf32> to vector<8xf32>
    %286 = vector.shape_cast %285 : vector<8xf32> to vector<8x1xf32>
    %287 = tpu.reciprocal %286 {approx = true} : vector<8x1xf32> -> vector<8x1xf32>
    %288 = vector.broadcast %287 : vector<8x1xf32> to vector<8x8xf32>
    %289 = arith.mulf %284, %288 : vector<8x8xf32>
    %290 = arith.truncf %289 : vector<8x8xf32> to vector<8x8xbf16>
    %291 = arith.truncf %273 : vector<8x8xf32> to vector<8x8xbf16>
    %cst_100 = arith.constant dense<0.000000e+00> : vector<8x8xf32>
    %292 = tpu.matmul %290, %291, %cst_100 {dimension_numbers = #tpu.dot_dimension_numbers<[1], [0], [0], [1], [0, 0, 1, 1], [], []>} : vector<8x8xbf16>, vector<8x8xbf16>, vector<8x8xf32> -> vector<8x8xf32>
    %293 = vector.extract_strided_slice %267 {offsets = [0, 8], sizes = [8, 8], strides = [1, 1]} : vector<8x32xf32> to vector<8x8xf32>
    %294 = vector.extract_strided_slice %268 {offsets = [0, 8], sizes = [8, 8], strides = [1, 1]} : vector<8x64xf32> to vector<8x8xf32>
    %295 = vector.extract_strided_slice %268 {offsets = [0, 40], sizes = [8, 8], strides = [1, 1]} : vector<8x64xf32> to vector<8x8xf32>
    %296 = arith.truncf %293 : vector<8x8xf32> to vector<8x8xbf16>
    %297 = arith.truncf %294 : vector<8x8xf32> to vector<8x8xbf16>
    %298 = tpu.transpose %297, [1, 0] : vector<8x8xbf16> -> vector<8x8xbf16>
    %cst_101 = arith.constant dense<0.000000e+00> : vector<8x8xf32>
    %299 = tpu.matmul %296, %298, %cst_101 {dimension_numbers = #tpu.dot_dimension_numbers<[1], [0], [0], [1], [0, 0, 1, 1], [], []>} : vector<8x8xbf16>, vector<8x8xbf16>, vector<8x8xf32> -> vector<8x8xf32>
    %300 = vector.broadcast %270 : vector<1x8xf32> to vector<8x8xf32>
    %301 = arith.addf %299, %300 : vector<8x8xf32>
    %cst_102 = arith.constant dense<0xFF800000> : vector<8xf32>
    %302 = vector.multi_reduction <maximumf>, %301, %cst_102 [1] : vector<8x8xf32> to vector<8xf32>
    %303 = vector.shape_cast %302 : vector<8xf32> to vector<8x1xf32>
    %304 = vector.broadcast %303 : vector<8x1xf32> to vector<8x8xf32>
    %305 = arith.subf %301, %304 : vector<8x8xf32>
    %306 = math.exp %305 : vector<8x8xf32>
    %cst_103 = arith.constant dense<0.000000e+00> : vector<8xf32>
    %307 = vector.multi_reduction <add>, %306, %cst_103 [1] : vector<8x8xf32> to vector<8xf32>
    %308 = vector.shape_cast %307 : vector<8xf32> to vector<8x1xf32>
    %309 = tpu.reciprocal %308 {approx = true} : vector<8x1xf32> -> vector<8x1xf32>
    %310 = vector.broadcast %309 : vector<8x1xf32> to vector<8x8xf32>
    %311 = arith.mulf %306, %310 : vector<8x8xf32>
    %312 = arith.truncf %311 : vector<8x8xf32> to vector<8x8xbf16>
    %313 = arith.truncf %295 : vector<8x8xf32> to vector<8x8xbf16>
    %cst_104 = arith.constant dense<0.000000e+00> : vector<8x8xf32>
    %314 = tpu.matmul %312, %313, %cst_104 {dimension_numbers = #tpu.dot_dimension_numbers<[1], [0], [0], [1], [0, 0, 1, 1], [], []>} : vector<8x8xbf16>, vector<8x8xbf16>, vector<8x8xf32> -> vector<8x8xf32>
    %315 = vector.extract_strided_slice %267 {offsets = [0, 16], sizes = [8, 8], strides = [1, 1]} : vector<8x32xf32> to vector<8x8xf32>
    %316 = vector.extract_strided_slice %268 {offsets = [0, 16], sizes = [8, 8], strides = [1, 1]} : vector<8x64xf32> to vector<8x8xf32>
    %317 = vector.extract_strided_slice %268 {offsets = [0, 48], sizes = [8, 8], strides = [1, 1]} : vector<8x64xf32> to vector<8x8xf32>
    %318 = arith.truncf %315 : vector<8x8xf32> to vector<8x8xbf16>
    %319 = arith.truncf %316 : vector<8x8xf32> to vector<8x8xbf16>
    %320 = tpu.transpose %319, [1, 0] : vector<8x8xbf16> -> vector<8x8xbf16>
    %cst_105 = arith.constant dense<0.000000e+00> : vector<8x8xf32>
    %321 = tpu.matmul %318, %320, %cst_105 {dimension_numbers = #tpu.dot_dimension_numbers<[1], [0], [0], [1], [0, 0, 1, 1], [], []>} : vector<8x8xbf16>, vector<8x8xbf16>, vector<8x8xf32> -> vector<8x8xf32>
    %322 = vector.broadcast %270 : vector<1x8xf32> to vector<8x8xf32>
    %323 = arith.addf %321, %322 : vector<8x8xf32>
    %cst_106 = arith.constant dense<0xFF800000> : vector<8xf32>
    %324 = vector.multi_reduction <maximumf>, %323, %cst_106 [1] : vector<8x8xf32> to vector<8xf32>
    %325 = vector.shape_cast %324 : vector<8xf32> to vector<8x1xf32>
    %326 = vector.broadcast %325 : vector<8x1xf32> to vector<8x8xf32>
    %327 = arith.subf %323, %326 : vector<8x8xf32>
    %328 = math.exp %327 : vector<8x8xf32>
    %cst_107 = arith.constant dense<0.000000e+00> : vector<8xf32>
    %329 = vector.multi_reduction <add>, %328, %cst_107 [1] : vector<8x8xf32> to vector<8xf32>
    %330 = vector.shape_cast %329 : vector<8xf32> to vector<8x1xf32>
    %331 = tpu.reciprocal %330 {approx = true} : vector<8x1xf32> -> vector<8x1xf32>
    %332 = vector.broadcast %331 : vector<8x1xf32> to vector<8x8xf32>
    %333 = arith.mulf %328, %332 : vector<8x8xf32>
    %334 = arith.truncf %333 : vector<8x8xf32> to vector<8x8xbf16>
    %335 = arith.truncf %317 : vector<8x8xf32> to vector<8x8xbf16>
    %cst_108 = arith.constant dense<0.000000e+00> : vector<8x8xf32>
    %336 = tpu.matmul %334, %335, %cst_108 {dimension_numbers = #tpu.dot_dimension_numbers<[1], [0], [0], [1], [0, 0, 1, 1], [], []>} : vector<8x8xbf16>, vector<8x8xbf16>, vector<8x8xf32> -> vector<8x8xf32>
    %337 = vector.extract_strided_slice %267 {offsets = [0, 24], sizes = [8, 8], strides = [1, 1]} : vector<8x32xf32> to vector<8x8xf32>
    %338 = vector.extract_strided_slice %268 {offsets = [0, 24], sizes = [8, 8], strides = [1, 1]} : vector<8x64xf32> to vector<8x8xf32>
    %339 = vector.extract_strided_slice %268 {offsets = [0, 56], sizes = [8, 8], strides = [1, 1]} : vector<8x64xf32> to vector<8x8xf32>
    %340 = arith.truncf %337 : vector<8x8xf32> to vector<8x8xbf16>
    %341 = arith.truncf %338 : vector<8x8xf32> to vector<8x8xbf16>
    %342 = tpu.transpose %341, [1, 0] : vector<8x8xbf16> -> vector<8x8xbf16>
    %cst_109 = arith.constant dense<0.000000e+00> : vector<8x8xf32>
    %343 = tpu.matmul %340, %342, %cst_109 {dimension_numbers = #tpu.dot_dimension_numbers<[1], [0], [0], [1], [0, 0, 1, 1], [], []>} : vector<8x8xbf16>, vector<8x8xbf16>, vector<8x8xf32> -> vector<8x8xf32>
    %344 = vector.broadcast %270 : vector<1x8xf32> to vector<8x8xf32>
    %345 = arith.addf %343, %344 : vector<8x8xf32>
    %cst_110 = arith.constant dense<0xFF800000> : vector<8xf32>
    %346 = vector.multi_reduction <maximumf>, %345, %cst_110 [1] : vector<8x8xf32> to vector<8xf32>
    %347 = vector.shape_cast %346 : vector<8xf32> to vector<8x1xf32>
    %348 = vector.broadcast %347 : vector<8x1xf32> to vector<8x8xf32>
    %349 = arith.subf %345, %348 : vector<8x8xf32>
    %350 = math.exp %349 : vector<8x8xf32>
    %cst_111 = arith.constant dense<0.000000e+00> : vector<8xf32>
    %351 = vector.multi_reduction <add>, %350, %cst_111 [1] : vector<8x8xf32> to vector<8xf32>
    %352 = vector.shape_cast %351 : vector<8xf32> to vector<8x1xf32>
    %353 = tpu.reciprocal %352 {approx = true} : vector<8x1xf32> -> vector<8x1xf32>
    %354 = vector.broadcast %353 : vector<8x1xf32> to vector<8x8xf32>
    %355 = arith.mulf %350, %354 : vector<8x8xf32>
    %356 = arith.truncf %355 : vector<8x8xf32> to vector<8x8xbf16>
    %357 = arith.truncf %339 : vector<8x8xf32> to vector<8x8xbf16>
    %cst_112 = arith.constant dense<0.000000e+00> : vector<8x8xf32>
    %358 = tpu.matmul %356, %357, %cst_112 {dimension_numbers = #tpu.dot_dimension_numbers<[1], [0], [0], [1], [0, 0, 1, 1], [], []>} : vector<8x8xbf16>, vector<8x8xbf16>, vector<8x8xf32> -> vector<8x8xf32>
    %359 = tpu.concatenate %292, %314, %336, %358 in 1 : vector<8x8xf32>, vector<8x8xf32>, vector<8x8xf32>, vector<8x8xf32> -> vector<8x32xf32>
    %360 = vector.extract_strided_slice %255 {offsets = [8, 0], sizes = [8, 32], strides = [1, 1]} : vector<16x32xf32> to vector<8x32xf32>
    %361 = vector.extract_strided_slice %264 {offsets = [8, 0], sizes = [8, 64], strides = [1, 1]} : vector<16x64xf32> to vector<8x64xf32>
    %c1_113 = arith.constant 1 : index
    %c0_114 = arith.constant 0 : index
    %c0_115 = arith.constant 0 : index
    %362 = vector.load %arg5[%c1_113, %c0_114, %c0_115] : memref<2x1x8xf32, #tpu.memory_space<vmem>>, vector<1x1x8xf32>
    %363 = vector.shape_cast %362 : vector<1x1x8xf32> to vector<1x8xf32>
    %364 = vector.extract_strided_slice %360 {offsets = [0, 0], sizes = [8, 8], strides = [1, 1]} : vector<8x32xf32> to vector<8x8xf32>
    %365 = vector.extract_strided_slice %361 {offsets = [0, 0], sizes = [8, 8], strides = [1, 1]} : vector<8x64xf32> to vector<8x8xf32>
    %366 = vector.extract_strided_slice %361 {offsets = [0, 32], sizes = [8, 8], strides = [1, 1]} : vector<8x64xf32> to vector<8x8xf32>
    %367 = arith.truncf %364 : vector<8x8xf32> to vector<8x8xbf16>
    %368 = arith.truncf %365 : vector<8x8xf32> to vector<8x8xbf16>
    %369 = tpu.transpose %368, [1, 0] : vector<8x8xbf16> -> vector<8x8xbf16>
    %cst_116 = arith.constant dense<0.000000e+00> : vector<8x8xf32>
    %370 = tpu.matmul %367, %369, %cst_116 {dimension_numbers = #tpu.dot_dimension_numbers<[1], [0], [0], [1], [0, 0, 1, 1], [], []>} : vector<8x8xbf16>, vector<8x8xbf16>, vector<8x8xf32> -> vector<8x8xf32>
    %371 = vector.broadcast %363 : vector<1x8xf32> to vector<8x8xf32>
    %372 = arith.addf %370, %371 : vector<8x8xf32>
    %cst_117 = arith.constant dense<0xFF800000> : vector<8xf32>
    %373 = vector.multi_reduction <maximumf>, %372, %cst_117 [1] : vector<8x8xf32> to vector<8xf32>
    %374 = vector.shape_cast %373 : vector<8xf32> to vector<8x1xf32>
    %375 = vector.broadcast %374 : vector<8x1xf32> to vector<8x8xf32>
    %376 = arith.subf %372, %375 : vector<8x8xf32>
    %377 = math.exp %376 : vector<8x8xf32>
    %cst_118 = arith.constant dense<0.000000e+00> : vector<8xf32>
    %378 = vector.multi_reduction <add>, %377, %cst_118 [1] : vector<8x8xf32> to vector<8xf32>
    %379 = vector.shape_cast %378 : vector<8xf32> to vector<8x1xf32>
    %380 = tpu.reciprocal %379 {approx = true} : vector<8x1xf32> -> vector<8x1xf32>
    %381 = vector.broadcast %380 : vector<8x1xf32> to vector<8x8xf32>
    %382 = arith.mulf %377, %381 : vector<8x8xf32>
    %383 = arith.truncf %382 : vector<8x8xf32> to vector<8x8xbf16>
    %384 = arith.truncf %366 : vector<8x8xf32> to vector<8x8xbf16>
    %cst_119 = arith.constant dense<0.000000e+00> : vector<8x8xf32>
    %385 = tpu.matmul %383, %384, %cst_119 {dimension_numbers = #tpu.dot_dimension_numbers<[1], [0], [0], [1], [0, 0, 1, 1], [], []>} : vector<8x8xbf16>, vector<8x8xbf16>, vector<8x8xf32> -> vector<8x8xf32>
    %386 = vector.extract_strided_slice %360 {offsets = [0, 8], sizes = [8, 8], strides = [1, 1]} : vector<8x32xf32> to vector<8x8xf32>
    %387 = vector.extract_strided_slice %361 {offsets = [0, 8], sizes = [8, 8], strides = [1, 1]} : vector<8x64xf32> to vector<8x8xf32>
    %388 = vector.extract_strided_slice %361 {offsets = [0, 40], sizes = [8, 8], strides = [1, 1]} : vector<8x64xf32> to vector<8x8xf32>
    %389 = arith.truncf %386 : vector<8x8xf32> to vector<8x8xbf16>
    %390 = arith.truncf %387 : vector<8x8xf32> to vector<8x8xbf16>
    %391 = tpu.transpose %390, [1, 0] : vector<8x8xbf16> -> vector<8x8xbf16>
    %cst_120 = arith.constant dense<0.000000e+00> : vector<8x8xf32>
    %392 = tpu.matmul %389, %391, %cst_120 {dimension_numbers = #tpu.dot_dimension_numbers<[1], [0], [0], [1], [0, 0, 1, 1], [], []>} : vector<8x8xbf16>, vector<8x8xbf16>, vector<8x8xf32> -> vector<8x8xf32>
    %393 = vector.broadcast %363 : vector<1x8xf32> to vector<8x8xf32>
    %394 = arith.addf %392, %393 : vector<8x8xf32>
    %cst_121 = arith.constant dense<0xFF800000> : vector<8xf32>
    %395 = vector.multi_reduction <maximumf>, %394, %cst_121 [1] : vector<8x8xf32> to vector<8xf32>
    %396 = vector.shape_cast %395 : vector<8xf32> to vector<8x1xf32>
    %397 = vector.broadcast %396 : vector<8x1xf32> to vector<8x8xf32>
    %398 = arith.subf %394, %397 : vector<8x8xf32>
    %399 = math.exp %398 : vector<8x8xf32>
    %cst_122 = arith.constant dense<0.000000e+00> : vector<8xf32>
    %400 = vector.multi_reduction <add>, %399, %cst_122 [1] : vector<8x8xf32> to vector<8xf32>
    %401 = vector.shape_cast %400 : vector<8xf32> to vector<8x1xf32>
    %402 = tpu.reciprocal %401 {approx = true} : vector<8x1xf32> -> vector<8x1xf32>
    %403 = vector.broadcast %402 : vector<8x1xf32> to vector<8x8xf32>
    %404 = arith.mulf %399, %403 : vector<8x8xf32>
    %405 = arith.truncf %404 : vector<8x8xf32> to vector<8x8xbf16>
    %406 = arith.truncf %388 : vector<8x8xf32> to vector<8x8xbf16>
    %cst_123 = arith.constant dense<0.000000e+00> : vector<8x8xf32>
    %407 = tpu.matmul %405, %406, %cst_123 {dimension_numbers = #tpu.dot_dimension_numbers<[1], [0], [0], [1], [0, 0, 1, 1], [], []>} : vector<8x8xbf16>, vector<8x8xbf16>, vector<8x8xf32> -> vector<8x8xf32>
    %408 = vector.extract_strided_slice %360 {offsets = [0, 16], sizes = [8, 8], strides = [1, 1]} : vector<8x32xf32> to vector<8x8xf32>
    %409 = vector.extract_strided_slice %361 {offsets = [0, 16], sizes = [8, 8], strides = [1, 1]} : vector<8x64xf32> to vector<8x8xf32>
    %410 = vector.extract_strided_slice %361 {offsets = [0, 48], sizes = [8, 8], strides = [1, 1]} : vector<8x64xf32> to vector<8x8xf32>
    %411 = arith.truncf %408 : vector<8x8xf32> to vector<8x8xbf16>
    %412 = arith.truncf %409 : vector<8x8xf32> to vector<8x8xbf16>
    %413 = tpu.transpose %412, [1, 0] : vector<8x8xbf16> -> vector<8x8xbf16>
    %cst_124 = arith.constant dense<0.000000e+00> : vector<8x8xf32>
    %414 = tpu.matmul %411, %413, %cst_124 {dimension_numbers = #tpu.dot_dimension_numbers<[1], [0], [0], [1], [0, 0, 1, 1], [], []>} : vector<8x8xbf16>, vector<8x8xbf16>, vector<8x8xf32> -> vector<8x8xf32>
    %415 = vector.broadcast %363 : vector<1x8xf32> to vector<8x8xf32>
    %416 = arith.addf %414, %415 : vector<8x8xf32>
    %cst_125 = arith.constant dense<0xFF800000> : vector<8xf32>
    %417 = vector.multi_reduction <maximumf>, %416, %cst_125 [1] : vector<8x8xf32> to vector<8xf32>
    %418 = vector.shape_cast %417 : vector<8xf32> to vector<8x1xf32>
    %419 = vector.broadcast %418 : vector<8x1xf32> to vector<8x8xf32>
    %420 = arith.subf %416, %419 : vector<8x8xf32>
    %421 = math.exp %420 : vector<8x8xf32>
    %cst_126 = arith.constant dense<0.000000e+00> : vector<8xf32>
    %422 = vector.multi_reduction <add>, %421, %cst_126 [1] : vector<8x8xf32> to vector<8xf32>
    %423 = vector.shape_cast %422 : vector<8xf32> to vector<8x1xf32>
    %424 = tpu.reciprocal %423 {approx = true} : vector<8x1xf32> -> vector<8x1xf32>
    %425 = vector.broadcast %424 : vector<8x1xf32> to vector<8x8xf32>
    %426 = arith.mulf %421, %425 : vector<8x8xf32>
    %427 = arith.truncf %426 : vector<8x8xf32> to vector<8x8xbf16>
    %428 = arith.truncf %410 : vector<8x8xf32> to vector<8x8xbf16>
    %cst_127 = arith.constant dense<0.000000e+00> : vector<8x8xf32>
    %429 = tpu.matmul %427, %428, %cst_127 {dimension_numbers = #tpu.dot_dimension_numbers<[1], [0], [0], [1], [0, 0, 1, 1], [], []>} : vector<8x8xbf16>, vector<8x8xbf16>, vector<8x8xf32> -> vector<8x8xf32>
    %430 = vector.extract_strided_slice %360 {offsets = [0, 24], sizes = [8, 8], strides = [1, 1]} : vector<8x32xf32> to vector<8x8xf32>
    %431 = vector.extract_strided_slice %361 {offsets = [0, 24], sizes = [8, 8], strides = [1, 1]} : vector<8x64xf32> to vector<8x8xf32>
    %432 = vector.extract_strided_slice %361 {offsets = [0, 56], sizes = [8, 8], strides = [1, 1]} : vector<8x64xf32> to vector<8x8xf32>
    %433 = arith.truncf %430 : vector<8x8xf32> to vector<8x8xbf16>
    %434 = arith.truncf %431 : vector<8x8xf32> to vector<8x8xbf16>
    %435 = tpu.transpose %434, [1, 0] : vector<8x8xbf16> -> vector<8x8xbf16>
    %cst_128 = arith.constant dense<0.000000e+00> : vector<8x8xf32>
    %436 = tpu.matmul %433, %435, %cst_128 {dimension_numbers = #tpu.dot_dimension_numbers<[1], [0], [0], [1], [0, 0, 1, 1], [], []>} : vector<8x8xbf16>, vector<8x8xbf16>, vector<8x8xf32> -> vector<8x8xf32>
    %437 = vector.broadcast %363 : vector<1x8xf32> to vector<8x8xf32>
    %438 = arith.addf %436, %437 : vector<8x8xf32>
    %cst_129 = arith.constant dense<0xFF800000> : vector<8xf32>
    %439 = vector.multi_reduction <maximumf>, %438, %cst_129 [1] : vector<8x8xf32> to vector<8xf32>
    %440 = vector.shape_cast %439 : vector<8xf32> to vector<8x1xf32>
    %441 = vector.broadcast %440 : vector<8x1xf32> to vector<8x8xf32>
    %442 = arith.subf %438, %441 : vector<8x8xf32>
    %443 = math.exp %442 : vector<8x8xf32>
    %cst_130 = arith.constant dense<0.000000e+00> : vector<8xf32>
    %444 = vector.multi_reduction <add>, %443, %cst_130 [1] : vector<8x8xf32> to vector<8xf32>
    %445 = vector.shape_cast %444 : vector<8xf32> to vector<8x1xf32>
    %446 = tpu.reciprocal %445 {approx = true} : vector<8x1xf32> -> vector<8x1xf32>
    %447 = vector.broadcast %446 : vector<8x1xf32> to vector<8x8xf32>
    %448 = arith.mulf %443, %447 : vector<8x8xf32>
    %449 = arith.truncf %448 : vector<8x8xf32> to vector<8x8xbf16>
    %450 = arith.truncf %432 : vector<8x8xf32> to vector<8x8xbf16>
    %cst_131 = arith.constant dense<0.000000e+00> : vector<8x8xf32>
    %451 = tpu.matmul %449, %450, %cst_131 {dimension_numbers = #tpu.dot_dimension_numbers<[1], [0], [0], [1], [0, 0, 1, 1], [], []>} : vector<8x8xbf16>, vector<8x8xbf16>, vector<8x8xf32> -> vector<8x8xf32>
    %452 = tpu.concatenate %385, %407, %429, %451 in 1 : vector<8x8xf32>, vector<8x8xf32>, vector<8x8xf32>, vector<8x8xf32> -> vector<8x32xf32>
    %453 = tpu.concatenate %359, %452 in 0 : vector<8x32xf32>, vector<8x32xf32> -> vector<16x32xf32>
    %454 = arith.truncf %453 : vector<16x32xf32> to vector<16x32xbf16>
    %c0_132 = arith.constant 0 : index
    %c0_133 = arith.constant 0 : index
    %c0_134 = arith.constant 0 : index
    %455 = vector.load %arg17[%c0_132, %c0_133, %c0_134] : memref<1x32x32xbf16, #tpu.memory_space<vmem>>, vector<1x32x32xbf16>
    %456 = vector.shape_cast %455 : vector<1x32x32xbf16> to vector<32x32xbf16>
    %cst_135 = arith.constant dense<0.000000e+00> : vector<16x32xf32>
    %457 = tpu.matmul %454, %456, %cst_135 {dimension_numbers = #tpu.dot_dimension_numbers<[1], [0], [0], [1], [0, 0, 1, 1], [], []>} : vector<16x32xbf16>, vector<32x32xbf16>, vector<16x32xf32> -> vector<16x32xf32>
    %458 = vector.broadcast %266 : vector<1x32xf32> to vector<16x32xf32>
    %459 = arith.addf %457, %458 : vector<16x32xf32>
    %460 = arith.addf %223, %459 : vector<16x32xf32>
    %c0_136 = arith.constant 0 : index
    %c2 = arith.constant 2 : index
    %c0_137 = arith.constant 0 : index
    %461 = vector.load %arg7[%c0_136, %c2, %c0_137] : memref<1x3x32xf32, #tpu.memory_space<vmem>>, vector<1x1x32xf32>
    %462 = vector.shape_cast %461 : vector<1x1x32xf32> to vector<1x32xf32>
    %c0_138 = arith.constant 0 : index
    %c2_139 = arith.constant 2 : index
    %c0_140 = arith.constant 0 : index
    %463 = vector.load %arg8[%c0_138, %c2_139, %c0_140] : memref<1x3x32xf32, #tpu.memory_space<vmem>>, vector<1x1x32xf32>
    %464 = vector.shape_cast %463 : vector<1x1x32xf32> to vector<1x32xf32>
    %cst_141 = arith.constant dense<0.000000e+00> : vector<16xf32>
    %465 = vector.multi_reduction <add>, %460, %cst_141 [1] : vector<16x32xf32> to vector<16xf32>
    %466 = vector.shape_cast %465 : vector<16xf32> to vector<16x1xf32>
    %cst_142 = arith.constant 3.200000e+01 : f32
    %467 = vector.broadcast %cst_142 : f32 to vector<16x1xf32>
    %468 = arith.divf %466, %467 : vector<16x1xf32>
    %469 = vector.broadcast %468 : vector<16x1xf32> to vector<16x32xf32>
    %470 = arith.subf %460, %469 : vector<16x32xf32>
    %471 = arith.mulf %470, %470 : vector<16x32xf32>
    %cst_143 = arith.constant dense<0.000000e+00> : vector<16xf32>
    %472 = vector.multi_reduction <add>, %471, %cst_143 [1] : vector<16x32xf32> to vector<16xf32>
    %473 = vector.shape_cast %472 : vector<16xf32> to vector<16x1xf32>
    %cst_144 = arith.constant 0.0322580636 : f32
    %474 = vector.broadcast %cst_144 : f32 to vector<16x1xf32>
    %475 = arith.mulf %473, %474 : vector<16x1xf32>
    %476 = math.sqrt %475 : vector<16x1xf32>
    %cst_145 = arith.constant 9.99999997E-7 : f32
    %477 = vector.broadcast %cst_145 : f32 to vector<16x1xf32>
    %478 = arith.addf %476, %477 : vector<16x1xf32>
    %479 = vector.broadcast %478 : vector<16x1xf32> to vector<16x32xf32>
    %480 = arith.divf %470, %479 : vector<16x32xf32>
    %481 = vector.broadcast %462 : vector<1x32xf32> to vector<16x32xf32>
    %482 = arith.mulf %481, %480 : vector<16x32xf32>
    %483 = vector.broadcast %464 : vector<1x32xf32> to vector<16x32xf32>
    %484 = arith.addf %482, %483 : vector<16x32xf32>
    %485 = arith.truncf %484 : vector<16x32xf32> to vector<16x32xbf16>
    %c0_146 = arith.constant 0 : index
    %c0_147 = arith.constant 0 : index
    %c0_148 = arith.constant 0 : index
    %486 = vector.load %arg19[%c0_146, %c0_147, %c0_148] : memref<1x32x64xbf16, #tpu.memory_space<vmem>>, vector<1x32x64xbf16>
    %487 = vector.shape_cast %486 : vector<1x32x64xbf16> to vector<32x64xbf16>
    %cst_149 = arith.constant dense<0.000000e+00> : vector<16x64xf32>
    %488 = tpu.matmul %485, %487, %cst_149 {dimension_numbers = #tpu.dot_dimension_numbers<[1], [0], [0], [1], [0, 0, 1, 1], [], []>} : vector<16x32xbf16>, vector<32x64xbf16>, vector<16x64xf32> -> vector<16x64xf32>
    %c0_150 = arith.constant 0 : index
    %c0_151 = arith.constant 0 : index
    %c0_152 = arith.constant 0 : index
    %489 = vector.load %arg20[%c0_150, %c0_151, %c0_152] : memref<1x1x64xf32, #tpu.memory_space<vmem>>, vector<1x1x64xf32>
    %490 = vector.shape_cast %489 : vector<1x1x64xf32> to vector<1x64xf32>
    %491 = vector.broadcast %490 : vector<1x64xf32> to vector<16x64xf32>
    %492 = arith.addf %488, %491 : vector<16x64xf32>
    %cst_153 = arith.constant 0.000000e+00 : f32
    %493 = vector.broadcast %cst_153 : f32 to vector<16x64xf32>
    %494 = arith.maximumf %492, %493 : vector<16x64xf32>
    %495 = arith.truncf %494 : vector<16x64xf32> to vector<16x64xbf16>
    %c0_154 = arith.constant 0 : index
    %c0_155 = arith.constant 0 : index
    %c0_156 = arith.constant 0 : index
    %496 = vector.load %arg21[%c0_154, %c0_155, %c0_156] : memref<1x64x32xbf16, #tpu.memory_space<vmem>>, vector<1x64x32xbf16>
    %497 = vector.shape_cast %496 : vector<1x64x32xbf16> to vector<64x32xbf16>
    %cst_157 = arith.constant dense<0.000000e+00> : vector<16x32xf32>
    %498 = tpu.matmul %495, %497, %cst_157 {dimension_numbers = #tpu.dot_dimension_numbers<[1], [0], [0], [1], [0, 0, 1, 1], [], []>} : vector<16x64xbf16>, vector<64x32xbf16>, vector<16x32xf32> -> vector<16x32xf32>
    %c0_158 = arith.constant 0 : index
    %c0_159 = arith.constant 0 : index
    %c0_160 = arith.constant 0 : index
    %499 = vector.load %arg22[%c0_158, %c0_159, %c0_160] : memref<1x1x32xf32, #tpu.memory_space<vmem>>, vector<1x1x32xf32>
    %500 = vector.shape_cast %499 : vector<1x1x32xf32> to vector<1x32xf32>
    %501 = vector.broadcast %500 : vector<1x32xf32> to vector<16x32xf32>
    %502 = arith.addf %498, %501 : vector<16x32xf32>
    %503 = arith.addf %460, %502 : vector<16x32xf32>
    %c0_161 = arith.constant 0 : index
    %c0_162 = arith.constant 0 : index
    %504 = vector.load %arg26[%c0_161, %c0_162] : memref<16x32xf32, #tpu.memory_space<vmem>>, vector<16x32xf32>
    tpu.vector_store %arg26[%c0_161, %c0_162], %503 {strides = array<i32>} : memref<16x32xf32, #tpu.memory_space<vmem>>, vector<16x32xf32>,
    %c1_i32 = arith.constant 1 : i32
    %505 = arith.cmpi eq, %arg1, %c1_i32 : i32
    %506 = arith.extui %505 : i1 to i32
    %c0_i32_163 = arith.constant 0 : i32
    %507 = arith.cmpi ne, %506, %c0_i32_163 : i32
    scf.if %507 {
      %c0_164 = arith.constant 0 : index
      %c0_165 = arith.constant 0 : index
      %508 = vector.load %arg23[%c0_164, %c0_165] : memref<1x32xf32, #tpu.memory_space<vmem>>, vector<1x32xf32>
      %c0_166 = arith.constant 0 : index
      %c0_167 = arith.constant 0 : index
      %509 = vector.load %arg24[%c0_166, %c0_167] : memref<1x32xf32, #tpu.memory_space<vmem>>, vector<1x32xf32>
      %cst_168 = arith.constant dense<0.000000e+00> : vector<16xf32>
      %510 = vector.multi_reduction <add>, %503, %cst_168 [1] : vector<16x32xf32> to vector<16xf32>
      %511 = vector.shape_cast %510 : vector<16xf32> to vector<16x1xf32>
      %cst_169 = arith.constant 3.200000e+01 : f32
      %512 = vector.broadcast %cst_169 : f32 to vector<16x1xf32>
      %513 = arith.divf %511, %512 : vector<16x1xf32>
      %514 = vector.broadcast %513 : vector<16x1xf32> to vector<16x32xf32>
      %515 = arith.subf %503, %514 : vector<16x32xf32>
      %516 = arith.mulf %515, %515 : vector<16x32xf32>
      %cst_170 = arith.constant dense<0.000000e+00> : vector<16xf32>
      %517 = vector.multi_reduction <add>, %516, %cst_170 [1] : vector<16x32xf32> to vector<16xf32>
      %518 = vector.shape_cast %517 : vector<16xf32> to vector<16x1xf32>
      %cst_171 = arith.constant 0.0322580636 : f32
      %519 = vector.broadcast %cst_171 : f32 to vector<16x1xf32>
      %520 = arith.mulf %518, %519 : vector<16x1xf32>
      %521 = math.sqrt %520 : vector<16x1xf32>
      %cst_172 = arith.constant 9.99999997E-7 : f32
      %522 = vector.broadcast %cst_172 : f32 to vector<16x1xf32>
      %523 = arith.addf %521, %522 : vector<16x1xf32>
      %524 = vector.broadcast %523 : vector<16x1xf32> to vector<16x32xf32>
      %525 = arith.divf %515, %524 : vector<16x32xf32>
      %526 = vector.broadcast %508 : vector<1x32xf32> to vector<16x32xf32>
      %527 = arith.mulf %526, %525 : vector<16x32xf32>
      %528 = vector.broadcast %509 : vector<1x32xf32> to vector<16x32xf32>
      %529 = arith.addf %527, %528 : vector<16x32xf32>
      %530 = vector.shape_cast %529 : vector<16x32xf32> to vector<2x8x32xf32>
      %c0_173 = arith.constant 0 : index
      %c0_174 = arith.constant 0 : index
      %c0_175 = arith.constant 0 : index
      %531 = vector.load %arg25[%c0_173, %c0_174, %c0_175] : memref<2x8x32xf32, #tpu.memory_space<vmem>>, vector<2x8x32xf32>
      tpu.vector_store %arg25[%c0_173, %c0_174, %c0_175], %530 {strides = array<i32>} : memref<2x8x32xf32, #tpu.memory_space<vmem>>, vector<2x8x32xf32>,
    } else {
    }
    return
  }
  func.func @transform_0(%arg0: i32, %arg1: i32) -> (i32, i32, i32) {
    %c0_i32 = arith.constant 0 : i32
    %c0_i32_0 = arith.constant 0 : i32
    %c0_i32_1 = arith.constant 0 : i32
    return %arg0, %c0_i32, %c0_i32_0 : i32, i32, i32
  }
  func.func @transform_1(%arg0: i32, %arg1: i32) -> (i32, i32) {
    %c0_i32 = arith.constant 0 : i32
    %c0_i32_0 = arith.constant 0 : i32
    %c0_i32_1 = arith.constant 0 : i32
    return %c0_i32, %c0_i32_0 : i32, i32
  }
  func.func @transform_2(%arg0: i32, %arg1: i32) -> (i32, i32, i32) {
    %c0_i32 = arith.constant 0 : i32
    %c0_i32_0 = arith.constant 0 : i32
    %c0_i32_1 = arith.constant 0 : i32
    return %arg0, %c0_i32, %c0_i32_0 : i32, i32, i32
  }
  func.func @transform_3(%arg0: i32, %arg1: i32) -> (i32, i32, i32) {
    %c0_i32 = arith.constant 0 : i32
    %c0_i32_0 = arith.constant 0 : i32
    %c0_i32_1 = arith.constant 0 : i32
    return %arg0, %c0_i32, %c0_i32_0 : i32, i32, i32
  }
  func.func @transform_4(%arg0: i32, %arg1: i32) -> (i32, i32, i32) {
    %c0_i32 = arith.constant 0 : i32
    %c0_i32_0 = arith.constant 0 : i32
    %c0_i32_1 = arith.constant 0 : i32
    return %arg0, %c0_i32, %c0_i32_0 : i32, i32, i32
  }
  func.func @transform_5(%arg0: i32, %arg1: i32) -> (i32, i32, i32) {
    %c0_i32 = arith.constant 0 : i32
    %c0_i32_0 = arith.constant 0 : i32
    %c0_i32_1 = arith.constant 0 : i32
    return %arg1, %c0_i32, %c0_i32_0 : i32, i32, i32
  }
  func.func @transform_6(%arg0: i32, %arg1: i32) -> (i32, i32, i32) {
    %c0_i32 = arith.constant 0 : i32
    %c0_i32_0 = arith.constant 0 : i32
    %c0_i32_1 = arith.constant 0 : i32
    return %arg1, %c0_i32, %c0_i32_0 : i32, i32, i32
  }
  func.func @transform_7(%arg0: i32, %arg1: i32) -> (i32, i32, i32) {
    %c0_i32 = arith.constant 0 : i32
    %c0_i32_0 = arith.constant 0 : i32
    %c0_i32_1 = arith.constant 0 : i32
    return %arg1, %c0_i32, %c0_i32_0 : i32, i32, i32
  }
  func.func @transform_8(%arg0: i32, %arg1: i32) -> (i32, i32, i32) {
    %c0_i32 = arith.constant 0 : i32
    %c0_i32_0 = arith.constant 0 : i32
    %c0_i32_1 = arith.constant 0 : i32
    return %arg1, %c0_i32, %c0_i32_0 : i32, i32, i32
  }
  func.func @transform_9(%arg0: i32, %arg1: i32) -> (i32, i32, i32) {
    %c0_i32 = arith.constant 0 : i32
    %c0_i32_0 = arith.constant 0 : i32
    %c0_i32_1 = arith.constant 0 : i32
    return %arg1, %c0_i32, %c0_i32_0 : i32, i32, i32
  }
  func.func @transform_10(%arg0: i32, %arg1: i32) -> (i32, i32, i32) {
    %c0_i32 = arith.constant 0 : i32
    %c0_i32_0 = arith.constant 0 : i32
    %c0_i32_1 = arith.constant 0 : i32
    return %arg1, %c0_i32, %c0_i32_0 : i32, i32, i32
  }
  func.func @transform_11(%arg0: i32, %arg1: i32) -> (i32, i32, i32) {
    %c0_i32 = arith.constant 0 : i32
    %c0_i32_0 = arith.constant 0 : i32
    %c0_i32_1 = arith.constant 0 : i32
    return %arg1, %c0_i32, %c0_i32_0 : i32, i32, i32
  }
  func.func @transform_12(%arg0: i32, %arg1: i32) -> (i32, i32, i32) {
    %c0_i32 = arith.constant 0 : i32
    %c0_i32_0 = arith.constant 0 : i32
    %c0_i32_1 = arith.constant 0 : i32
    return %arg1, %c0_i32, %c0_i32_0 : i32, i32, i32
  }
  func.func @transform_13(%arg0: i32, %arg1: i32) -> (i32, i32, i32) {
    %c0_i32 = arith.constant 0 : i32
    %c0_i32_0 = arith.constant 0 : i32
    %c0_i32_1 = arith.constant 0 : i32
    return %arg1, %c0_i32, %c0_i32_0 : i32, i32, i32
  }
  func.func @transform_14(%arg0: i32, %arg1: i32) -> (i32, i32, i32) {
    %c0_i32 = arith.constant 0 : i32
    %c0_i32_0 = arith.constant 0 : i32
    %c0_i32_1 = arith.constant 0 : i32
    return %arg1, %c0_i32, %c0_i32_0 : i32, i32, i32
  }
  func.func @transform_15(%arg0: i32, %arg1: i32) -> (i32, i32, i32) {
    %c0_i32 = arith.constant 0 : i32
    %c0_i32_0 = arith.constant 0 : i32
    %c0_i32_1 = arith.constant 0 : i32
    return %arg1, %c0_i32, %c0_i32_0 : i32, i32, i32
  }
  func.func @transform_16(%arg0: i32, %arg1: i32) -> (i32, i32, i32) {
    %c0_i32 = arith.constant 0 : i32
    %c0_i32_0 = arith.constant 0 : i32
    %c0_i32_1 = arith.constant 0 : i32
    return %arg1, %c0_i32, %c0_i32_0 : i32, i32, i32
  }
  func.func @transform_17(%arg0: i32, %arg1: i32) -> (i32, i32, i32) {
    %c0_i32 = arith.constant 0 : i32
    %c0_i32_0 = arith.constant 0 : i32
    %c0_i32_1 = arith.constant 0 : i32
    return %arg1, %c0_i32, %c0_i32_0 : i32, i32, i32
  }
  func.func @transform_18(%arg0: i32, %arg1: i32) -> (i32, i32, i32) {
    %c0_i32 = arith.constant 0 : i32
    %c0_i32_0 = arith.constant 0 : i32
    %c0_i32_1 = arith.constant 0 : i32
    return %arg1, %c0_i32, %c0_i32_0 : i32, i32, i32
  }
  func.func @transform_19(%arg0: i32, %arg1: i32) -> (i32, i32, i32) {
    %c0_i32 = arith.constant 0 : i32
    %c0_i32_0 = arith.constant 0 : i32
    %c0_i32_1 = arith.constant 0 : i32
    return %arg1, %c0_i32, %c0_i32_0 : i32, i32, i32
  }
  func.func @transform_20(%arg0: i32, %arg1: i32) -> (i32, i32, i32) {
    %c0_i32 = arith.constant 0 : i32
    %c0_i32_0 = arith.constant 0 : i32
    %c0_i32_1 = arith.constant 0 : i32
    return %arg1, %c0_i32, %c0_i32_0 : i32, i32, i32
  }
  func.func @transform_21(%arg0: i32, %arg1: i32) -> (i32, i32) {
    %c0_i32 = arith.constant 0 : i32
    %c0_i32_0 = arith.constant 0 : i32
    %c0_i32_1 = arith.constant 0 : i32
    return %c0_i32, %c0_i32_0 : i32, i32
  }
  func.func @transform_22(%arg0: i32, %arg1: i32) -> (i32, i32) {
    %c0_i32 = arith.constant 0 : i32
    %c0_i32_0 = arith.constant 0 : i32
    %c0_i32_1 = arith.constant 0 : i32
    return %c0_i32, %c0_i32_0 : i32, i32
  }
  func.func @transform_23(%arg0: i32, %arg1: i32) -> (i32, i32, i32) {
    %c0_i32 = arith.constant 0 : i32
    %c0_i32_0 = arith.constant 0 : i32
    %c0_i32_1 = arith.constant 0 : i32
    return %arg0, %c0_i32, %c0_i32_0 : i32, i32, i32
  }
}

</mosaic_0001>

<llo_original>
// kernel: decoder_forward.1
$region0: #{decoder_forward.1}
  #allocation0 [shape = 'u32[]', space=smem, size = 0x4, offset = 0x4, fixed_abs, tag = 'smem constant byte address 0x4 - core index']
  #allocation1 [shape = 'u32[72,128]{1,0:T(1,128)}', space=vmem, size = 0x9000, scoped, tag = 'internal scratch']
  #allocation2 [shape = 'f32[16,32]{1,0:T(8,128)}', space=vmem, size = 0x2000, scoped, tag = 'scratch operand']
  %s0 = inlined_call_operand.vmem [shape: f32[2,8,32], index: 0, kind: input, shape index: {}]
  %s1 = inlined_call_operand.vmem [shape: f32[8,32], index: 1, kind: input, shape index: {}]
  %s2 = inlined_call_operand.vmem [shape: bf16[2,8,32], index: 2, kind: input, shape index: {}]
  %s3 = inlined_call_operand.vmem [shape: f32[2,1,8], index: 3, kind: input, shape index: {}]
  %s4 = inlined_call_operand.vmem [shape: f32[2,8,8], index: 4, kind: input, shape index: {}]
  %s5 = inlined_call_operand.vmem [shape: f32[2,3,32], index: 5, kind: input, shape index: {}]
  %s6 = inlined_call_operand.vmem [shape: f32[2,3,32], index: 6, kind: input, shape index: {}]
  %s7 = inlined_call_operand.vmem [shape: bf16[2,32,96], index: 7, kind: input, shape index: {}]
  %s8 = inlined_call_operand.vmem [shape: f32[2,1,96], index: 8, kind: input, shape index: {}]
  %s9 = inlined_call_operand.vmem [shape: bf16[2,32,32], index: 9, kind: input, shape index: {}]
  %s10 = inlined_call_operand.vmem [shape: f32[2,1,32], index: 10, kind: input, shape index: {}]
  %s11 = inlined_call_operand.vmem [shape: bf16[2,32,32], index: 11, kind: input, shape index: {}]
  %s12 = inlined_call_operand.vmem [shape: f32[2,1,32], index: 12, kind: input, shape index: {}]
  %s13 = inlined_call_operand.vmem [shape: bf16[2,32,64], index: 13, kind: input, shape index: {}]
  %s14 = inlined_call_operand.vmem [shape: f32[2,1,64], index: 14, kind: input, shape index: {}]
  %s15 = inlined_call_operand.vmem [shape: bf16[2,32,32], index: 15, kind: input, shape index: {}]
  %s16 = inlined_call_operand.vmem [shape: f32[2,1,32], index: 16, kind: input, shape index: {}]
  %s17 = inlined_call_operand.vmem [shape: bf16[2,32,64], index: 17, kind: input, shape index: {}]
  %s18 = inlined_call_operand.vmem [shape: f32[2,1,64], index: 18, kind: input, shape index: {}]
  %s19 = inlined_call_operand.vmem [shape: bf16[2,64,32], index: 19, kind: input, shape index: {}]
  %s20 = inlined_call_operand.vmem [shape: f32[2,1,32], index: 20, kind: input, shape index: {}]
  %s21 = inlined_call_operand.vmem [shape: f32[1,32], index: 21, kind: input, shape index: {}]
  %s22 = inlined_call_operand.vmem [shape: f32[1,32], index: 22, kind: input, shape index: {}]
  %s23 = inlined_call_operand.hbm [shape: f32[2,8,32], index: 23, kind: output, shape index: {}]
  %s24 = sld [smem:[#allocation0]]
  $region133: #{decoder_forward.1} parent=0
    _
  %s26 = ssub.s32 1, %s24
  %s27 = scalar_select 0, %s26, %s24
  $region1: #{decoder_forward.1} parent=0
    #allocation3 [shape = 'u8[8192]{0}', space=vmem, size = 0x2000, scoped, tag = 'output window, operand 0, single buffered']
    #allocation4 [shape = 's32[2]{0}', space=sflag, size = 0x8, scoped, tag = 'scoped memory for decoder_forward.1']
    %28 = vsyncpa [#allocation4], 0
    loop: start=0, step=1, limit=4
    $region2: #{decoder_forward.1} parent=1 // loop_pre_header
      _
    $region3: #{decoder_forward.1} parent=1 // loop_header
      %s30 = sphi 0, %s34
      %p31 = scmp.ge.s32.totalorder %s30, 4
      %s37 = sphi 0, %s49
      %s38 = sphi 0, %s45
      %s39 = sphi 0, %s37
      %s40 = sphi 0, %s38
      %s41 = sphi 0, %s39
      %s42 = sphi 0, %s40
      %s52 = sphi 0, %s54
      %s55 = sphi 0, %s52
      %s56 = sphi 0, %s55
      %s72 = sphi 0, %s56
      %s76 = sphi 0, %s76
      %s78 = sphi 0, %s76
      %s79 = sphi 0, %s78
      %s93 = sphi 0, %s79
      %s99 = sphi 0, %s101
      %s102 = sphi 0, %s99
      %s103 = sphi 0, %s102
      %s119 = sphi 0, %s103
      %s125 = sphi 0, %s127
      %s128 = sphi 0, %s125
      %s129 = sphi 0, %s128
      %s145 = sphi 0, %s129
      %s151 = sphi 0, %s153
      %s154 = sphi 0, %s151
      %s155 = sphi 0, %s154
      %s171 = sphi 0, %s155
      %s177 = sphi 0, %s179
      %s180 = sphi 0, %s177
      %s181 = sphi 0, %s180
      %s197 = sphi 0, %s181
      %s203 = sphi 0, %s205
      %s206 = sphi 0, %s203
      %s207 = sphi 0, %s206
      %s223 = sphi 0, %s207
      %s229 = sphi 0, %s231
      %s232 = sphi 0, %s229
      %s233 = sphi 0, %s232
      %s249 = sphi 0, %s233
      %s255 = sphi 0, %s257
      %s258 = sphi 0, %s255
      %s259 = sphi 0, %s258
      %s275 = sphi 0, %s259
      %s281 = sphi 0, %s283
      %s284 = sphi 0, %s281
      %s285 = sphi 0, %s284
      %s301 = sphi 0, %s285
      %s307 = sphi 0, %s309
      %s310 = sphi 0, %s307
      %s311 = sphi 0, %s310
      %s327 = sphi 0, %s311
      %s333 = sphi 0, %s335
      %s336 = sphi 0, %s333
      %s337 = sphi 0, %s336
      %s353 = sphi 0, %s337
      %s359 = sphi 0, %s361
      %s362 = sphi 0, %s359
      %s363 = sphi 0, %s362
      %s379 = sphi 0, %s363
      %s385 = sphi 0, %s387
      %s388 = sphi 0, %s385
      %s389 = sphi 0, %s388
      %s405 = sphi 0, %s389
      %s411 = sphi 0, %s413
      %s414 = sphi 0, %s411
      %s415 = sphi 0, %s414
      %s431 = sphi 0, %s415
      %s437 = sphi 0, %s439
      %s440 = sphi 0, %s437
      %s441 = sphi 0, %s440
      %s457 = sphi 0, %s441
      %s463 = sphi 0, %s465
      %s466 = sphi 0, %s463
      %s467 = sphi 0, %s466
      %s483 = sphi 0, %s467
      %s489 = sphi 0, %s491
      %s492 = sphi 0, %s489
      %s493 = sphi 0, %s492
      %s509 = sphi 0, %s493
      %s515 = sphi 0, %s517
      %s518 = sphi 0, %s515
      %s519 = sphi 0, %s518
      %s535 = sphi 0, %s519
      %s541 = sphi 0, %s543
      %s544 = sphi 0, %s541
      %s545 = sphi 0, %s544
      %s561 = sphi 0, %s545
      %s567 = sphi 0, %s569
      %s570 = sphi 0, %s567
      %s571 = sphi 0, %s570
      %s587 = sphi 0, %s571
      %s591 = sphi 0, %s591
      %s593 = sphi 0, %s591
      %s594 = sphi 0, %s593
      %s608 = sphi 0, %s594
      %s612 = sphi 0, %s612
      %s614 = sphi 0, %s612
      %s615 = sphi 0, %s614
      %s629 = sphi 0, %s615
      %s635 = sphi 0, %s637
      %s638 = sphi 0, %s635
      %s639 = sphi 0, %s638
      %s655 = sphi 0, %s639
    $region4: #{decoder_forward.1} parent=1 // loop_header_branch
      %33 = sbr.rel (%p31) target = $region8
    $region5: #{decoder_forward.1} parent=1 // loop_body
      %s35 = ssub.s32 %s30, 1
      %s36 = ssub.s32 %s30, 2
      %s43 = sadd.s32 1, %s38
      %p44 = scmp.ge.s32.totalorder %s43, 2
      %s45 = scalar_select %p44, 0, %s43
      %s46 = sadd.s32 1, %s37
      %s47 = scalar_select %p44, %s46, %s37
      %p48 = scmp.ge.s32.totalorder %s47, 1
      %s49 = scalar_select %p48, 0, %s47
      %s50 = ssub.s32 %s37, %s49
      %p51 = scmp.eq.s32.totalorder %s50, 0
      %s53 = sadd.s32 %s52, 1
      %s54 = scalar_select %p51, %s52, %s53
      %p57 = pneg %p51
      %p58 = scmp.eq.s32.totalorder %s30, 1
      %p59 = por %p57, %p58
      %p60 = scmp.ne.s32.totalorder %s52, %s55
      %p61 = scmp.eq.s32.totalorder %s30, 0
      %p62 = por %p60, %p61
      %p63 = scmp.ne.s32.totalorder %s52, %s55
      %p64 = scmp.eq.s32.totalorder %s35, 1
      %p65 = por %p63, %p64
      %p66 = scmp.ne.s32.totalorder %s55, %s56
      %p67 = scmp.eq.s32.totalorder %s35, 0
      %p68 = por %p66, %p67
      %p69 = scmp.ne.s32.totalorder %s55, %s56
      %p70 = scmp.eq.s32.totalorder %s36, 1
      %p71 = por %p69, %p70
      %p73 = scmp.ne.s32.totalorder %s56, %s72
      %p74 = scmp.eq.s32.totalorder %s36, 0
      %p75 = por %p73, %p74
      %s77 = sadd.s32 %s76, 1
      %p80 = scmp.eq.s32.totalorder %s30, 1
      %p81 = scmp.ne.s32.totalorder %s76, %s78
      %p82 = scmp.eq.s32.totalorder %s30, 0
      %p83 = por %p81, %p82
      %p84 = scmp.ne.s32.totalorder %s76, %s78
      %p85 = scmp.eq.s32.totalorder %s35, 1
      %p86 = por %p84, %p85
      %p87 = scmp.ne.s32.totalorder %s78, %s79
      %p88 = scmp.eq.s32.totalorder %s35, 0
      %p89 = por %p87, %p88
      %p90 = scmp.ne.s32.totalorder %s78, %s79
      %p91 = scmp.eq.s32.totalorder %s36, 1
      %p92 = por %p90, %p91
      %p94 = scmp.ne.s32.totalorder %s79, %s93
      %p95 = scmp.eq.s32.totalorder %s36, 0
      %p96 = por %p94, %p95
      %s97 = ssub.s32 %s37, %s49
      %p98 = scmp.eq.s32.totalorder %s97, 0
      %s100 = sadd.s32 %s99, 1
      %s101 = scalar_select %p98, %s99, %s100
      %p104 = pneg %p98
      %p105 = scmp.eq.s32.totalorder %s30, 1
      %p106 = por %p104, %p105
      %p107 = scmp.ne.s32.totalorder %s99, %s102
      %p108 = scmp.eq.s32.totalorder %s30, 0
      %p109 = por %p107, %p108
      %p110 = scmp.ne.s32.totalorder %s99, %s102
      %p111 = scmp.eq.s32.totalorder %s35, 1
      %p112 = por %p110, %p111
      %p113 = scmp.ne.s32.totalorder %s102, %s103
      %p114 = scmp.eq.s32.totalorder %s35, 0
      %p115 = por %p113, %p114
      %p116 = scmp.ne.s32.totalorder %s102, %s103
      %p117 = scmp.eq.s32.totalorder %s36, 1
      %p118 = por %p116, %p117
      %p120 = scmp.ne.s32.totalorder %s103, %s119
      %p121 = scmp.eq.s32.totalorder %s36, 0
      %p122 = por %p120, %p121
      %s123 = ssub.s32 %s37, %s49
      %p124 = scmp.eq.s32.totalorder %s123, 0
      %s126 = sadd.s32 %s125, 1
      %s127 = scalar_select %p124, %s125, %s126
      %p130 = pneg %p124
      %p131 = scmp.eq.s32.totalorder %s30, 1
      %p132 = por %p130, %p131
      %p133 = scmp.ne.s32.totalorder %s125, %s128
      %p134 = scmp.eq.s32.totalorder %s30, 0
      %p135 = por %p133, %p134
      %p136 = scmp.ne.s32.totalorder %s125, %s128
      %p137 = scmp.eq.s32.totalorder %s35, 1
      %p138 = por %p136, %p137
      %p139 = scmp.ne.s32.totalorder %s128, %s129
      %p140 = scmp.eq.s32.totalorder %s35, 0
      %p141 = por %p139, %p140
      %p142 = scmp.ne.s32.totalorder %s128, %s129
      %p143 = scmp.eq.s32.totalorder %s36, 1
      %p144 = por %p142, %p143
      %p146 = scmp.ne.s32.totalorder %s129, %s145
      %p147 = scmp.eq.s32.totalorder %s36, 0
      %p148 = por %p146, %p147
      %s149 = ssub.s32 %s37, %s49
      %p150 = scmp.eq.s32.totalorder %s149, 0
      %s152 = sadd.s32 %s151, 1
      %s153 = scalar_select %p150, %s151, %s152
      %p156 = pneg %p150
      %p157 = scmp.eq.s32.totalorder %s30, 1
      %p158 = por %p156, %p157
      %p159 = scmp.ne.s32.totalorder %s151, %s154
      %p160 = scmp.eq.s32.totalorder %s30, 0
      %p161 = por %p159, %p160
      %p162 = scmp.ne.s32.totalorder %s151, %s154
      %p163 = scmp.eq.s32.totalorder %s35, 1
      %p164 = por %p162, %p163
      %p165 = scmp.ne.s32.totalorder %s154, %s155
      %p166 = scmp.eq.s32.totalorder %s35, 0
      %p167 = por %p165, %p166
      %p168 = scmp.ne.s32.totalorder %s154, %s155
      %p169 = scmp.eq.s32.totalorder %s36, 1
      %p170 = por %p168, %p169
      %p172 = scmp.ne.s32.totalorder %s155, %s171
      %p173 = scmp.eq.s32.totalorder %s36, 0
      %p174 = por %p172, %p173
      %s175 = ssub.s32 %s38, %s45
      %p176 = scmp.eq.s32.totalorder %s175, 0
      %s178 = sadd.s32 %s177, 1
      %s179 = scalar_select %p176, %s177, %s178
      %p182 = pneg %p176
      %p183 = scmp.eq.s32.totalorder %s30, 1
      %p184 = por %p182, %p183
      %p185 = scmp.ne.s32.totalorder %s177, %s180
      %p186 = scmp.eq.s32.totalorder %s30, 0
      %p187 = por %p185, %p186
      %p188 = scmp.ne.s32.totalorder %s177, %s180
      %p189 = scmp.eq.s32.totalorder %s35, 1
      %p190 = por %p188, %p189
      %p191 = scmp.ne.s32.totalorder %s180, %s181
      %p192 = scmp.eq.s32.totalorder %s35, 0
      %p193 = por %p191, %p192
      %p194 = scmp.ne.s32.totalorder %s180, %s181
      %p195 = scmp.eq.s32.totalorder %s36, 1
      %p196 = por %p194, %p195
      %p198 = scmp.ne.s32.totalorder %s181, %s197
      %p199 = scmp.eq.s32.totalorder %s36, 0
      %p200 = por %p198, %p199
      %s201 = ssub.s32 %s38, %s45
      %p202 = scmp.eq.s32.totalorder %s201, 0
      %s204 = sadd.s32 %s203, 1
      %s205 = scalar_select %p202, %s203, %s204
      %p208 = pneg %p202
      %p209 = scmp.eq.s32.totalorder %s30, 1
      %p210 = por %p208, %p209
      %p211 = scmp.ne.s32.totalorder %s203, %s206
      %p212 = scmp.eq.s32.totalorder %s30, 0
      %p213 = por %p211, %p212
      %p214 = scmp.ne.s32.totalorder %s203, %s206
      %p215 = scmp.eq.s32.totalorder %s35, 1
      %p216 = por %p214, %p215
      %p217 = scmp.ne.s32.totalorder %s206, %s207
      %p218 = scmp.eq.s32.totalorder %s35, 0
      %p219 = por %p217, %p218
      %p220 = scmp.ne.s32.totalorder %s206, %s207
      %p221 = scmp.eq.s32.totalorder %s36, 1
      %p222 = por %p220, %p221
      %p224 = scmp.ne.s32.totalorder %s207, %s223
      %p225 = scmp.eq.s32.totalorder %s36, 0
      %p226 = por %p224, %p225
      %s227 = ssub.s32 %s38, %s45
      %p228 = scmp.eq.s32.totalorder %s227, 0
      %s230 = sadd.s32 %s229, 1
      %s231 = scalar_select %p228, %s229, %s230
      %p234 = pneg %p228
      %p235 = scmp.eq.s32.totalorder %s30, 1
      %p236 = por %p234, %p235
      %p237 = scmp.ne.s32.totalorder %s229, %s232
      %p238 = scmp.eq.s32.totalorder %s30, 0
      %p239 = por %p237, %p238
      %p240 = scmp.ne.s32.totalorder %s229, %s232
      %p241 = scmp.eq.s32.totalorder %s35, 1
      %p242 = por %p240, %p241
      %p243 = scmp.ne.s32.totalorder %s232, %s233
      %p244 = scmp.eq.s32.totalorder %s35, 0
      %p245 = por %p243, %p244
      %p246 = scmp.ne.s32.totalorder %s232, %s233
      %p247 = scmp.eq.s32.totalorder %s36, 1
      %p248 = por %p246, %p247
      %p250 = scmp.ne.s32.totalorder %s233, %s249
      %p251 = scmp.eq.s32.totalorder %s36, 0
      %p252 = por %p250, %p251
      %s253 = ssub.s32 %s38, %s45
      %p254 = scmp.eq.s32.totalorder %s253, 0
      %s256 = sadd.s32 %s255, 1
      %s257 = scalar_select %p254, %s255, %s256
      %p260 = pneg %p254
      %p261 = scmp.eq.s32.totalorder %s30, 1
      %p262 = por %p260, %p261
      %p263 = scmp.ne.s32.totalorder %s255, %s258
      %p264 = scmp.eq.s32.totalorder %s30, 0
      %p265 = por %p263, %p264
      %p266 = scmp.ne.s32.totalorder %s255, %s258
      %p267 = scmp.eq.s32.totalorder %s35, 1
      %p268 = por %p266, %p267
      %p269 = scmp.ne.s32.totalorder %s258, %s259
      %p270 = scmp.eq.s32.totalorder %s35, 0
      %p271 = por %p269, %p270
      %p272 = scmp.ne.s32.totalorder %s258, %s259
      %p273 = scmp.eq.s32.totalorder %s36, 1
      %p274 = por %p272, %p273
      %p276 = scmp.ne.s32.totalorder %s259, %s275
      %p277 = scmp.eq.s32.totalorder %s36, 0
      %p278 = por %p276, %p277
      %s279 = ssub.s32 %s38, %s45
      %p280 = scmp.eq.s32.totalorder %s279, 0
      %s282 = sadd.s32 %s281, 1
      %s283 = scalar_select %p280, %s281, %s282
      %p286 = pneg %p280
      %p287 = scmp.eq.s32.totalorder %s30, 1
      %p288 = por %p286, %p287
      %p289 = scmp.ne.s32.totalorder %s281, %s284
      %p290 = scmp.eq.s32.totalorder %s30, 0
      %p291 = por %p289, %p290
      %p292 = scmp.ne.s32.totalorder %s281, %s284
      %p293 = scmp.eq.s32.totalorder %s35, 1
      %p294 = por %p292, %p293
      %p295 = scmp.ne.s32.totalorder %s284, %s285
      %p296 = scmp.eq.s32.totalorder %s35, 0
      %p297 = por %p295, %p296
      %p298 = scmp.ne.s32.totalorder %s284, %s285
      %p299 = scmp.eq.s32.totalorder %s36, 1
      %p300 = por %p298, %p299
      %p302 = scmp.ne.s32.totalorder %s285, %s301
      %p303 = scmp.eq.s32.totalorder %s36, 0
      %p304 = por %p302, %p303
      %s305 = ssub.s32 %s38, %s45
      %p306 = scmp.eq.s32.totalorder %s305, 0
      %s308 = sadd.s32 %s307, 1
      %s309 = scalar_select %p306, %s307, %s308
      %p312 = pneg %p306
      %p313 = scmp.eq.s32.totalorder %s30, 1
      %p314 = por %p312, %p313
      %p315 = scmp.ne.s32.totalorder %s307, %s310
      %p316 = scmp.eq.s32.totalorder %s30, 0
      %p317 = por %p315, %p316
      %p318 = scmp.ne.s32.totalorder %s307, %s310
      %p319 = scmp.eq.s32.totalorder %s35, 1
      %p320 = por %p318, %p319
      %p321 = scmp.ne.s32.totalorder %s310, %s311
      %p322 = scmp.eq.s32.totalorder %s35, 0
      %p323 = por %p321, %p322
      %p324 = scmp.ne.s32.totalorder %s310, %s311
      %p325 = scmp.eq.s32.totalorder %s36, 1
      %p326 = por %p324, %p325
      %p328 = scmp.ne.s32.totalorder %s311, %s327
      %p329 = scmp.eq.s32.totalorder %s36, 0
      %p330 = por %p328, %p329
      %s331 = ssub.s32 %s38, %s45
      %p332 = scmp.eq.s32.totalorder %s331, 0
      %s334 = sadd.s32 %s333, 1
      %s335 = scalar_select %p332, %s333, %s334
      %p338 = pneg %p332
      %p339 = scmp.eq.s32.totalorder %s30, 1
      %p340 = por %p338, %p339
      %p341 = scmp.ne.s32.totalorder %s333, %s336
      %p342 = scmp.eq.s32.totalorder %s30, 0
      %p343 = por %p341, %p342
      %p344 = scmp.ne.s32.totalorder %s333, %s336
      %p345 = scmp.eq.s32.totalorder %s35, 1
      %p346 = por %p344, %p345
      %p347 = scmp.ne.s32.totalorder %s336, %s337
      %p348 = scmp.eq.s32.totalorder %s35, 0
      %p349 = por %p347, %p348
      %p350 = scmp.ne.s32.totalorder %s336, %s337
      %p351 = scmp.eq.s32.totalorder %s36, 1
      %p352 = por %p350, %p351
      %p354 = scmp.ne.s32.totalorder %s337, %s353
      %p355 = scmp.eq.s32.totalorder %s36, 0
      %p356 = por %p354, %p355
      %s357 = ssub.s32 %s38, %s45
      %p358 = scmp.eq.s32.totalorder %s357, 0
      %s360 = sadd.s32 %s359, 1
      %s361 = scalar_select %p358, %s359, %s360
      %p364 = pneg %p358
      %p365 = scmp.eq.s32.totalorder %s30, 1
      %p366 = por %p364, %p365
      %p367 = scmp.ne.s32.totalorder %s359, %s362
      %p368 = scmp.eq.s32.totalorder %s30, 0
      %p369 = por %p367, %p368
      %p370 = scmp.ne.s32.totalorder %s359, %s362
      %p371 = scmp.eq.s32.totalorder %s35, 1
      %p372 = por %p370, %p371
      %p373 = scmp.ne.s32.totalorder %s362, %s363
      %p374 = scmp.eq.s32.totalorder %s35, 0
      %p375 = por %p373, %p374
      %p376 = scmp.ne.s32.totalorder %s362, %s363
      %p377 = scmp.eq.s32.totalorder %s36, 1
      %p378 = por %p376, %p377
      %p380 = scmp.ne.s32.totalorder %s363, %s379
      %p381 = scmp.eq.s32.totalorder %s36, 0
      %p382 = por %p380, %p381
      %s383 = ssub.s32 %s38, %s45
      %p384 = scmp.eq.s32.totalorder %s383, 0
      %s386 = sadd.s32 %s385, 1
      %s387 = scalar_select %p384, %s385, %s386
      %p390 = pneg %p384
      %p391 = scmp.eq.s32.totalorder %s30, 1
      %p392 = por %p390, %p391
      %p393 = scmp.ne.s32.totalorder %s385, %s388
      %p394 = scmp.eq.s32.totalorder %s30, 0
      %p395 = por %p393, %p394
      %p396 = scmp.ne.s32.totalorder %s385, %s388
      %p397 = scmp.eq.s32.totalorder %s35, 1
      %p398 = por %p396, %p397
      %p399 = scmp.ne.s32.totalorder %s388, %s389
      %p400 = scmp.eq.s32.totalorder %s35, 0
      %p401 = por %p399, %p400
      %p402 = scmp.ne.s32.totalorder %s388, %s389
      %p403 = scmp.eq.s32.totalorder %s36, 1
      %p404 = por %p402, %p403
      %p406 = scmp.ne.s32.totalorder %s389, %s405
      %p407 = scmp.eq.s32.totalorder %s36, 0
      %p408 = por %p406, %p407
      %s409 = ssub.s32 %s38, %s45
      %p410 = scmp.eq.s32.totalorder %s409, 0
      %s412 = sadd.s32 %s411, 1
      %s413 = scalar_select %p410, %s411, %s412
      %p416 = pneg %p410
      %p417 = scmp.eq.s32.totalorder %s30, 1
      %p418 = por %p416, %p417
      %p419 = scmp.ne.s32.totalorder %s411, %s414
      %p420 = scmp.eq.s32.totalorder %s30, 0
      %p421 = por %p419, %p420
      %p422 = scmp.ne.s32.totalorder %s411, %s414
      %p423 = scmp.eq.s32.totalorder %s35, 1
      %p424 = por %p422, %p423
      %p425 = scmp.ne.s32.totalorder %s414, %s415
      %p426 = scmp.eq.s32.totalorder %s35, 0
      %p427 = por %p425, %p426
      %p428 = scmp.ne.s32.totalorder %s414, %s415
      %p429 = scmp.eq.s32.totalorder %s36, 1
      %p430 = por %p428, %p429
      %p432 = scmp.ne.s32.totalorder %s415, %s431
      %p433 = scmp.eq.s32.totalorder %s36, 0
      %p434 = por %p432, %p433
      %s435 = ssub.s32 %s38, %s45
      %p436 = scmp.eq.s32.totalorder %s435, 0
      %s438 = sadd.s32 %s437, 1
      %s439 = scalar_select %p436, %s437, %s438
      %p442 = pneg %p436
      %p443 = scmp.eq.s32.totalorder %s30, 1
      %p444 = por %p442, %p443
      %p445 = scmp.ne.s32.totalorder %s437, %s440
      %p446 = scmp.eq.s32.totalorder %s30, 0
      %p447 = por %p445, %p446
      %p448 = scmp.ne.s32.totalorder %s437, %s440
      %p449 = scmp.eq.s32.totalorder %s35, 1
      %p450 = por %p448, %p449
      %p451 = scmp.ne.s32.totalorder %s440, %s441
      %p452 = scmp.eq.s32.totalorder %s35, 0
      %p453 = por %p451, %p452
      %p454 = scmp.ne.s32.totalorder %s440, %s441
      %p455 = scmp.eq.s32.totalorder %s36, 1
      %p456 = por %p454, %p455
      %p458 = scmp.ne.s32.totalorder %s441, %s457
      %p459 = scmp.eq.s32.totalorder %s36, 0
      %p460 = por %p458, %p459
      %s461 = ssub.s32 %s38, %s45
      %p462 = scmp.eq.s32.totalorder %s461, 0
      %s464 = sadd.s32 %s463, 1
      %s465 = scalar_select %p462, %s463, %s464
      %p468 = pneg %p462
      %p469 = scmp.eq.s32.totalorder %s30, 1
      %p470 = por %p468, %p469
      %p471 = scmp.ne.s32.totalorder %s463, %s466
      %p472 = scmp.eq.s32.totalorder %s30, 0
      %p473 = por %p471, %p472
      %p474 = scmp.ne.s32.totalorder %s463, %s466
      %p475 = scmp.eq.s32.totalorder %s35, 1
      %p476 = por %p474, %p475
      %p477 = scmp.ne.s32.totalorder %s466, %s467
      %p478 = scmp.eq.s32.totalorder %s35, 0
      %p479 = por %p477, %p478
      %p480 = scmp.ne.s32.totalorder %s466, %s467
      %p481 = scmp.eq.s32.totalorder %s36, 1
      %p482 = por %p480, %p481
      %p484 = scmp.ne.s32.totalorder %s467, %s483
      %p485 = scmp.eq.s32.totalorder %s36, 0
      %p486 = por %p484, %p485
      %s487 = ssub.s32 %s38, %s45
      %p488 = scmp.eq.s32.totalorder %s487, 0
      %s490 = sadd.s32 %s489, 1
      %s491 = scalar_select %p488, %s489, %s490
      %p494 = pneg %p488
      %p495 = scmp.eq.s32.totalorder %s30, 1
      %p496 = por %p494, %p495
      %p497 = scmp.ne.s32.totalorder %s489, %s492
      %p498 = scmp.eq.s32.totalorder %s30, 0
      %p499 = por %p497, %p498
      %p500 = scmp.ne.s32.totalorder %s489, %s492
      %p501 = scmp.eq.s32.totalorder %s35, 1
      %p502 = por %p500, %p501
      %p503 = scmp.ne.s32.totalorder %s492, %s493
      %p504 = scmp.eq.s32.totalorder %s35, 0
      %p505 = por %p503, %p504
      %p506 = scmp.ne.s32.totalorder %s492, %s493
      %p507 = scmp.eq.s32.totalorder %s36, 1
      %p508 = por %p506, %p507
      %p510 = scmp.ne.s32.totalorder %s493, %s509
      %p511 = scmp.eq.s32.totalorder %s36, 0
      %p512 = por %p510, %p511
      %s513 = ssub.s32 %s38, %s45
      %p514 = scmp.eq.s32.totalorder %s513, 0
      %s516 = sadd.s32 %s515, 1
      %s517 = scalar_select %p514, %s515, %s516
      %p520 = pneg %p514
      %p521 = scmp.eq.s32.totalorder %s30, 1
      %p522 = por %p520, %p521
      %p523 = scmp.ne.s32.totalorder %s515, %s518
      %p524 = scmp.eq.s32.totalorder %s30, 0
      %p525 = por %p523, %p524
      %p526 = scmp.ne.s32.totalorder %s515, %s518
      %p527 = scmp.eq.s32.totalorder %s35, 1
      %p528 = por %p526, %p527
      %p529 = scmp.ne.s32.totalorder %s518, %s519
      %p530 = scmp.eq.s32.totalorder %s35, 0
      %p531 = por %p529, %p530
      %p532 = scmp.ne.s32.totalorder %s518, %s519
      %p533 = scmp.eq.s32.totalorder %s36, 1
      %p534 = por %p532, %p533
      %p536 = scmp.ne.s32.totalorder %s519, %s535
      %p537 = scmp.eq.s32.totalorder %s36, 0
      %p538 = por %p536, %p537
      %s539 = ssub.s32 %s38, %s45
      %p540 = scmp.eq.s32.totalorder %s539, 0
      %s542 = sadd.s32 %s541, 1
      %s543 = scalar_select %p540, %s541, %s542
      %p546 = pneg %p540
      %p547 = scmp.eq.s32.totalorder %s30, 1
      %p548 = por %p546, %p547
      %p549 = scmp.ne.s32.totalorder %s541, %s544
      %p550 = scmp.eq.s32.totalorder %s30, 0
      %p551 = por %p549, %p550
      %p552 = scmp.ne.s32.totalorder %s541, %s544
      %p553 = scmp.eq.s32.totalorder %s35, 1
      %p554 = por %p552, %p553
      %p555 = scmp.ne.s32.totalorder %s544, %s545
      %p556 = scmp.eq.s32.totalorder %s35, 0
      %p557 = por %p555, %p556
      %p558 = scmp.ne.s32.totalorder %s544, %s545
      %p559 = scmp.eq.s32.totalorder %s36, 1
      %p560 = por %p558, %p559
      %p562 = scmp.ne.s32.totalorder %s545, %s561
      %p563 = scmp.eq.s32.totalorder %s36, 0
      %p564 = por %p562, %p563
      %s565 = ssub.s32 %s38, %s45
      %p566 = scmp.eq.s32.totalorder %s565, 0
      %s568 = sadd.s32 %s567, 1
      %s569 = scalar_select %p566, %s567, %s568
      %p572 = pneg %p566
      %p573 = scmp.eq.s32.totalorder %s30, 1
      %p574 = por %p572, %p573
      %p575 = scmp.ne.s32.totalorder %s567, %s570
      %p576 = scmp.eq.s32.totalorder %s30, 0
      %p577 = por %p575, %p576
      %p578 = scmp.ne.s32.totalorder %s567, %s570
      %p579 = scmp.eq.s32.totalorder %s35, 1
      %p580 = por %p578, %p579
      %p581 = scmp.ne.s32.totalorder %s570, %s571
      %p582 = scmp.eq.s32.totalorder %s35, 0
      %p583 = por %p581, %p582
      %p584 = scmp.ne.s32.totalorder %s570, %s571
      %p585 = scmp.eq.s32.totalorder %s36, 1
      %p586 = por %p584, %p585
      %p588 = scmp.ne.s32.totalorder %s571, %s587
      %p589 = scmp.eq.s32.totalorder %s36, 0
      %p590 = por %p588, %p589
      %s592 = sadd.s32 %s591, 1
      %p595 = scmp.eq.s32.totalorder %s30, 1
      %p596 = scmp.ne.s32.totalorder %s591, %s593
      %p597 = scmp.eq.s32.totalorder %s30, 0
      %p598 = por %p596, %p597
      %p599 = scmp.ne.s32.totalorder %s591, %s593
      %p600 = scmp.eq.s32.totalorder %s35, 1
      %p601 = por %p599, %p600
      %p602 = scmp.ne.s32.totalorder %s593, %s594
      %p603 = scmp.eq.s32.totalorder %s35, 0
      %p604 = por %p602, %p603
      %p605 = scmp.ne.s32.totalorder %s593, %s594
      %p606 = scmp.eq.s32.totalorder %s36, 1
      %p607 = por %p605, %p606
      %p609 = scmp.ne.s32.totalorder %s594, %s608
      %p610 = scmp.eq.s32.totalorder %s36, 0
      %p611 = por %p609, %p610
      %s613 = sadd.s32 %s612, 1
      %p616 = scmp.eq.s32.totalorder %s30, 1
      %p617 = scmp.ne.s32.totalorder %s612, %s614
      %p618 = scmp.eq.s32.totalorder %s30, 0
      %p619 = por %p617, %p618
      %p620 = scmp.ne.s32.totalorder %s612, %s614
      %p621 = scmp.eq.s32.totalorder %s35, 1
      %p622 = por %p620, %p621
      %p623 = scmp.ne.s32.totalorder %s614, %s615
      %p624 = scmp.eq.s32.totalorder %s35, 0
      %p625 = por %p623, %p624
      %p626 = scmp.ne.s32.totalorder %s614, %s615
      %p627 = scmp.eq.s32.totalorder %s36, 1
      %p628 = por %p626, %p627
      %p630 = scmp.ne.s32.totalorder %s615, %s629
      %p631 = scmp.eq.s32.totalorder %s36, 0
      %p632 = por %p630, %p631
      %s633 = ssub.s32 %s37, %s49
      %p634 = scmp.eq.s32.totalorder %s633, 0
      %s636 = sadd.s32 %s635, 1
      %s637 = scalar_select %p634, %s635, %s636
      %p640 = pneg %p634
      %p641 = scmp.eq.s32.totalorder %s30, 1
      %p642 = por %p640, %p641
      %p643 = scmp.ne.s32.totalorder %s635, %s638
      %p644 = scmp.eq.s32.totalorder %s30, 0
      %p645 = por %p643, %p644
      %p646 = scmp.ne.s32.totalorder %s635, %s638
      %p647 = scmp.eq.s32.totalorder %s35, 1
      %p648 = por %p646, %p647
      %p649 = scmp.ne.s32.totalorder %s638, %s639
      %p650 = scmp.eq.s32.totalorder %s35, 0
      %p651 = por %p649, %p650
      %p652 = scmp.ne.s32.totalorder %s638, %s639
      %p653 = scmp.eq.s32.totalorder %s36, 1
      %p654 = por %p652, %p653
      %p656 = scmp.ne.s32.totalorder %s639, %s655
      %p657 = scmp.eq.s32.totalorder %s36, 0
      %p658 = por %p656, %p657
      %p659 = scmp.le.s32.totalorder 1, %s30
      %p660 = scmp.lt.s32.totalorder %s30, 3
      %p661 = pnand %p659, %p660
      %p662 = pneg %p661
      // Predicated region
      $region9: #{decoder_forward.1} parent=5 // pred_check
        _
      $region10: #{decoder_forward.1} parent=5 // pred_check_branch
        %664 = sbr.rel (%p661) target = $region12
      $region11: #{decoder_forward.1} parent=5 // pred_region
        %s665 = ssub.s32 %s30, 1
        // Predicated region
        $region13: #{decoder_forward.1} parent=11 // pred_check
          %p666 = pneg %p68
        $region14: #{decoder_forward.1} parent=11 // pred_check_branch
          %668 = sbr.rel (%p666) target = $region16
        $region15: #{decoder_forward.1} parent=11 // pred_region
          %s669 = smul.u32 2, %s39
          %p670 = scmp.lt.s32.totalorder %s669, 1
          %s671 = scalar_select %p670, %s669, 1
          %s672 = smul.addr %s671, 8
          %s673 = scalar_lea.vmem %s0, %s672
          %s674 = smul.u32 2, %s39
        $region16: #{decoder_forward.1} parent=11 // pred_fallthru
          _
        // Predicated region
        $region17: #{decoder_forward.1} parent=11 // pred_check
          %p675 = pneg %p89
        $region18: #{decoder_forward.1} parent=11 // pred_check_branch
          %677 = sbr.rel (%p675) target = $region20
        $region19: #{decoder_forward.1} parent=11 // pred_region
          _
        $region20: #{decoder_forward.1} parent=11 // pred_fallthru
          _
        // Predicated region
        $region21: #{decoder_forward.1} parent=11 // pred_check
          %p678 = pneg %p115
        $region22: #{decoder_forward.1} parent=11 // pred_check_branch
          %680 = sbr.rel (%p678) target = $region24
        $region23: #{decoder_forward.1} parent=11 // pred_region
          %s681 = smul.u32 2, %s39
          %p682 = scmp.lt.s32.totalorder %s681, 1
          %s683 = scalar_select %p682, %s681, 1
          %s684 = smul.addr %s683, 4
          %s685 = scalar_lea.vmem %s2, %s684
          %s686 = smul.u32 2, %s39
        $region24: #{decoder_forward.1} parent=11 // pred_fallthru
          _
        // Predicated region
        $region25: #{decoder_forward.1} parent=11 // pred_check
          %p687 = pneg %p141
        $region26: #{decoder_forward.1} parent=11 // pred_check_branch
          %689 = sbr.rel (%p687) target = $region28
        $region27: #{decoder_forward.1} parent=11 // pred_region
          %s690 = smul.u32 2, %s39
          %p691 = scmp.lt.s32.totalorder %s690, 1
          %s692 = scalar_select %p691, %s690, 1
          %s693 = scalar_lea.vmem %s3, %s692
          %s694 = smul.u32 2, %s39
        $region28: #{decoder_forward.1} parent=11 // pred_fallthru
          _
        // Predicated region
        $region29: #{decoder_forward.1} parent=11 // pred_check
          %p695 = pneg %p167
        $region30: #{decoder_forward.1} parent=11 // pred_check_branch
          %697 = sbr.rel (%p695) target = $region32
        $region31: #{decoder_forward.1} parent=11 // pred_region
          %s698 = smul.u32 2, %s39
          %p699 = scmp.lt.s32.totalorder %s698, 1
          %s700 = scalar_select %p699, %s698, 1
          %s701 = smul.addr %s700, 8
          %s702 = scalar_lea.vmem %s4, %s701
          %s703 = smul.u32 2, %s39
        $region32: #{decoder_forward.1} parent=11 // pred_fallthru
          _
        // Predicated region
        $region33: #{decoder_forward.1} parent=11 // pred_check
          %p704 = pneg %p604
        $region34: #{decoder_forward.1} parent=11 // pred_check_branch
          %706 = sbr.rel (%p704) target = $region36
        $region35: #{decoder_forward.1} parent=11 // pred_region
          _
        $region36: #{decoder_forward.1} parent=11 // pred_fallthru
          _
        // Predicated region
        $region37: #{decoder_forward.1} parent=11 // pred_check
          %p707 = pneg %p625
        $region38: #{decoder_forward.1} parent=11 // pred_check_branch
          %709 = sbr.rel (%p707) target = $region40
        $region39: #{decoder_forward.1} parent=11 // pred_region
          _
        $region40: #{decoder_forward.1} parent=11 // pred_fallthru
          _
      $region12: #{decoder_forward.1} parent=5 // pred_fallthru
        _
      %p710 = scmp.lt.s32.totalorder %s30, 2
      // Predicated region
      $region41: #{decoder_forward.1} parent=5 // pred_check
        %p711 = pneg %p710
      $region42: #{decoder_forward.1} parent=5 // pred_check_branch
        %713 = sbr.rel (%p711) target = $region44
      $region43: #{decoder_forward.1} parent=5 // pred_region
        // Predicated region
        $region45: #{decoder_forward.1} parent=43 // pred_check
          %p714 = pneg %p187
        $region46: #{decoder_forward.1} parent=43 // pred_check_branch
          %716 = sbr.rel (%p714) target = $region48
        $region47: #{decoder_forward.1} parent=43 // pred_region
          %p717 = scmp.lt.s32.totalorder %s38, 1
          %s718 = scalar_select %p717, %s38, 1
          %s719 = smul.addr %s718, 4
          %s720 = scalar_lea.vmem %s5, %s719
        $region48: #{decoder_forward.1} parent=43 // pred_fallthru
          _
        // Predicated region
        $region49: #{decoder_forward.1} parent=43 // pred_check
          %p721 = pneg %p213
        $region50: #{decoder_forward.1} parent=43 // pred_check_branch
          %723 = sbr.rel (%p721) target = $region52
        $region51: #{decoder_forward.1} parent=43 // pred_region
          %p724 = scmp.lt.s32.totalorder %s38, 1
          %s725 = scalar_select %p724, %s38, 1
          %s726 = smul.addr %s725, 4
          %s727 = scalar_lea.vmem %s6, %s726
        $region52: #{decoder_forward.1} parent=43 // pred_fallthru
          _
        // Predicated region
        $region53: #{decoder_forward.1} parent=43 // pred_check
          %p728 = pneg %p239
        $region54: #{decoder_forward.1} parent=43 // pred_check_branch
          %730 = sbr.rel (%p728) target = $region56
        $region55: #{decoder_forward.1} parent=43 // pred_region
          %p731 = scmp.lt.s32.totalorder %s38, 1
          %s732 = scalar_select %p731, %s38, 1
          %s733 = smul.addr %s732, 4
          %s734 = smul.addr %s733, 4
          %s735 = scalar_lea.vmem %s7, %s734
        $region56: #{decoder_forward.1} parent=43 // pred_fallthru
          _
        // Predicated region
        $region57: #{decoder_forward.1} parent=43 // pred_check
          %p736 = pneg %p265
        $region58: #{decoder_forward.1} parent=43 // pred_check_branch
          %738 = sbr.rel (%p736) target = $region60
        $region59: #{decoder_forward.1} parent=43 // pred_region
          %p739 = scmp.lt.s32.totalorder %s38, 1
          %s740 = scalar_select %p739, %s38, 1
          %s741 = scalar_lea.vmem %s8, %s740
        $region60: #{decoder_forward.1} parent=43 // pred_fallthru
          _
        // Predicated region
        $region61: #{decoder_forward.1} parent=43 // pred_check
          %p742 = pneg %p291
        $region62: #{decoder_forward.1} parent=43 // pred_check_branch
          %744 = sbr.rel (%p742) target = $region64
        $region63: #{decoder_forward.1} parent=43 // pred_region
          %p745 = scmp.lt.s32.totalorder %s38, 1
          %s746 = scalar_select %p745, %s38, 1
          %s747 = smul.addr %s746, 4
          %s748 = smul.addr %s747, 4
          %s749 = scalar_lea.vmem %s9, %s748
        $region64: #{decoder_forward.1} parent=43 // pred_fallthru
          _
        // Predicated region
        $region65: #{decoder_forward.1} parent=43 // pred_check
          %p750 = pneg %p317
        $region66: #{decoder_forward.1} parent=43 // pred_check_branch
          %752 = sbr.rel (%p750) target = $region68
        $region67: #{decoder_forward.1} parent=43 // pred_region
          %p753 = scmp.lt.s32.totalorder %s38, 1
          %s754 = scalar_select %p753, %s38, 1
          %s755 = scalar_lea.vmem %s10, %s754
        $region68: #{decoder_forward.1} parent=43 // pred_fallthru
          _
        // Predicated region
        $region69: #{decoder_forward.1} parent=43 // pred_check
          %p756 = pneg %p343
        $region70: #{decoder_forward.1} parent=43 // pred_check_branch
          %758 = sbr.rel (%p756) target = $region72
        $region71: #{decoder_forward.1} parent=43 // pred_region
          %p759 = scmp.lt.s32.totalorder %s38, 1
          %s760 = scalar_select %p759, %s38, 1
          %s761 = smul.addr %s760, 4
          %s762 = smul.addr %s761, 4
          %s763 = scalar_lea.vmem %s11, %s762
        $region72: #{decoder_forward.1} parent=43 // pred_fallthru
          _
        // Predicated region
        $region73: #{decoder_forward.1} parent=43 // pred_check
          %p764 = pneg %p369
        $region74: #{decoder_forward.1} parent=43 // pred_check_branch
          %766 = sbr.rel (%p764) target = $region76
        $region75: #{decoder_forward.1} parent=43 // pred_region
          %p767 = scmp.lt.s32.totalorder %s38, 1
          %s768 = scalar_select %p767, %s38, 1
          %s769 = scalar_lea.vmem %s12, %s768
        $region76: #{decoder_forward.1} parent=43 // pred_fallthru
          _
        // Predicated region
        $region77: #{decoder_forward.1} parent=43 // pred_check
          %p770 = pneg %p395
        $region78: #{decoder_forward.1} parent=43 // pred_check_branch
          %772 = sbr.rel (%p770) target = $region80
        $region79: #{decoder_forward.1} parent=43 // pred_region
          %p773 = scmp.lt.s32.totalorder %s38, 1
          %s774 = scalar_select %p773, %s38, 1
          %s775 = smul.addr %s774, 4
          %s776 = smul.addr %s775, 4
          %s777 = scalar_lea.vmem %s13, %s776
        $region80: #{decoder_forward.1} parent=43 // pred_fallthru
          _
        // Predicated region
        $region81: #{decoder_forward.1} parent=43 // pred_check
          %p778 = pneg %p421
        $region82: #{decoder_forward.1} parent=43 // pred_check_branch
          %780 = sbr.rel (%p778) target = $region84
        $region83: #{decoder_forward.1} parent=43 // pred_region
          %p781 = scmp.lt.s32.totalorder %s38, 1
          %s782 = scalar_select %p781, %s38, 1
          %s783 = scalar_lea.vmem %s14, %s782
        $region84: #{decoder_forward.1} parent=43 // pred_fallthru
          _
        // Predicated region
        $region85: #{decoder_forward.1} parent=43 // pred_check
          %p784 = pneg %p447
        $region86: #{decoder_forward.1} parent=43 // pred_check_branch
          %786 = sbr.rel (%p784) target = $region88
        $region87: #{decoder_forward.1} parent=43 // pred_region
          %p787 = scmp.lt.s32.totalorder %s38, 1
          %s788 = scalar_select %p787, %s38, 1
          %s789 = smul.addr %s788, 4
          %s790 = smul.addr %s789, 4
          %s791 = scalar_lea.vmem %s15, %s790
        $region88: #{decoder_forward.1} parent=43 // pred_fallthru
          _
        // Predicated region
        $region89: #{decoder_forward.1} parent=43 // pred_check
          %p792 = pneg %p473
        $region90: #{decoder_forward.1} parent=43 // pred_check_branch
          %794 = sbr.rel (%p792) target = $region92
        $region91: #{decoder_forward.1} parent=43 // pred_region
          %p795 = scmp.lt.s32.totalorder %s38, 1
          %s796 = scalar_select %p795, %s38, 1
          %s797 = scalar_lea.vmem %s16, %s796
        $region92: #{decoder_forward.1} parent=43 // pred_fallthru
          _
        // Predicated region
        $region93: #{decoder_forward.1} parent=43 // pred_check
          %p798 = pneg %p499
        $region94: #{decoder_forward.1} parent=43 // pred_check_branch
          %800 = sbr.rel (%p798) target = $region96
        $region95: #{decoder_forward.1} parent=43 // pred_region
          %p801 = scmp.lt.s32.totalorder %s38, 1
          %s802 = scalar_select %p801, %s38, 1
          %s803 = smul.addr %s802, 4
          %s804 = smul.addr %s803, 4
          %s805 = scalar_lea.vmem %s17, %s804
        $region96: #{decoder_forward.1} parent=43 // pred_fallthru
          _
        // Predicated region
        $region97: #{decoder_forward.1} parent=43 // pred_check
          %p806 = pneg %p525
        $region98: #{decoder_forward.1} parent=43 // pred_check_branch
          %808 = sbr.rel (%p806) target = $region100
        $region99: #{decoder_forward.1} parent=43 // pred_region
          %p809 = scmp.lt.s32.totalorder %s38, 1
          %s810 = scalar_select %p809, %s38, 1
          %s811 = scalar_lea.vmem %s18, %s810
        $region100: #{decoder_forward.1} parent=43 // pred_fallthru
          _
        // Predicated region
        $region101: #{decoder_forward.1} parent=43 // pred_check
          %p812 = pneg %p551
        $region102: #{decoder_forward.1} parent=43 // pred_check_branch
          %814 = sbr.rel (%p812) target = $region104
        $region103: #{decoder_forward.1} parent=43 // pred_region
          %p815 = scmp.lt.s32.totalorder %s38, 1
          %s816 = scalar_select %p815, %s38, 1
          %s817 = smul.addr %s816, 8
          %s818 = smul.addr %s817, 4
          %s819 = scalar_lea.vmem %s19, %s818
        $region104: #{decoder_forward.1} parent=43 // pred_fallthru
          _
        // Predicated region
        $region105: #{decoder_forward.1} parent=43 // pred_check
          %p820 = pneg %p577
        $region106: #{decoder_forward.1} parent=43 // pred_check_branch
          %822 = sbr.rel (%p820) target = $region108
        $region107: #{decoder_forward.1} parent=43 // pred_region
          %p823 = scmp.lt.s32.totalorder %s38, 1
          %s824 = scalar_select %p823, %s38, 1
          %s825 = scalar_lea.vmem %s20, %s824
        $region108: #{decoder_forward.1} parent=43 // pred_fallthru
          _
      $region44: #{decoder_forward.1} parent=5 // pred_fallthru
        _
      %p826 = scmp.le.s32.totalorder 1, %s30
      %p827 = scmp.lt.s32.totalorder %s30, 3
      %p828 = pnand %p826, %p827
      %p829 = pneg %p828
      // Predicated region
      $region109: #{decoder_forward.1} parent=5 // pred_check
        _
      $region110: #{decoder_forward.1} parent=5 // pred_check_branch
        %831 = sbr.rel (%p828) target = $region112
      $region111: #{decoder_forward.1} parent=5 // pred_region
        %s832 = ssub.s32 %s30, 1
        %s833 = smul.u32 2, %s39
        %p834 = scmp.lt.s32.totalorder %s833, 1
        %s835 = scalar_select %p834, %s833, 1
        %s836 = smul.addr %s835, 8
        %s837 = scalar_lea.vmem %s0, %s836
        %p838 = pneg %p68
        %p839 = pneg %p65
        %p840 = pneg %p89
        %p841 = pneg %p86
        %s842 = smul.u32 2, %s39
        %p843 = scmp.lt.s32.totalorder %s842, 1
        %s844 = scalar_select %p843, %s842, 1
        %s845 = smul.addr %s844, 4
        %s846 = scalar_lea.vmem %s2, %s845
        %p847 = pneg %p115
        %p848 = pneg %p112
        %s849 = smul.u32 2, %s39
        %p850 = scmp.lt.s32.totalorder %s849, 1
        %s851 = scalar_select %p850, %s849, 1
        %s852 = scalar_lea.vmem %s3, %s851
        %p853 = pneg %p141
        %p854 = pneg %p138
        %s855 = smul.u32 2, %s39
        %p856 = scmp.lt.s32.totalorder %s855, 1
        %s857 = scalar_select %p856, %s855, 1
        %s858 = smul.addr %s857, 8
        %s859 = scalar_lea.vmem %s4, %s858
        %p860 = pneg %p167
        %p861 = pneg %p164
        %p862 = scmp.lt.s32.totalorder %s40, 1
        %s863 = scalar_select %p862, %s40, 1
        %s864 = smul.addr %s863, 4
        %s865 = scalar_lea.vmem %s5, %s864
        %p866 = pneg %p193
        %p867 = pneg %p190
        %p868 = scmp.lt.s32.totalorder %s40, 1
        %s869 = scalar_select %p868, %s40, 1
        %s870 = smul.addr %s869, 4
        %s871 = scalar_lea.vmem %s6, %s870
        %p872 = pneg %p219
        %p873 = pneg %p216
        %p874 = scmp.lt.s32.totalorder %s40, 1
        %s875 = scalar_select %p874, %s40, 1
        %s876 = smul.addr %s875, 4
        %s877 = smul.addr %s876, 4
        %s878 = scalar_lea.vmem %s7, %s877
        %p879 = pneg %p245
        %p880 = pneg %p242
        %p881 = scmp.lt.s32.totalorder %s40, 1
        %s882 = scalar_select %p881, %s40, 1
        %s883 = scalar_lea.vmem %s8, %s882
        %p884 = pneg %p271
        %p885 = pneg %p268
        %p886 = scmp.lt.s32.totalorder %s40, 1
        %s887 = scalar_select %p886, %s40, 1
        %s888 = smul.addr %s887, 4
        %s889 = smul.addr %s888, 4
        %s890 = scalar_lea.vmem %s9, %s889
        %p891 = pneg %p297
        %p892 = pneg %p294
        %p893 = scmp.lt.s32.totalorder %s40, 1
        %s894 = scalar_select %p893, %s40, 1
        %s895 = scalar_lea.vmem %s10, %s894
        %p896 = pneg %p323
        %p897 = pneg %p320
        %p898 = scmp.lt.s32.totalorder %s40, 1
        %s899 = scalar_select %p898, %s40, 1
        %s900 = smul.addr %s899, 4
        %s901 = smul.addr %s900, 4
        %s902 = scalar_lea.vmem %s11, %s901
        %p903 = pneg %p349
        %p904 = pneg %p346
        %p905 = scmp.lt.s32.totalorder %s40, 1
        %s906 = scalar_select %p905, %s40, 1
        %s907 = scalar_lea.vmem %s12, %s906
        %p908 = pneg %p375
        %p909 = pneg %p372
        %p910 = scmp.lt.s32.totalorder %s40, 1
        %s911 = scalar_select %p910, %s40, 1
        %s912 = smul.addr %s911, 4
        %s913 = smul.addr %s912, 4
        %s914 = scalar_lea.vmem %s13, %s913
        %p915 = pneg %p401
        %p916 = pneg %p398
        %p917 = scmp.lt.s32.totalorder %s40, 1
        %s918 = scalar_select %p917, %s40, 1
        %s919 = scalar_lea.vmem %s14, %s918
        %p920 = pneg %p427
        %p921 = pneg %p424
        %p922 = scmp.lt.s32.totalorder %s40, 1
        %s923 = scalar_select %p922, %s40, 1
        %s924 = smul.addr %s923, 4
        %s925 = smul.addr %s924, 4
        %s926 = scalar_lea.vmem %s15, %s925
        %p927 = pneg %p453
        %p928 = pneg %p450
        %p929 = scmp.lt.s32.totalorder %s40, 1
        %s930 = scalar_select %p929, %s40, 1
        %s931 = scalar_lea.vmem %s16, %s930
        %p932 = pneg %p479
        %p933 = pneg %p476
        %p934 = scmp.lt.s32.totalorder %s40, 1
        %s935 = scalar_select %p934, %s40, 1
        %s936 = smul.addr %s935, 4
        %s937 = smul.addr %s936, 4
        %s938 = scalar_lea.vmem %s17, %s937
        %p939 = pneg %p505
        %p940 = pneg %p502
        %p941 = scmp.lt.s32.totalorder %s40, 1
        %s942 = scalar_select %p941, %s40, 1
        %s943 = scalar_lea.vmem %s18, %s942
        %p944 = pneg %p531
        %p945 = pneg %p528
        %p946 = scmp.lt.s32.totalorder %s40, 1
        %s947 = scalar_select %p946, %s40, 1
        %s948 = smul.addr %s947, 8
        %s949 = smul.addr %s948, 4
        %s950 = scalar_lea.vmem %s19, %s949
        %p951 = pneg %p557
        %p952 = pneg %p554
        %p953 = scmp.lt.s32.totalorder %s40, 1
        %s954 = scalar_select %p953, %s40, 1
        %s955 = scalar_lea.vmem %s20, %s954
        %p956 = pneg %p583
        %p957 = pneg %p580
        %p958 = pneg %p604
        %p959 = pneg %p601
        %p960 = pneg %p625
        %p961 = pneg %p622
        %p962 = pneg %p651
        %p963 = pneg %p648
        %s964 = smul.u32 2, %s39
        %p965 = scmp.lt.s32.totalorder %s964, 1
        %s966 = scalar_select %p965, %s964, 1
        %s967 = smul.addr %s966, 8
        %s968 = scalar_lea.vmem %s0, %s967
        %s969 = smul.u32 2, %s39
        %s970 = smul.u32 2, %s39
        %p971 = scmp.lt.s32.totalorder %s970, 1
        %s972 = scalar_select %p971, %s970, 1
        %s973 = smul.addr %s972, 4
        %s974 = scalar_lea.vmem %s2, %s973
        %s975 = smul.u32 2, %s39
        %s976 = smul.u32 2, %s39
        %p977 = scmp.lt.s32.totalorder %s976, 1
        %s978 = scalar_select %p977, %s976, 1
        %s979 = scalar_lea.vmem %s3, %s978
        %s980 = smul.u32 2, %s39
        %s981 = smul.u32 2, %s39
        %p982 = scmp.lt.s32.totalorder %s981, 1
        %s983 = scalar_select %p982, %s981, 1
        %s984 = smul.addr %s983, 8
        %s985 = scalar_lea.vmem %s4, %s984
        %s986 = smul.u32 2, %s39
        %p987 = scmp.lt.s32.totalorder %s40, 1
        %s988 = scalar_select %p987, %s40, 1
        %s989 = smul.addr %s988, 4
        %s990 = scalar_lea.vmem %s5, %s989
        %p991 = scmp.lt.s32.totalorder %s40, 1
        %s992 = scalar_select %p991, %s40, 1
        %s993 = smul.addr %s992, 4
        %s994 = scalar_lea.vmem %s6, %s993
        %p995 = scmp.lt.s32.totalorder %s40, 1
        %s996 = scalar_select %p995, %s40, 1
        %s997 = smul.addr %s996, 4
        %s998 = smul.addr %s997, 4
        %s999 = scalar_lea.vmem %s7, %s998
        %p1000 = scmp.lt.s32.totalorder %s40, 1
        %s1001 = scalar_select %p1000, %s40, 1
        %s1002 = scalar_lea.vmem %s8, %s1001
        %p1003 = scmp.lt.s32.totalorder %s40, 1
        %s1004 = scalar_select %p1003, %s40, 1
        %s1005 = smul.addr %s1004, 4
        %s1006 = smul.addr %s1005, 4
        %s1007 = scalar_lea.vmem %s9, %s1006
        %p1008 = scmp.lt.s32.totalorder %s40, 1
        %s1009 = scalar_select %p1008, %s40, 1
        %s1010 = scalar_lea.vmem %s10, %s1009
        %p1011 = scmp.lt.s32.totalorder %s40, 1
        %s1012 = scalar_select %p1011, %s40, 1
        %s1013 = smul.addr %s1012, 4
        %s1014 = smul.addr %s1013, 4
        %s1015 = scalar_lea.vmem %s11, %s1014
        %p1016 = scmp.lt.s32.totalorder %s40, 1
        %s1017 = scalar_select %p1016, %s40, 1
        %s1018 = scalar_lea.vmem %s12, %s1017
        %p1019 = scmp.lt.s32.totalorder %s40, 1
        %s1020 = scalar_select %p1019, %s40, 1
        %s1021 = smul.addr %s1020, 4
        %s1022 = smul.addr %s1021, 4
        %s1023 = scalar_lea.vmem %s13, %s1022
        %p1024 = scmp.lt.s32.totalorder %s40, 1
        %s1025 = scalar_select %p1024, %s40, 1
        %s1026 = scalar_lea.vmem %s14, %s1025
        %p1027 = scmp.lt.s32.totalorder %s40, 1
        %s1028 = scalar_select %p1027, %s40, 1
        %s1029 = smul.addr %s1028, 4
        %s1030 = smul.addr %s1029, 4
        %s1031 = scalar_lea.vmem %s15, %s1030
        %p1032 = scmp.lt.s32.totalorder %s40, 1
        %s1033 = scalar_select %p1032, %s40, 1
        %s1034 = scalar_lea.vmem %s16, %s1033
        %p1035 = scmp.lt.s32.totalorder %s40, 1
        %s1036 = scalar_select %p1035, %s40, 1
        %s1037 = smul.addr %s1036, 4
        %s1038 = smul.addr %s1037, 4
        %s1039 = scalar_lea.vmem %s17, %s1038
        %p1040 = scmp.lt.s32.totalorder %s40, 1
        %s1041 = scalar_select %p1040, %s40, 1
        %s1042 = scalar_lea.vmem %s18, %s1041
        %p1043 = scmp.lt.s32.totalorder %s40, 1
        %s1044 = scalar_select %p1043, %s40, 1
        %s1045 = smul.addr %s1044, 8
        %s1046 = smul.addr %s1045, 4
        %s1047 = scalar_lea.vmem %s19, %s1046
        %p1048 = scmp.lt.s32.totalorder %s40, 1
        %s1049 = scalar_select %p1048, %s40, 1
        %s1050 = scalar_lea.vmem %s20, %s1049
        %s1051 = smul.u32 2, %s39
        %p1053 = scmp.eq.s32.totalorder %s40, 0
        // Predicated region
        $region113: #{decoder_forward.1} parent=111 // pred_check
          %p1054 = pneg %p1053
        $region114: #{decoder_forward.1} parent=111 // pred_check_branch
          %1056 = sbr.rel (%p1054) target = $region116
        $region115: #{decoder_forward.1} parent=111 // pred_region
          %v1057 = vld [vmem:[%s968] sm:$0xff]
          %v1058 = vld [vmem:[%s968 + $0x8] sm:$0xff]
          %v1059 = vmul.f32 %v1057, 5.656854
          %v1060 = vmul.f32 %v1058, 5.656854
          %v1061 = vld [vmem:[%s1] sm:$0xff]
          %v1062 = vadd.f32 %v1059, %v1061
          %v1063 = vadd.f32 %v1060, %v1061
          %vm1064 = vcmask 261120
          %1065 = vst.msk [vmem:[#allocation2] sm:$0xff] %vm1064, %v1062
          %1066 = vst.msk [vmem:[#allocation2 + $0x8] sm:$0xff] %vm1064, %v1063
        $region116: #{decoder_forward.1} parent=111 // pred_fallthru
          _
        %v1067 = vld [vmem:[#allocation2] sm:$0xff]
        %v1068 = vld [vmem:[#allocation2 + $0x8] sm:$0xff]
        %v1069 = vld [vmem:[%s990] sm:$0x1]
        %v1070 = vld [vmem:[%s994] sm:$0x1]
        %vm1071 = vcmask 261120
        %v1072 = vsel %vm1071, %v1067, 0.0
        %1073 = vadd.xlane.f32.xlu0 %v1072
        %v1074 = vpop.xlane.xlu0 %1073
        %v1075 = vsel %vm1071, %v1068, 0.0
        %1076 = vadd.xlane.f32.xlu0 %v1075
        %v1077 = vpop.xlane.xlu0 %1076
        %v1078 = vrcp.pop 32.0
        %v1079 = vmul.f32 32.0, %v1078
        %v1080 = vsub.f32 1.0, %v1079
        %v1081 = vmul.f32 %v1078, %v1080
        %v1082 = vadd.f32 %v1078, %v1081
        %vm1083 = vweird.f32 %v1078
        %v1084 = vsel %vm1083, %v1078, %v1082
        %v1085 = vmul.f32 %v1074, %v1084
        %v1086 = vmul.f32 %v1077, %v1084
        %v1087 = vsub.f32 %v1067, %v1085
        %v1088 = vsub.f32 %v1068, %v1086
        %v1089 = vmul.f32 %v1087, %v1087
        %v1090 = vmul.f32 %v1088, %v1088
        %v1091 = vsel %vm1071, %v1089, 0.0
        %1092 = vadd.xlane.f32.xlu0 %v1091
        %v1093 = vpop.xlane.xlu0 %1092
        %v1094 = vsel %vm1071, %v1090, 0.0
        %1095 = vadd.xlane.f32.xlu0 %v1094
        %v1096 = vpop.xlane.xlu0 %1095
        %v1097 = vmul.f32 %v1093, 0.032258064
        %v1098 = vmul.f32 %v1096, 0.032258064
        %v1099 = vrsqrt.pop %v1097
        %v1100 = vmul.f32 %v1099, %v1097
        %v1101 = vmul.f32 %v1100, %v1099
        %v1102 = vmul.f32 0.5, %v1101
        %v1103 = vsub.f32 1.5, %v1102
        %v1104 = vmul.f32 %v1099, %v1103
        %v1105 = vmul.f32 %v1097, %v1104
        %vm1106 = vcmp.eq.f32.partialorder %v1097, inf
        %v1107 = vsel %vm1106, %v1097, %v1105
        %vm1108 = vcmp.eq.f32.partialorder %v1097, 0.0
        %v1109 = vand.u32 %v1097, 2147483648
        %v1110 = vsel %vm1108, %v1109, %v1107
        %v1111 = vrsqrt.pop %v1098
        %v1112 = vmul.f32 %v1111, %v1098
        %v1113 = vmul.f32 %v1112, %v1111
        %v1114 = vmul.f32 0.5, %v1113
        %v1115 = vsub.f32 1.5, %v1114
        %v1116 = vmul.f32 %v1111, %v1115
        %v1117 = vmul.f32 %v1098, %v1116
        %vm1118 = vcmp.eq.f32.partialorder %v1098, inf
        %v1119 = vsel %vm1118, %v1098, %v1117
        %vm1120 = vcmp.eq.f32.partialorder %v1098, 0.0
        %v1121 = vand.u32 %v1098, 2147483648
        %v1122 = vsel %vm1120, %v1121, %v1119
        %v1123 = vadd.f32 %v1110, 1e-06
        %v1124 = vadd.f32 %v1122, 1e-06
        %v1125 = vrcp.pop %v1123
        %v1126 = vmul.f32 %v1123, %v1125
        %v1127 = vsub.f32 1.0, %v1126
        %v1128 = vmul.f32 %v1125, %v1127
        %v1129 = vadd.f32 %v1125, %v1128
        %vm1130 = vweird.f32 %v1123
        %vm1131 = vweird.f32 %v1125
        %vm1132 = vmor %vm1130, %vm1131
        %v1133 = vsel %vm1132, %v1125, %v1129
        %v1134 = vand.u32 2147483647, %v1123
        %vm1135 = vcmp.eq.f32.partialorder %v1134, 8.507059e+37
        %v1136 = vand.u32 %v1123, 2147483648
        %v1137 = vor.u32 1.1754944e-38, %v1136
        %v1138 = vsel %vm1135, %v1137, %v1133
        %v1139 = vmul.f32 %v1087, %v1138
        %v1140 = vrcp.pop %v1124
        %v1141 = vmul.f32 %v1124, %v1140
        %v1142 = vsub.f32 1.0, %v1141
        %v1143 = vmul.f32 %v1140, %v1142
        %v1144 = vadd.f32 %v1140, %v1143
        %vm1145 = vweird.f32 %v1124
        %vm1146 = vweird.f32 %v1140
        %vm1147 = vmor %vm1145, %vm1146
        %v1148 = vsel %vm1147, %v1140, %v1144
        %v1149 = vand.u32 2147483647, %v1124
        %vm1150 = vcmp.eq.f32.partialorder %v1149, 8.507059e+37
        %v1151 = vand.u32 %v1124, 2147483648
        %v1152 = vor.u32 1.1754944e-38, %v1151
        %v1153 = vsel %vm1150, %v1152, %v1148
        %v1154 = vmul.f32 %v1088, %v1153
        %v1155 = vperm.slane %v1069, 0
        %v1156 = vmul.f32 %v1155, %v1139
        %v1157 = vmul.f32 %v1155, %v1154
        %v1158 = vperm.slane %v1070, 0
        %v1159 = vadd.f32 %v1156, %v1158
        %v1160 = vadd.f32 %v1157, %v1158
        %v1161 = vpack.c.bf16 %v1160, %v1159
        %v1162 = vld [vmem:[%s999] sm:$0xf]
        %v1163 = vld [vmem:[%s999 + $0x4] sm:$0xf]
        %v1164 = vld [vmem:[%s999 + $0x8] sm:$0xf]
        %v1165 = vld [vmem:[%s999 + $0xc] sm:$0xf]
        %v1166 = vld [vmem:[%s1002] sm:$0x1]
        %v1168 = vperm.slane %v1166, 0
        %v1174 = vunpack.c.l.b16 %v1162
        %v1175 = vunpack.c.l.b16 %v1163
        %v1176 = vunpack.c.l.b16 %v1164
        %v1177 = vunpack.c.l.b16 %v1165
        %v1178 = vpack.c.b16 %v1175, %v1174
        %v1179 = vpack.c.b16 %v1177, %v1176
        %v1183 = vsel %vm1071, %v1161, 0
        %1185 = vmatpush.bf16.msra.mxu0 0
        %1186 = vmatpush.bf16.msra.mxu0 0
        %1187 = vmatpush.bf16.msra.mxu0 0
        %1188 = vmatpush.bf16.msra.mxu0 0
        %1189 = vmatpush.bf16.msra.mxu0 0
        %1190 = vmatpush.bf16.msra.mxu0 0
        %1191 = vmatpush.bf16.msra.mxu0 %v1179
        %1192 = vmatpush.bf16.msra.mxu0 %v1178
        %1193 = vmatmul.bf16.gmra.mxu0 %v1183
        %v1194 = vpop.f32.mrf.mxu0
        %v1195 = vadd.f32 %v1168, %v1194
        %v1196 = vpop.f32.mrf.mxu0
        %v1197 = vadd.f32 %v1168, %v1196
        %1198 = vdwg.mxu0
        %v1199 = vld [vmem:[%s1010] sm:$0x1]
        %v1200 = vld [vmem:[%s985] sm:$0xff]
        %v1201 = vpack.c.bf16 %v1195, %v1195
        %1203 = vrot.lane.b32.xlu0 %v1201, 96
        %v1204 = vpop.permute.xlu0 %1203
        %vm1205 = vcmask 64512
        %v1207 = vsel %vm1205, %v1201, 0
        %v1210 = vsel %vm1205, %v1204, 0
        %1212 = vmatpush.bf16.xpose.msra.mxu0 0
        %1213 = vmatpush.bf16.xpose.msra.mxu0 0
        %1214 = vmatpush.bf16.xpose.msra.mxu0 0
        %1215 = vmatpush.bf16.xpose.msra.mxu0 0
        %1216 = vmatpush.bf16.xpose.msra.mxu0 0
        %1217 = vmatpush.bf16.xpose.msra.mxu0 0
        %1218 = vmatpush.bf16.xpose.msra.mxu0 0
        %1219 = vmatpush.bf16.xpose.msra.mxu0 %v1210
        %1220 = vmatmul.bf16.gmra.mxu0 %v1207
        %v1221 = vpop.f32.mrf.mxu0
        %v1222 = vadd.f32 %v1200, %v1221
        %v1223 = vpop.f32.mrf.mxu0
        %1224 = vdwg.mxu0
        %v1225 = vsel %vm1205, %v1222, -inf
        %1226 = vmax.xlane.f32.xlu0 %v1225
        %v1227 = vpop.xlane.xlu0 %1226
        %v1228 = vsub.f32 %v1222, %v1227
        %v1229 = vmul.f32 %v1228, 1.442695
        %v1230 = vpow.pop %v1229
        %v1231 = vsel %vm1205, %v1230, 0.0
        %1232 = vadd.xlane.f32.xlu0 %v1231
        %v1233 = vpop.xlane.xlu0 %1232
        %v1234 = vrcp.pop %v1233
        %v1235 = vmul.f32 %v1230, %v1234
        %v1236 = vpack.c.bf16 %v1235, %v1235
        %1237 = vrot.lane.b32.xlu0 %v1201, 64
        %v1238 = vpop.permute.xlu0 %1237
        %v1240 = vsel %vm1205, %v1236, 0
        %vm1242 = vcmask 1043456
        %v1244 = vsel %vm1242, %v1238, 0
        %1246 = vmatpush.bf16.msra.mxu0 0
        %1247 = vmatpush.bf16.msra.mxu0 0
        %1248 = vmatpush.bf16.msra.mxu0 0
        %1249 = vmatpush.bf16.msra.mxu0 0
        %1250 = vmatpush.bf16.msra.mxu0 0
        %1251 = vmatpush.bf16.msra.mxu0 0
        %1252 = vmatpush.bf16.msra.mxu0 0
        %1253 = vmatpush.bf16.msra.mxu0 %v1244
        %1254 = vmatmul.bf16.gmra.mxu0 %v1240
        %v1255 = vpop.f32.mrf.mxu0
        %v1256 = vadd.f32 0.0, %v1255
        %v1257 = vpop.f32.mrf.mxu0
        %1258 = vdwg.mxu0
        %1259 = vrot.lane.b32.xlu0 %v1201, 120
        %v1260 = vpop.permute.xlu0 %1259
        %1261 = vrot.lane.b32.xlu0 %v1201, 88
        %v1262 = vpop.permute.xlu0 %1261
        %v1264 = vsel %vm1205, %v1260, 0
        %v1267 = vsel %vm1205, %v1262, 0
        %1269 = vmatpush.bf16.xpose.msra.mxu0 0
        %1270 = vmatpush.bf16.xpose.msra.mxu0 0
        %1271 = vmatpush.bf16.xpose.msra.mxu0 0
        %1272 = vmatpush.bf16.xpose.msra.mxu0 0
        %1273 = vmatpush.bf16.xpose.msra.mxu0 0
        %1274 = vmatpush.bf16.xpose.msra.mxu0 0
        %1275 = vmatpush.bf16.xpose.msra.mxu0 0
        %1276 = vmatpush.bf16.xpose.msra.mxu0 %v1267
        %1277 = vmatmul.bf16.gmra.mxu0 %v1264
        %v1278 = vpop.f32.mrf.mxu0
        %v1279 = vadd.f32 %v1200, %v1278
        %v1280 = vpop.f32.mrf.mxu0
        %1281 = vdwg.mxu0
        %v1282 = vsel %vm1205, %v1279, -inf
        %1283 = vmax.xlane.f32.xlu0 %v1282
        %v1284 = vpop.xlane.xlu0 %1283
        %v1285 = vsub.f32 %v1279, %v1284
        %v1286 = vmul.f32 %v1285, 1.442695
        %v1287 = vpow.pop %v1286
        %v1288 = vsel %vm1205, %v1287, 0.0
        %1289 = vadd.xlane.f32.xlu0 %v1288
        %v1290 = vpop.xlane.xlu0 %1289
        %v1291 = vrcp.pop %v1290
        %v1292 = vmul.f32 %v1287, %v1291
        %v1293 = vpack.c.bf16 %v1292, %v1292
        %1294 = vrot.lane.b32.xlu0 %v1201, 56
        %v1295 = vpop.permute.xlu0 %1294
        %v1297 = vsel %vm1205, %v1293, 0
        %v1300 = vsel %vm1242, %v1295, 0
        %1302 = vmatpush.bf16.msra.mxu0 0
        %1303 = vmatpush.bf16.msra.mxu0 0
        %1304 = vmatpush.bf16.msra.mxu0 0
        %1305 = vmatpush.bf16.msra.mxu0 0
        %1306 = vmatpush.bf16.msra.mxu0 0
        %1307 = vmatpush.bf16.msra.mxu0 0
        %1308 = vmatpush.bf16.msra.mxu0 0
        %1309 = vmatpush.bf16.msra.mxu0 %v1300
        %1310 = vmatmul.bf16.gmra.mxu0 %v1297
        %v1311 = vpop.f32.mrf.mxu0
        %v1312 = vadd.f32 0.0, %v1311
        %v1313 = vpop.f32.mrf.mxu0
        %1314 = vdwg.mxu0
        %1315 = vrot.lane.b32.xlu0 %v1201, 112
        %v1316 = vpop.permute.xlu0 %1315
        %1317 = vrot.lane.b32.xlu0 %v1201, 80
        %v1318 = vpop.permute.xlu0 %1317
        %v1320 = vsel %vm1205, %v1316, 0
        %v1323 = vsel %vm1205, %v1318, 0
        %1325 = vmatpush.bf16.xpose.msra.mxu0 0
        %1326 = vmatpush.bf16.xpose.msra.mxu0 0
        %1327 = vmatpush.bf16.xpose.msra.mxu0 0
        %1328 = vmatpush.bf16.xpose.msra.mxu0 0
        %1329 = vmatpush.bf16.xpose.msra.mxu0 0
        %1330 = vmatpush.bf16.xpose.msra.mxu0 0
        %1331 = vmatpush.bf16.xpose.msra.mxu0 0
        %1332 = vmatpush.bf16.xpose.msra.mxu0 %v1323
        %1333 = vmatmul.bf16.gmra.mxu0 %v1320
        %v1334 = vpop.f32.mrf.mxu0
        %v1335 = vadd.f32 %v1200, %v1334
        %v1336 = vpop.f32.mrf.mxu0
        %1337 = vdwg.mxu0
        %v1338 = vsel %vm1205, %v1335, -inf
        %1339 = vmax.xlane.f32.xlu0 %v1338
        %v1340 = vpop.xlane.xlu0 %1339
        %v1341 = vsub.f32 %v1335, %v1340
        %v1342 = vmul.f32 %v1341, 1.442695
        %v1343 = vpow.pop %v1342
        %v1344 = vsel %vm1205, %v1343, 0.0
        %1345 = vadd.xlane.f32.xlu0 %v1344
        %v1346 = vpop.xlane.xlu0 %1345
        %v1347 = vrcp.pop %v1346
        %v1348 = vmul.f32 %v1343, %v1347
        %v1349 = vpack.c.bf16 %v1348, %v1348
        %1350 = vrot.lane.b32.xlu0 %v1201, 48
        %v1351 = vpop.permute.xlu0 %1350
        %v1353 = vsel %vm1205, %v1349, 0
        %v1356 = vsel %vm1242, %v1351, 0
        %1358 = vmatpush.bf16.msra.mxu0 0
        %1359 = vmatpush.bf16.msra.mxu0 0
        %1360 = vmatpush.bf16.msra.mxu0 0
        %1361 = vmatpush.bf16.msra.mxu0 0
        %1362 = vmatpush.bf16.msra.mxu0 0
        %1363 = vmatpush.bf16.msra.mxu0 0
        %1364 = vmatpush.bf16.msra.mxu0 0
        %1365 = vmatpush.bf16.msra.mxu0 %v1356
        %1366 = vmatmul.bf16.gmra.mxu0 %v1353
        %v1367 = vpop.f32.mrf.mxu0
        %v1368 = vadd.f32 0.0, %v1367
        %v1369 = vpop.f32.mrf.mxu0
        %1370 = vdwg.mxu0
        %1371 = vrot.lane.b32.xlu0 %v1201, 104
        %v1372 = vpop.permute.xlu0 %1371
        %1373 = vrot.lane.b32.xlu0 %v1201, 72
        %v1374 = vpop.permute.xlu0 %1373
        %v1376 = vsel %vm1205, %v1372, 0
        %v1379 = vsel %vm1205, %v1374, 0
        %1381 = vmatpush.bf16.xpose.msra.mxu0 0
        %1382 = vmatpush.bf16.xpose.msra.mxu0 0
        %1383 = vmatpush.bf16.xpose.msra.mxu0 0
        %1384 = vmatpush.bf16.xpose.msra.mxu0 0
        %1385 = vmatpush.bf16.xpose.msra.mxu0 0
        %1386 = vmatpush.bf16.xpose.msra.mxu0 0
        %1387 = vmatpush.bf16.xpose.msra.mxu0 0
        %1388 = vmatpush.bf16.xpose.msra.mxu0 %v1379
        %1389 = vmatmul.bf16.gmra.mxu0 %v1376
        %v1390 = vpop.f32.mrf.mxu0
        %v1391 = vadd.f32 %v1200, %v1390
        %v1392 = vpop.f32.mrf.mxu0
        %1393 = vdwg.mxu0
        %v1394 = vsel %vm1205, %v1391, -inf
        %1395 = vmax.xlane.f32.xlu0 %v1394
        %v1396 = vpop.xlane.xlu0 %1395
        %v1397 = vsub.f32 %v1391, %v1396
        %v1398 = vmul.f32 %v1397, 1.442695
        %v1399 = vpow.pop %v1398
        %v1400 = vsel %vm1205, %v1399, 0.0
        %1401 = vadd.xlane.f32.xlu0 %v1400
        %v1402 = vpop.xlane.xlu0 %1401
        %v1403 = vrcp.pop %v1402
        %v1404 = vmul.f32 %v1399, %v1403
        %v1405 = vpack.c.bf16 %v1404, %v1404
        %1406 = vrot.lane.b32.xlu0 %v1201, 40
        %v1407 = vpop.permute.xlu0 %1406
        %v1409 = vsel %vm1205, %v1405, 0
        %v1412 = vsel %vm1242, %v1407, 0
        %1414 = vmatpush.bf16.msra.mxu0 0
        %1415 = vmatpush.bf16.msra.mxu0 0
        %1416 = vmatpush.bf16.msra.mxu0 0
        %1417 = vmatpush.bf16.msra.mxu0 0
        %1418 = vmatpush.bf16.msra.mxu0 0
        %1419 = vmatpush.bf16.msra.mxu0 0
        %1420 = vmatpush.bf16.msra.mxu0 0
        %1421 = vmatpush.bf16.msra.mxu0 %v1412
        %1422 = vmatmul.bf16.gmra.mxu0 %v1409
        %v1423 = vpop.f32.mrf.mxu0
        %v1424 = vadd.f32 0.0, %v1423
        %v1425 = vpop.f32.mrf.mxu0
        %1426 = vdwg.mxu0
        %1428 = vrot.lane.b32.xlu0 %v1312, 8
        %v1429 = vpop.permute.xlu0 %1428
        %1432 = vrot.lane.b32.xlu0 %v1368, 16
        %v1433 = vpop.permute.xlu0 %1432
        %1436 = vrot.lane.b32.xlu0 %v1424, 24
        %v1437 = vpop.permute.xlu0 %1436
        %v1439 = vsel %vm1205, %v1256, %v1429
        %vm1440 = vcmask 130048
        %v1441 = vsel %vm1440, %v1439, %v1433
        %vm1442 = vcmask 195584
        %v1443 = vsel %vm1442, %v1441, %v1437
        %s1444 = scalar_lea.vmem %s985, 8
        %v1445 = vld [vmem:[%s1444] sm:$0xff]
        %v1446 = vpack.c.bf16 %v1197, %v1197
        %1448 = vrot.lane.b32.xlu0 %v1446, 96
        %v1449 = vpop.permute.xlu0 %1448
        %v1451 = vsel %vm1205, %v1446, 0
        %v1454 = vsel %vm1205, %v1449, 0
        %1456 = vmatpush.bf16.xpose.msra.mxu0 0
        %1457 = vmatpush.bf16.xpose.msra.mxu0 0
        %1458 = vmatpush.bf16.xpose.msra.mxu0 0
        %1459 = vmatpush.bf16.xpose.msra.mxu0 0
        %1460 = vmatpush.bf16.xpose.msra.mxu0 0
        %1461 = vmatpush.bf16.xpose.msra.mxu0 0
        %1462 = vmatpush.bf16.xpose.msra.mxu0 0
        %1463 = vmatpush.bf16.xpose.msra.mxu0 %v1454
        %1464 = vmatmul.bf16.gmra.mxu0 %v1451
        %v1465 = vpop.f32.mrf.mxu0
        %v1466 = vadd.f32 %v1445, %v1465
        %v1467 = vpop.f32.mrf.mxu0
        %1468 = vdwg.mxu0
        %v1469 = vsel %vm1205, %v1466, -inf
        %1470 = vmax.xlane.f32.xlu0 %v1469
        %v1471 = vpop.xlane.xlu0 %1470
        %v1472 = vsub.f32 %v1466, %v1471
        %v1473 = vmul.f32 %v1472, 1.442695
        %v1474 = vpow.pop %v1473
        %v1475 = vsel %vm1205, %v1474, 0.0
        %1476 = vadd.xlane.f32.xlu0 %v1475
        %v1477 = vpop.xlane.xlu0 %1476
        %v1478 = vrcp.pop %v1477
        %v1479 = vmul.f32 %v1474, %v1478
        %v1480 = vpack.c.bf16 %v1479, %v1479
        %1481 = vrot.lane.b32.xlu0 %v1446, 64
        %v1482 = vpop.permute.xlu0 %1481
        %v1484 = vsel %vm1205, %v1480, 0
        %v1487 = vsel %vm1242, %v1482, 0
        %1489 = vmatpush.bf16.msra.mxu0 0
        %1490 = vmatpush.bf16.msra.mxu0 0
        %1491 = vmatpush.bf16.msra.mxu0 0
        %1492 = vmatpush.bf16.msra.mxu0 0
        %1493 = vmatpush.bf16.msra.mxu0 0
        %1494 = vmatpush.bf16.msra.mxu0 0
        %1495 = vmatpush.bf16.msra.mxu0 0
        %1496 = vmatpush.bf16.msra.mxu0 %v1487
        %1497 = vmatmul.bf16.gmra.mxu0 %v1484
        %v1498 = vpop.f32.mrf.mxu0
        %v1499 = vadd.f32 0.0, %v1498
        %v1500 = vpop.f32.mrf.mxu0
        %1501 = vdwg.mxu0
        %1502 = vrot.lane.b32.xlu0 %v1446, 120
        %v1503 = vpop.permute.xlu0 %1502
        %1504 = vrot.lane.b32.xlu0 %v1446, 88
        %v1505 = vpop.permute.xlu0 %1504
        %v1507 = vsel %vm1205, %v1503, 0
        %v1510 = vsel %vm1205, %v1505, 0
        %1512 = vmatpush.bf16.xpose.msra.mxu0 0
        %1513 = vmatpush.bf16.xpose.msra.mxu0 0
        %1514 = vmatpush.bf16.xpose.msra.mxu0 0
        %1515 = vmatpush.bf16.xpose.msra.mxu0 0
        %1516 = vmatpush.bf16.xpose.msra.mxu0 0
        %1517 = vmatpush.bf16.xpose.msra.mxu0 0
        %1518 = vmatpush.bf16.xpose.msra.mxu0 0
        %1519 = vmatpush.bf16.xpose.msra.mxu0 %v1510
        %1520 = vmatmul.bf16.gmra.mxu0 %v1507
        %v1521 = vpop.f32.mrf.mxu0
        %v1522 = vadd.f32 %v1445, %v1521
        %v1523 = vpop.f32.mrf.mxu0
        %1524 = vdwg.mxu0
        %v1525 = vsel %vm1205, %v1522, -inf
        %1526 = vmax.xlane.f32.xlu0 %v1525
        %v1527 = vpop.xlane.xlu0 %1526
        %v1528 = vsub.f32 %v1522, %v1527
        %v1529 = vmul.f32 %v1528, 1.442695
        %v1530 = vpow.pop %v1529
        %v1531 = vsel %vm1205, %v1530, 0.0
        %1532 = vadd.xlane.f32.xlu0 %v1531
        %v1533 = vpop.xlane.xlu0 %1532
        %v1534 = vrcp.pop %v1533
        %v1535 = vmul.f32 %v1530, %v1534
        %v1536 = vpack.c.bf16 %v1535, %v1535
        %1537 = vrot.lane.b32.xlu0 %v1446, 56
        %v1538 = vpop.permute.xlu0 %1537
        %v1540 = vsel %vm1205, %v1536, 0
        %v1543 = vsel %vm1242, %v1538, 0
        %1545 = vmatpush.bf16.msra.mxu0 0
        %1546 = vmatpush.bf16.msra.mxu0 0
        %1547 = vmatpush.bf16.msra.mxu0 0
        %1548 = vmatpush.bf16.msra.mxu0 0
        %1549 = vmatpush.bf16.msra.mxu0 0
        %1550 = vmatpush.bf16.msra.mxu0 0
        %1551 = vmatpush.bf16.msra.mxu0 0
        %1552 = vmatpush.bf16.msra.mxu0 %v1543
        %1553 = vmatmul.bf16.gmra.mxu0 %v1540
        %v1554 = vpop.f32.mrf.mxu0
        %v1555 = vadd.f32 0.0, %v1554
        %v1556 = vpop.f32.mrf.mxu0
        %1557 = vdwg.mxu0
        %1558 = vrot.lane.b32.xlu0 %v1446, 112
        %v1559 = vpop.permute.xlu0 %1558
        %1560 = vrot.lane.b32.xlu0 %v1446, 80
        %v1561 = vpop.permute.xlu0 %1560
        %v1563 = vsel %vm1205, %v1559, 0
        %v1566 = vsel %vm1205, %v1561, 0
        %1568 = vmatpush.bf16.xpose.msra.mxu0 0
        %1569 = vmatpush.bf16.xpose.msra.mxu0 0
        %1570 = vmatpush.bf16.xpose.msra.mxu0 0
        %1571 = vmatpush.bf16.xpose.msra.mxu0 0
        %1572 = vmatpush.bf16.xpose.msra.mxu0 0
        %1573 = vmatpush.bf16.xpose.msra.mxu0 0
        %1574 = vmatpush.bf16.xpose.msra.mxu0 0
        %1575 = vmatpush.bf16.xpose.msra.mxu0 %v1566
        %1576 = vmatmul.bf16.gmra.mxu0 %v1563
        %v1577 = vpop.f32.mrf.mxu0
        %v1578 = vadd.f32 %v1445, %v1577
        %v1579 = vpop.f32.mrf.mxu0
        %1580 = vdwg.mxu0
        %v1581 = vsel %vm1205, %v1578, -inf
        %1582 = vmax.xlane.f32.xlu0 %v1581
        %v1583 = vpop.xlane.xlu0 %1582
        %v1584 = vsub.f32 %v1578, %v1583
        %v1585 = vmul.f32 %v1584, 1.442695
        %v1586 = vpow.pop %v1585
        %v1587 = vsel %vm1205, %v1586, 0.0
        %1588 = vadd.xlane.f32.xlu0 %v1587
        %v1589 = vpop.xlane.xlu0 %1588
        %v1590 = vrcp.pop %v1589
        %v1591 = vmul.f32 %v1586, %v1590
        %v1592 = vpack.c.bf16 %v1591, %v1591
        %1593 = vrot.lane.b32.xlu0 %v1446, 48
        %v1594 = vpop.permute.xlu0 %1593
        %v1596 = vsel %vm1205, %v1592, 0
        %v1599 = vsel %vm1242, %v1594, 0
        %1601 = vmatpush.bf16.msra.mxu0 0
        %1602 = vmatpush.bf16.msra.mxu0 0
        %1603 = vmatpush.bf16.msra.mxu0 0
        %1604 = vmatpush.bf16.msra.mxu0 0
        %1605 = vmatpush.bf16.msra.mxu0 0
        %1606 = vmatpush.bf16.msra.mxu0 0
        %1607 = vmatpush.bf16.msra.mxu0 0
        %1608 = vmatpush.bf16.msra.mxu0 %v1599
        %1609 = vmatmul.bf16.gmra.mxu0 %v1596
        %v1610 = vpop.f32.mrf.mxu0
        %v1611 = vadd.f32 0.0, %v1610
        %v1612 = vpop.f32.mrf.mxu0
        %1613 = vdwg.mxu0
        %1614 = vrot.lane.b32.xlu0 %v1446, 104
        %v1615 = vpop.permute.xlu0 %1614
        %1616 = vrot.lane.b32.xlu0 %v1446, 72
        %v1617 = vpop.permute.xlu0 %1616
        %v1619 = vsel %vm1205, %v1615, 0
        %v1622 = vsel %vm1205, %v1617, 0
        %1624 = vmatpush.bf16.xpose.msra.mxu0 0
        %1625 = vmatpush.bf16.xpose.msra.mxu0 0
        %1626 = vmatpush.bf16.xpose.msra.mxu0 0
        %1627 = vmatpush.bf16.xpose.msra.mxu0 0
        %1628 = vmatpush.bf16.xpose.msra.mxu0 0
        %1629 = vmatpush.bf16.xpose.msra.mxu0 0
        %1630 = vmatpush.bf16.xpose.msra.mxu0 0
        %1631 = vmatpush.bf16.xpose.msra.mxu0 %v1622
        %1632 = vmatmul.bf16.gmra.mxu0 %v1619
        %v1633 = vpop.f32.mrf.mxu0
        %v1634 = vadd.f32 %v1445, %v1633
        %v1635 = vpop.f32.mrf.mxu0
        %1636 = vdwg.mxu0
        %v1637 = vsel %vm1205, %v1634, -inf
        %1638 = vmax.xlane.f32.xlu0 %v1637
        %v1639 = vpop.xlane.xlu0 %1638
        %v1640 = vsub.f32 %v1634, %v1639
        %v1641 = vmul.f32 %v1640, 1.442695
        %v1642 = vpow.pop %v1641
        %v1643 = vsel %vm1205, %v1642, 0.0
        %1644 = vadd.xlane.f32.xlu0 %v1643
        %v1645 = vpop.xlane.xlu0 %1644
        %v1646 = vrcp.pop %v1645
        %v1647 = vmul.f32 %v1642, %v1646
        %v1648 = vpack.c.bf16 %v1647, %v1647
        %1649 = vrot.lane.b32.xlu0 %v1446, 40
        %v1650 = vpop.permute.xlu0 %1649
        %v1652 = vsel %vm1205, %v1648, 0
        %v1655 = vsel %vm1242, %v1650, 0
        %1657 = vmatpush.bf16.msra.mxu0 0
        %1658 = vmatpush.bf16.msra.mxu0 0
        %1659 = vmatpush.bf16.msra.mxu0 0
        %1660 = vmatpush.bf16.msra.mxu0 0
        %1661 = vmatpush.bf16.msra.mxu0 0
        %1662 = vmatpush.bf16.msra.mxu0 0
        %1663 = vmatpush.bf16.msra.mxu0 0
        %1664 = vmatpush.bf16.msra.mxu0 %v1655
        %1665 = vmatmul.bf16.gmra.mxu0 %v1652
        %v1666 = vpop.f32.mrf.mxu0
        %v1667 = vadd.f32 0.0, %v1666
        %v1668 = vpop.f32.mrf.mxu0
        %1669 = vdwg.mxu0
        %1671 = vrot.lane.b32.xlu0 %v1555, 8
        %v1672 = vpop.permute.xlu0 %1671
        %1675 = vrot.lane.b32.xlu0 %v1611, 16
        %v1676 = vpop.permute.xlu0 %1675
        %1679 = vrot.lane.b32.xlu0 %v1667, 24
        %v1680 = vpop.permute.xlu0 %1679
        %v1682 = vsel %vm1205, %v1499, %v1672
        %v1683 = vsel %vm1440, %v1682, %v1676
        %v1684 = vsel %vm1442, %v1683, %v1680
        %v1685 = vpack.c.bf16 %v1684, %v1443
        %v1686 = vld [vmem:[%s1007] sm:$0xf]
        %v1687 = vld [vmem:[%s1007 + $0x4] sm:$0xf]
        %v1688 = vld [vmem:[%s1007 + $0x8] sm:$0xf]
        %v1689 = vld [vmem:[%s1007 + $0xc] sm:$0xf]
        %v1691 = vperm.slane %v1199, 0
        %v1697 = vunpack.c.l.b16 %v1686
        %v1698 = vunpack.c.l.b16 %v1687
        %v1699 = vunpack.c.l.b16 %v1688
        %v1700 = vunpack.c.l.b16 %v1689
        %v1701 = vpack.c.b16 %v1698, %v1697
        %v1702 = vpack.c.b16 %v1700, %v1699
        %v1706 = vsel %vm1071, %v1685, 0
        %1708 = vmatpush.bf16.msra.mxu0 0
        %1709 = vmatpush.bf16.msra.mxu0 0
        %1710 = vmatpush.bf16.msra.mxu0 0
        %1711 = vmatpush.bf16.msra.mxu0 0
        %1712 = vmatpush.bf16.msra.mxu0 0
        %1713 = vmatpush.bf16.msra.mxu0 0
        %1714 = vmatpush.bf16.msra.mxu0 %v1702
        %1715 = vmatpush.bf16.msra.mxu0 %v1701
        %1716 = vmatmul.bf16.gmra.mxu0 %v1706
        %v1717 = vpop.f32.mrf.mxu0
        %v1718 = vadd.f32 %v1691, %v1717
        %v1719 = vpop.f32.mrf.mxu0
        %v1720 = vadd.f32 %v1691, %v1719
        %1721 = vdwg.mxu0
        %v1722 = vadd.f32 %v1067, %v1718
        %v1723 = vadd.f32 %v1068, %v1720
        %v1724 = vld [vmem:[%s990 + $0x1] sm:$0x1]
        %v1725 = vld [vmem:[%s994 + $0x1] sm:$0x1]
        %v1726 = vsel %vm1071, %v1722, 0.0
        %1727 = vadd.xlane.f32.xlu0 %v1726
        %v1728 = vpop.xlane.xlu0 %1727
        %v1729 = vsel %vm1071, %v1723, 0.0
        %1730 = vadd.xlane.f32.xlu0 %v1729
        %v1731 = vpop.xlane.xlu0 %1730
        %v1732 = vmul.f32 %v1728, %v1084
        %v1733 = vmul.f32 %v1731, %v1084
        %v1734 = vsub.f32 %v1722, %v1732
        %v1735 = vsub.f32 %v1723, %v1733
        %v1736 = vmul.f32 %v1734, %v1734
        %v1737 = vmul.f32 %v1735, %v1735
        %v1738 = vsel %vm1071, %v1736, 0.0
        %1739 = vadd.xlane.f32.xlu0 %v1738
        %v1740 = vpop.xlane.xlu0 %1739
        %v1741 = vsel %vm1071, %v1737, 0.0
        %1742 = vadd.xlane.f32.xlu0 %v1741
        %v1743 = vpop.xlane.xlu0 %1742
        %v1744 = vmul.f32 %v1740, 0.032258064
        %v1745 = vmul.f32 %v1743, 0.032258064
        %v1746 = vrsqrt.pop %v1744
        %v1747 = vmul.f32 %v1746, %v1744
        %v1748 = vmul.f32 %v1747, %v1746
        %v1749 = vmul.f32 0.5, %v1748
        %v1750 = vsub.f32 1.5, %v1749
        %v1751 = vmul.f32 %v1746, %v1750
        %v1752 = vmul.f32 %v1744, %v1751
        %vm1753 = vcmp.eq.f32.partialorder %v1744, inf
        %v1754 = vsel %vm1753, %v1744, %v1752
        %vm1755 = vcmp.eq.f32.partialorder %v1744, 0.0
        %v1756 = vand.u32 %v1744, 2147483648
        %v1757 = vsel %vm1755, %v1756, %v1754
        %v1758 = vrsqrt.pop %v1745
        %v1759 = vmul.f32 %v1758, %v1745
        %v1760 = vmul.f32 %v1759, %v1758
        %v1761 = vmul.f32 0.5, %v1760
        %v1762 = vsub.f32 1.5, %v1761
        %v1763 = vmul.f32 %v1758, %v1762
        %v1764 = vmul.f32 %v1745, %v1763
        %vm1765 = vcmp.eq.f32.partialorder %v1745, inf
        %v1766 = vsel %vm1765, %v1745, %v1764
        %vm1767 = vcmp.eq.f32.partialorder %v1745, 0.0
        %v1768 = vand.u32 %v1745, 2147483648
        %v1769 = vsel %vm1767, %v1768, %v1766
        %v1770 = vadd.f32 %v1757, 1e-06
        %v1771 = vadd.f32 %v1769, 1e-06
        %v1772 = vrcp.pop %v1770
        %v1773 = vmul.f32 %v1770, %v1772
        %v1774 = vsub.f32 1.0, %v1773
        %v1775 = vmul.f32 %v1772, %v1774
        %v1776 = vadd.f32 %v1772, %v1775
        %vm1777 = vweird.f32 %v1770
        %vm1778 = vweird.f32 %v1772
        %vm1779 = vmor %vm1777, %vm1778
        %v1780 = vsel %vm1779, %v1772, %v1776
        %v1781 = vand.u32 2147483647, %v1770
        %vm1782 = vcmp.eq.f32.partialorder %v1781, 8.507059e+37
        %v1783 = vand.u32 %v1770, 2147483648
        %v1784 = vor.u32 1.1754944e-38, %v1783
        %v1785 = vsel %vm1782, %v1784, %v1780
        %v1786 = vmul.f32 %v1734, %v1785
        %v1787 = vrcp.pop %v1771
        %v1788 = vmul.f32 %v1771, %v1787
        %v1789 = vsub.f32 1.0, %v1788
        %v1790 = vmul.f32 %v1787, %v1789
        %v1791 = vadd.f32 %v1787, %v1790
        %vm1792 = vweird.f32 %v1771
        %vm1793 = vweird.f32 %v1787
        %vm1794 = vmor %vm1792, %vm1793
        %v1795 = vsel %vm1794, %v1787, %v1791
        %v1796 = vand.u32 2147483647, %v1771
        %vm1797 = vcmp.eq.f32.partialorder %v1796, 8.507059e+37
        %v1798 = vand.u32 %v1771, 2147483648
        %v1799 = vor.u32 1.1754944e-38, %v1798
        %v1800 = vsel %vm1797, %v1799, %v1795
        %v1801 = vmul.f32 %v1735, %v1800
        %v1802 = vperm.slane %v1724, 0
        %v1803 = vmul.f32 %v1802, %v1786
        %v1804 = vmul.f32 %v1802, %v1801
        %v1805 = vperm.slane %v1725, 0
        %v1806 = vadd.f32 %v1803, %v1805
        %v1807 = vadd.f32 %v1804, %v1805
        %v1808 = vpack.c.bf16 %v1807, %v1806
        %v1809 = vld [vmem:[%s1015] sm:$0xf]
        %v1810 = vld [vmem:[%s1015 + $0x4] sm:$0xf]
        %v1811 = vld [vmem:[%s1015 + $0x8] sm:$0xf]
        %v1812 = vld [vmem:[%s1015 + $0xc] sm:$0xf]
        %v1813 = vld [vmem:[%s1018] sm:$0x1]
        %v1815 = vperm.slane %v1813, 0
        %v1821 = vunpack.c.l.b16 %v1809
        %v1822 = vunpack.c.l.b16 %v1810
        %v1823 = vunpack.c.l.b16 %v1811
        %v1824 = vunpack.c.l.b16 %v1812
        %v1825 = vpack.c.b16 %v1822, %v1821
        %v1826 = vpack.c.b16 %v1824, %v1823
        %v1830 = vsel %vm1071, %v1808, 0
        %1832 = vmatpush.bf16.msra.mxu0 0
        %1833 = vmatpush.bf16.msra.mxu0 0
        %1834 = vmatpush.bf16.msra.mxu0 0
        %1835 = vmatpush.bf16.msra.mxu0 0
        %1836 = vmatpush.bf16.msra.mxu0 0
        %1837 = vmatpush.bf16.msra.mxu0 0
        %1838 = vmatpush.bf16.msra.mxu0 %v1826
        %1839 = vmatpush.bf16.msra.mxu0 %v1825
        %1840 = vmatmul.bf16.gmra.mxu0 %v1830
        %v1841 = vpop.f32.mrf.mxu0
        %v1842 = vadd.f32 %v1815, %v1841
        %v1843 = vpop.f32.mrf.mxu0
        %v1844 = vadd.f32 %v1815, %v1843
        %1845 = vdwg.mxu0
        %v1846 = vld [vmem:[%s974] sm:$0xf]
        %v1847 = vld [vmem:[%s974 + $0x4] sm:$0xf]
        %v1848 = vld [vmem:[%s1023] sm:$0xf]
        %v1849 = vld [vmem:[%s1023 + $0x4] sm:$0xf]
        %v1850 = vld [vmem:[%s1023 + $0x8] sm:$0xf]
        %v1851 = vld [vmem:[%s1023 + $0xc] sm:$0xf]
        %v1852 = vld [vmem:[%s1026] sm:$0x1]
        %v1854 = vperm.slane %v1852, 0
        %v1858 = vunpack.c.l.b16 %v1846
        %v1859 = vunpack.c.l.b16 %v1847
        %v1860 = vpack.c.b16 %v1859, %v1858
        %v1865 = vunpack.c.l.b16 %v1848
        %v1866 = vunpack.c.l.b16 %v1849
        %v1867 = vunpack.c.l.b16 %v1850
        %v1868 = vunpack.c.l.b16 %v1851
        %v1869 = vpack.c.b16 %v1866, %v1865
        %v1870 = vpack.c.b16 %v1868, %v1867
        %v1874 = vsel %vm1071, %v1860, 0
        %1876 = vmatpush.bf16.msra.mxu0 0
        %1877 = vmatpush.bf16.msra.mxu0 0
        %1878 = vmatpush.bf16.msra.mxu0 0
        %1879 = vmatpush.bf16.msra.mxu0 0
        %1880 = vmatpush.bf16.msra.mxu0 0
        %1881 = vmatpush.bf16.msra.mxu0 0
        %1882 = vmatpush.bf16.msra.mxu0 %v1870
        %1883 = vmatpush.bf16.msra.mxu0 %v1869
        %1884 = vmatmul.bf16.gmra.mxu0 %v1874
        %v1885 = vpop.f32.mrf.mxu0
        %v1886 = vadd.f32 %v1854, %v1885
        %v1887 = vpop.f32.mrf.mxu0
        %v1888 = vadd.f32 %v1854, %v1887
        %1889 = vdwg.mxu0
        %v1890 = vld [vmem:[%s1034] sm:$0x1]
        %v1891 = vld [vmem:[%s979] sm:$0x1]
        %v1892 = vpack.c.bf16 %v1842, %v1842
        %v1893 = vpack.c.bf16 %v1886, %v1886
        %v1895 = vperm.slane %v1891, 0
        %v1898 = vsel %vm1205, %v1892, 0
        %v1901 = vsel %vm1205, %v1893, 0
        %1903 = vmatpush.bf16.xpose.msra.mxu0 0
        %1904 = vmatpush.bf16.xpose.msra.mxu0 0
        %1905 = vmatpush.bf16.xpose.msra.mxu0 0
        %1906 = vmatpush.bf16.xpose.msra.mxu0 0
        %1907 = vmatpush.bf16.xpose.msra.mxu0 0
        %1908 = vmatpush.bf16.xpose.msra.mxu0 0
        %1909 = vmatpush.bf16.xpose.msra.mxu0 0
        %1910 = vmatpush.bf16.xpose.msra.mxu0 %v1901
        %1911 = vmatmul.bf16.gmra.mxu0 %v1898
        %v1912 = vpop.f32.mrf.mxu0
        %v1913 = vadd.f32 %v1895, %v1912
        %v1914 = vpop.f32.mrf.mxu0
        %1915 = vdwg.mxu0
        %v1916 = vsel %vm1205, %v1913, -inf
        %1917 = vmax.xlane.f32.xlu0 %v1916
        %v1918 = vpop.xlane.xlu0 %1917
        %v1919 = vsub.f32 %v1913, %v1918
        %v1920 = vmul.f32 %v1919, 1.442695
        %v1921 = vpow.pop %v1920
        %v1922 = vsel %vm1205, %v1921, 0.0
        %1923 = vadd.xlane.f32.xlu0 %v1922
        %v1924 = vpop.xlane.xlu0 %1923
        %v1925 = vrcp.pop %v1924
        %v1926 = vmul.f32 %v1921, %v1925
        %v1927 = vpack.c.bf16 %v1926, %v1926
        %1929 = vrot.lane.b32.xlu0 %v1893, 96
        %v1930 = vpop.permute.xlu0 %1929
        %v1932 = vsel %vm1205, %v1927, 0
        %v1935 = vsel %vm1242, %v1930, 0
        %1937 = vmatpush.bf16.msra.mxu0 0
        %1938 = vmatpush.bf16.msra.mxu0 0
        %1939 = vmatpush.bf16.msra.mxu0 0
        %1940 = vmatpush.bf16.msra.mxu0 0
        %1941 = vmatpush.bf16.msra.mxu0 0
        %1942 = vmatpush.bf16.msra.mxu0 0
        %1943 = vmatpush.bf16.msra.mxu0 0
        %1944 = vmatpush.bf16.msra.mxu0 %v1935
        %1945 = vmatmul.bf16.gmra.mxu0 %v1932
        %v1946 = vpop.f32.mrf.mxu0
        %v1947 = vadd.f32 0.0, %v1946
        %v1948 = vpop.f32.mrf.mxu0
        %1949 = vdwg.mxu0
        %1951 = vrot.lane.b32.xlu0 %v1892, 120
        %v1952 = vpop.permute.xlu0 %1951
        %1953 = vrot.lane.b32.xlu0 %v1893, 120
        %v1954 = vpop.permute.xlu0 %1953
        %v1956 = vsel %vm1205, %v1952, 0
        %v1959 = vsel %vm1205, %v1954, 0
        %1961 = vmatpush.bf16.xpose.msra.mxu0 0
        %1962 = vmatpush.bf16.xpose.msra.mxu0 0
        %1963 = vmatpush.bf16.xpose.msra.mxu0 0
        %1964 = vmatpush.bf16.xpose.msra.mxu0 0
        %1965 = vmatpush.bf16.xpose.msra.mxu0 0
        %1966 = vmatpush.bf16.xpose.msra.mxu0 0
        %1967 = vmatpush.bf16.xpose.msra.mxu0 0
        %1968 = vmatpush.bf16.xpose.msra.mxu0 %v1959
        %1969 = vmatmul.bf16.gmra.mxu0 %v1956
        %v1970 = vpop.f32.mrf.mxu0
        %v1971 = vadd.f32 %v1895, %v1970
        %v1972 = vpop.f32.mrf.mxu0
        %1973 = vdwg.mxu0
        %v1974 = vsel %vm1205, %v1971, -inf
        %1975 = vmax.xlane.f32.xlu0 %v1974
        %v1976 = vpop.xlane.xlu0 %1975
        %v1977 = vsub.f32 %v1971, %v1976
        %v1978 = vmul.f32 %v1977, 1.442695
        %v1979 = vpow.pop %v1978
        %v1980 = vsel %vm1205, %v1979, 0.0
        %1981 = vadd.xlane.f32.xlu0 %v1980
        %v1982 = vpop.xlane.xlu0 %1981
        %v1983 = vrcp.pop %v1982
        %v1984 = vmul.f32 %v1979, %v1983
        %v1985 = vpack.c.bf16 %v1984, %v1984
        %1986 = vrot.lane.b32.xlu0 %v1893, 88
        %v1987 = vpop.permute.xlu0 %1986
        %v1989 = vsel %vm1205, %v1985, 0
        %v1992 = vsel %vm1242, %v1987, 0
        %1994 = vmatpush.bf16.msra.mxu0 0
        %1995 = vmatpush.bf16.msra.mxu0 0
        %1996 = vmatpush.bf16.msra.mxu0 0
        %1997 = vmatpush.bf16.msra.mxu0 0
        %1998 = vmatpush.bf16.msra.mxu0 0
        %1999 = vmatpush.bf16.msra.mxu0 0
        %2000 = vmatpush.bf16.msra.mxu0 0
        %2001 = vmatpush.bf16.msra.mxu0 %v1992
        %2002 = vmatmul.bf16.gmra.mxu0 %v1989
        %v2003 = vpop.f32.mrf.mxu0
        %v2004 = vadd.f32 0.0, %v2003
        %v2005 = vpop.f32.mrf.mxu0
        %2006 = vdwg.mxu0
        %2007 = vrot.lane.b32.xlu0 %v1892, 112
        %v2008 = vpop.permute.xlu0 %2007
        %2009 = vrot.lane.b32.xlu0 %v1893, 112
        %v2010 = vpop.permute.xlu0 %2009
        %v2012 = vsel %vm1205, %v2008, 0
        %v2015 = vsel %vm1205, %v2010, 0
        %2017 = vmatpush.bf16.xpose.msra.mxu0 0
        %2018 = vmatpush.bf16.xpose.msra.mxu0 0
        %2019 = vmatpush.bf16.xpose.msra.mxu0 0
        %2020 = vmatpush.bf16.xpose.msra.mxu0 0
        %2021 = vmatpush.bf16.xpose.msra.mxu0 0
        %2022 = vmatpush.bf16.xpose.msra.mxu0 0
        %2023 = vmatpush.bf16.xpose.msra.mxu0 0
        %2024 = vmatpush.bf16.xpose.msra.mxu0 %v2015
        %2025 = vmatmul.bf16.gmra.mxu0 %v2012
        %v2026 = vpop.f32.mrf.mxu0
        %v2027 = vadd.f32 %v1895, %v2026
        %v2028 = vpop.f32.mrf.mxu0
        %2029 = vdwg.mxu0
        %v2030 = vsel %vm1205, %v2027, -inf
        %2031 = vmax.xlane.f32.xlu0 %v2030
        %v2032 = vpop.xlane.xlu0 %2031
        %v2033 = vsub.f32 %v2027, %v2032
        %v2034 = vmul.f32 %v2033, 1.442695
        %v2035 = vpow.pop %v2034
        %v2036 = vsel %vm1205, %v2035, 0.0
        %2037 = vadd.xlane.f32.xlu0 %v2036
        %v2038 = vpop.xlane.xlu0 %2037
        %v2039 = vrcp.pop %v2038
        %v2040 = vmul.f32 %v2035, %v2039
        %v2041 = vpack.c.bf16 %v2040, %v2040
        %2042 = vrot.lane.b32.xlu0 %v1893, 80
        %v2043 = vpop.permute.xlu0 %2042
        %v2045 = vsel %vm1205, %v2041, 0
        %v2048 = vsel %vm1242, %v2043, 0
        %2050 = vmatpush.bf16.msra.mxu0 0
        %2051 = vmatpush.bf16.msra.mxu0 0
        %2052 = vmatpush.bf16.msra.mxu0 0
        %2053 = vmatpush.bf16.msra.mxu0 0
        %2054 = vmatpush.bf16.msra.mxu0 0
        %2055 = vmatpush.bf16.msra.mxu0 0
        %2056 = vmatpush.bf16.msra.mxu0 0
        %2057 = vmatpush.bf16.msra.mxu0 %v2048
        %2058 = vmatmul.bf16.gmra.mxu0 %v2045
        %v2059 = vpop.f32.mrf.mxu0
        %v2060 = vadd.f32 0.0, %v2059
        %v2061 = vpop.f32.mrf.mxu0
        %2062 = vdwg.mxu0
        %2063 = vrot.lane.b32.xlu0 %v1892, 104
        %v2064 = vpop.permute.xlu0 %2063
        %2065 = vrot.lane.b32.xlu0 %v1893, 104
        %v2066 = vpop.permute.xlu0 %2065
        %v2068 = vsel %vm1205, %v2064, 0
        %v2071 = vsel %vm1205, %v2066, 0
        %2073 = vmatpush.bf16.xpose.msra.mxu0 0
        %2074 = vmatpush.bf16.xpose.msra.mxu0 0
        %2075 = vmatpush.bf16.xpose.msra.mxu0 0
        %2076 = vmatpush.bf16.xpose.msra.mxu0 0
        %2077 = vmatpush.bf16.xpose.msra.mxu0 0
        %2078 = vmatpush.bf16.xpose.msra.mxu0 0
        %2079 = vmatpush.bf16.xpose.msra.mxu0 0
        %2080 = vmatpush.bf16.xpose.msra.mxu0 %v2071
        %2081 = vmatmul.bf16.gmra.mxu0 %v2068
        %v2082 = vpop.f32.mrf.mxu0
        %v2083 = vadd.f32 %v1895, %v2082
        %v2084 = vpop.f32.mrf.mxu0
        %2085 = vdwg.mxu0
        %v2086 = vsel %vm1205, %v2083, -inf
        %2087 = vmax.xlane.f32.xlu0 %v2086
        %v2088 = vpop.xlane.xlu0 %2087
        %v2089 = vsub.f32 %v2083, %v2088
        %v2090 = vmul.f32 %v2089, 1.442695
        %v2091 = vpow.pop %v2090
        %v2092 = vsel %vm1205, %v2091, 0.0
        %2093 = vadd.xlane.f32.xlu0 %v2092
        %v2094 = vpop.xlane.xlu0 %2093
        %v2095 = vrcp.pop %v2094
        %v2096 = vmul.f32 %v2091, %v2095
        %v2097 = vpack.c.bf16 %v2096, %v2096
        %2098 = vrot.lane.b32.xlu0 %v1893, 72
        %v2099 = vpop.permute.xlu0 %2098
        %v2101 = vsel %vm1205, %v2097, 0
        %v2104 = vsel %vm1242, %v2099, 0
        %2106 = vmatpush.bf16.msra.mxu0 0
        %2107 = vmatpush.bf16.msra.mxu0 0
        %2108 = vmatpush.bf16.msra.mxu0 0
        %2109 = vmatpush.bf16.msra.mxu0 0
        %2110 = vmatpush.bf16.msra.mxu0 0
        %2111 = vmatpush.bf16.msra.mxu0 0
        %2112 = vmatpush.bf16.msra.mxu0 0
        %2113 = vmatpush.bf16.msra.mxu0 %v2104
        %2114 = vmatmul.bf16.gmra.mxu0 %v2101
        %v2115 = vpop.f32.mrf.mxu0
        %v2116 = vadd.f32 0.0, %v2115
        %v2117 = vpop.f32.mrf.mxu0
        %2118 = vdwg.mxu0
        %2120 = vrot.lane.b32.xlu0 %v2004, 8
        %v2121 = vpop.permute.xlu0 %2120
        %2124 = vrot.lane.b32.xlu0 %v2060, 16
        %v2125 = vpop.permute.xlu0 %2124
        %2128 = vrot.lane.b32.xlu0 %v2116, 24
        %v2129 = vpop.permute.xlu0 %2128
        %v2131 = vsel %vm1205, %v1947, %v2121
        %v2132 = vsel %vm1440, %v2131, %v2125
        %v2133 = vsel %vm1442, %v2132, %v2129
        %s2134 = scalar_lea.vmem %s979, 1
        %v2135 = vld [vmem:[%s2134] sm:$0x1]
        %v2136 = vpack.c.bf16 %v1844, %v1844
        %v2137 = vpack.c.bf16 %v1888, %v1888
        %v2139 = vperm.slane %v2135, 0
        %v2142 = vsel %vm1205, %v2136, 0
        %v2145 = vsel %vm1205, %v2137, 0
        %2147 = vmatpush.bf16.xpose.msra.mxu0 0
        %2148 = vmatpush.bf16.xpose.msra.mxu0 0
        %2149 = vmatpush.bf16.xpose.msra.mxu0 0
        %2150 = vmatpush.bf16.xpose.msra.mxu0 0
        %2151 = vmatpush.bf16.xpose.msra.mxu0 0
        %2152 = vmatpush.bf16.xpose.msra.mxu0 0
        %2153 = vmatpush.bf16.xpose.msra.mxu0 0
        %2154 = vmatpush.bf16.xpose.msra.mxu0 %v2145
        %2155 = vmatmul.bf16.gmra.mxu0 %v2142
        %v2156 = vpop.f32.mrf.mxu0
        %v2157 = vadd.f32 %v2139, %v2156
        %v2158 = vpop.f32.mrf.mxu0
        %2159 = vdwg.mxu0
        %v2160 = vsel %vm1205, %v2157, -inf
        %2161 = vmax.xlane.f32.xlu0 %v2160
        %v2162 = vpop.xlane.xlu0 %2161
        %v2163 = vsub.f32 %v2157, %v2162
        %v2164 = vmul.f32 %v2163, 1.442695
        %v2165 = vpow.pop %v2164
        %v2166 = vsel %vm1205, %v2165, 0.0
        %2167 = vadd.xlane.f32.xlu0 %v2166
        %v2168 = vpop.xlane.xlu0 %2167
        %v2169 = vrcp.pop %v2168
        %v2170 = vmul.f32 %v2165, %v2169
        %v2171 = vpack.c.bf16 %v2170, %v2170
        %2173 = vrot.lane.b32.xlu0 %v2137, 96
        %v2174 = vpop.permute.xlu0 %2173
        %v2176 = vsel %vm1205, %v2171, 0
        %v2179 = vsel %vm1242, %v2174, 0
        %2181 = vmatpush.bf16.msra.mxu0 0
        %2182 = vmatpush.bf16.msra.mxu0 0
        %2183 = vmatpush.bf16.msra.mxu0 0
        %2184 = vmatpush.bf16.msra.mxu0 0
        %2185 = vmatpush.bf16.msra.mxu0 0
        %2186 = vmatpush.bf16.msra.mxu0 0
        %2187 = vmatpush.bf16.msra.mxu0 0
        %2188 = vmatpush.bf16.msra.mxu0 %v2179
        %2189 = vmatmul.bf16.gmra.mxu0 %v2176
        %v2190 = vpop.f32.mrf.mxu0
        %v2191 = vadd.f32 0.0, %v2190
        %v2192 = vpop.f32.mrf.mxu0
        %2193 = vdwg.mxu0
        %2195 = vrot.lane.b32.xlu0 %v2136, 120
        %v2196 = vpop.permute.xlu0 %2195
        %2197 = vrot.lane.b32.xlu0 %v2137, 120
        %v2198 = vpop.permute.xlu0 %2197
        %v2200 = vsel %vm1205, %v2196, 0
        %v2203 = vsel %vm1205, %v2198, 0
        %2205 = vmatpush.bf16.xpose.msra.mxu0 0
        %2206 = vmatpush.bf16.xpose.msra.mxu0 0
        %2207 = vmatpush.bf16.xpose.msra.mxu0 0
        %2208 = vmatpush.bf16.xpose.msra.mxu0 0
        %2209 = vmatpush.bf16.xpose.msra.mxu0 0
        %2210 = vmatpush.bf16.xpose.msra.mxu0 0
        %2211 = vmatpush.bf16.xpose.msra.mxu0 0
        %2212 = vmatpush.bf16.xpose.msra.mxu0 %v2203
        %2213 = vmatmul.bf16.gmra.mxu0 %v2200
        %v2214 = vpop.f32.mrf.mxu0
        %v2215 = vadd.f32 %v2139, %v2214
        %v2216 = vpop.f32.mrf.mxu0
        %2217 = vdwg.mxu0
        %v2218 = vsel %vm1205, %v2215, -inf
        %2219 = vmax.xlane.f32.xlu0 %v2218
        %v2220 = vpop.xlane.xlu0 %2219
        %v2221 = vsub.f32 %v2215, %v2220
        %v2222 = vmul.f32 %v2221, 1.442695
        %v2223 = vpow.pop %v2222
        %v2224 = vsel %vm1205, %v2223, 0.0
        %2225 = vadd.xlane.f32.xlu0 %v2224
        %v2226 = vpop.xlane.xlu0 %2225
        %v2227 = vrcp.pop %v2226
        %v2228 = vmul.f32 %v2223, %v2227
        %v2229 = vpack.c.bf16 %v2228, %v2228
        %2230 = vrot.lane.b32.xlu0 %v2137, 88
        %v2231 = vpop.permute.xlu0 %2230
        %v2233 = vsel %vm1205, %v2229, 0
        %v2236 = vsel %vm1242, %v2231, 0
        %2238 = vmatpush.bf16.msra.mxu0 0
        %2239 = vmatpush.bf16.msra.mxu0 0
        %2240 = vmatpush.bf16.msra.mxu0 0
        %2241 = vmatpush.bf16.msra.mxu0 0
        %2242 = vmatpush.bf16.msra.mxu0 0
        %2243 = vmatpush.bf16.msra.mxu0 0
        %2244 = vmatpush.bf16.msra.mxu0 0
        %2245 = vmatpush.bf16.msra.mxu0 %v2236
        %2246 = vmatmul.bf16.gmra.mxu0 %v2233
        %v2247 = vpop.f32.mrf.mxu0
        %v2248 = vadd.f32 0.0, %v2247
        %v2249 = vpop.f32.mrf.mxu0
        %2250 = vdwg.mxu0
        %2251 = vrot.lane.b32.xlu0 %v2136, 112
        %v2252 = vpop.permute.xlu0 %2251
        %2253 = vrot.lane.b32.xlu0 %v2137, 112
        %v2254 = vpop.permute.xlu0 %2253
        %v2256 = vsel %vm1205, %v2252, 0
        %v2259 = vsel %vm1205, %v2254, 0
        %2261 = vmatpush.bf16.xpose.msra.mxu0 0
        %2262 = vmatpush.bf16.xpose.msra.mxu0 0
        %2263 = vmatpush.bf16.xpose.msra.mxu0 0
        %2264 = vmatpush.bf16.xpose.msra.mxu0 0
        %2265 = vmatpush.bf16.xpose.msra.mxu0 0
        %2266 = vmatpush.bf16.xpose.msra.mxu0 0
        %2267 = vmatpush.bf16.xpose.msra.mxu0 0
        %2268 = vmatpush.bf16.xpose.msra.mxu0 %v2259
        %2269 = vmatmul.bf16.gmra.mxu0 %v2256
        %v2270 = vpop.f32.mrf.mxu0
        %v2271 = vadd.f32 %v2139, %v2270
        %v2272 = vpop.f32.mrf.mxu0
        %2273 = vdwg.mxu0
        %v2274 = vsel %vm1205, %v2271, -inf
        %2275 = vmax.xlane.f32.xlu0 %v2274
        %v2276 = vpop.xlane.xlu0 %2275
        %v2277 = vsub.f32 %v2271, %v2276
        %v2278 = vmul.f32 %v2277, 1.442695
        %v2279 = vpow.pop %v2278
        %v2280 = vsel %vm1205, %v2279, 0.0
        %2281 = vadd.xlane.f32.xlu0 %v2280
        %v2282 = vpop.xlane.xlu0 %2281
        %v2283 = vrcp.pop %v2282
        %v2284 = vmul.f32 %v2279, %v2283
        %v2285 = vpack.c.bf16 %v2284, %v2284
        %2286 = vrot.lane.b32.xlu0 %v2137, 80
        %v2287 = vpop.permute.xlu0 %2286
        %v2289 = vsel %vm1205, %v2285, 0
        %v2292 = vsel %vm1242, %v2287, 0
        %2294 = vmatpush.bf16.msra.mxu0 0
        %2295 = vmatpush.bf16.msra.mxu0 0
        %2296 = vmatpush.bf16.msra.mxu0 0
        %2297 = vmatpush.bf16.msra.mxu0 0
        %2298 = vmatpush.bf16.msra.mxu0 0
        %2299 = vmatpush.bf16.msra.mxu0 0
        %2300 = vmatpush.bf16.msra.mxu0 0
        %2301 = vmatpush.bf16.msra.mxu0 %v2292
        %2302 = vmatmul.bf16.gmra.mxu0 %v2289
        %v2303 = vpop.f32.mrf.mxu0
        %v2304 = vadd.f32 0.0, %v2303
        %v2305 = vpop.f32.mrf.mxu0
        %2306 = vdwg.mxu0
        %2307 = vrot.lane.b32.xlu0 %v2136, 104
        %v2308 = vpop.permute.xlu0 %2307
        %2309 = vrot.lane.b32.xlu0 %v2137, 104
        %v2310 = vpop.permute.xlu0 %2309
        %v2312 = vsel %vm1205, %v2308, 0
        %v2315 = vsel %vm1205, %v2310, 0
        %2317 = vmatpush.bf16.xpose.msra.mxu0 0
        %2318 = vmatpush.bf16.xpose.msra.mxu0 0
        %2319 = vmatpush.bf16.xpose.msra.mxu0 0
        %2320 = vmatpush.bf16.xpose.msra.mxu0 0
        %2321 = vmatpush.bf16.xpose.msra.mxu0 0
        %2322 = vmatpush.bf16.xpose.msra.mxu0 0
        %2323 = vmatpush.bf16.xpose.msra.mxu0 0
        %2324 = vmatpush.bf16.xpose.msra.mxu0 %v2315
        %2325 = vmatmul.bf16.gmra.mxu0 %v2312
        %v2326 = vpop.f32.mrf.mxu0
        %v2327 = vadd.f32 %v2139, %v2326
        %v2328 = vpop.f32.mrf.mxu0
        %2329 = vdwg.mxu0
        %v2330 = vsel %vm1205, %v2327, -inf
        %2331 = vmax.xlane.f32.xlu0 %v2330
        %v2332 = vpop.xlane.xlu0 %2331
        %v2333 = vsub.f32 %v2327, %v2332
        %v2334 = vmul.f32 %v2333, 1.442695
        %v2335 = vpow.pop %v2334
        %v2336 = vsel %vm1205, %v2335, 0.0
        %2337 = vadd.xlane.f32.xlu0 %v2336
        %v2338 = vpop.xlane.xlu0 %2337
        %v2339 = vrcp.pop %v2338
        %v2340 = vmul.f32 %v2335, %v2339
        %v2341 = vpack.c.bf16 %v2340, %v2340
        %2342 = vrot.lane.b32.xlu0 %v2137, 72
        %v2343 = vpop.permute.xlu0 %2342
        %v2345 = vsel %vm1205, %v2341, 0
        %v2348 = vsel %vm1242, %v2343, 0
        %2350 = vmatpush.bf16.msra.mxu0 0
        %2351 = vmatpush.bf16.msra.mxu0 0
        %2352 = vmatpush.bf16.msra.mxu0 0
        %2353 = vmatpush.bf16.msra.mxu0 0
        %2354 = vmatpush.bf16.msra.mxu0 0
        %2355 = vmatpush.bf16.msra.mxu0 0
        %2356 = vmatpush.bf16.msra.mxu0 0
        %2357 = vmatpush.bf16.msra.mxu0 %v2348
        %2358 = vmatmul.bf16.gmra.mxu0 %v2345
        %v2359 = vpop.f32.mrf.mxu0
        %v2360 = vadd.f32 0.0, %v2359
        %v2361 = vpop.f32.mrf.mxu0
        %2362 = vdwg.mxu0
        %2364 = vrot.lane.b32.xlu0 %v2248, 8
        %v2365 = vpop.permute.xlu0 %2364
        %2368 = vrot.lane.b32.xlu0 %v2304, 16
        %v2369 = vpop.permute.xlu0 %2368
        %2372 = vrot.lane.b32.xlu0 %v2360, 24
        %v2373 = vpop.permute.xlu0 %2372
        %v2375 = vsel %vm1205, %v2191, %v2365
        %v2376 = vsel %vm1440, %v2375, %v2369
        %v2377 = vsel %vm1442, %v2376, %v2373
        %v2378 = vpack.c.bf16 %v2377, %v2133
        %v2379 = vld [vmem:[%s1031] sm:$0xf]
        %v2380 = vld [vmem:[%s1031 + $0x4] sm:$0xf]
        %v2381 = vld [vmem:[%s1031 + $0x8] sm:$0xf]
        %v2382 = vld [vmem:[%s1031 + $0xc] sm:$0xf]
        %v2384 = vperm.slane %v1890, 0
        %v2390 = vunpack.c.l.b16 %v2379
        %v2391 = vunpack.c.l.b16 %v2380
        %v2392 = vunpack.c.l.b16 %v2381
        %v2393 = vunpack.c.l.b16 %v2382
        %v2394 = vpack.c.b16 %v2391, %v2390
        %v2395 = vpack.c.b16 %v2393, %v2392
        %v2399 = vsel %vm1071, %v2378, 0
        %2401 = vmatpush.bf16.msra.mxu0 0
        %2402 = vmatpush.bf16.msra.mxu0 0
        %2403 = vmatpush.bf16.msra.mxu0 0
        %2404 = vmatpush.bf16.msra.mxu0 0
        %2405 = vmatpush.bf16.msra.mxu0 0
        %2406 = vmatpush.bf16.msra.mxu0 0
        %2407 = vmatpush.bf16.msra.mxu0 %v2395
        %2408 = vmatpush.bf16.msra.mxu0 %v2394
        %2409 = vmatmul.bf16.gmra.mxu0 %v2399
        %v2410 = vpop.f32.mrf.mxu0
        %v2411 = vadd.f32 %v2384, %v2410
        %v2412 = vpop.f32.mrf.mxu0
        %v2413 = vadd.f32 %v2384, %v2412
        %2414 = vdwg.mxu0
        %v2415 = vadd.f32 %v1722, %v2411
        %v2416 = vadd.f32 %v1723, %v2413
        %v2417 = vld [vmem:[%s990 + $0x2] sm:$0x1]
        %v2418 = vld [vmem:[%s994 + $0x2] sm:$0x1]
        %v2419 = vsel %vm1071, %v2415, 0.0
        %2420 = vadd.xlane.f32.xlu0 %v2419
        %v2421 = vpop.xlane.xlu0 %2420
        %v2422 = vsel %vm1071, %v2416, 0.0
        %2423 = vadd.xlane.f32.xlu0 %v2422
        %v2424 = vpop.xlane.xlu0 %2423
        %v2425 = vmul.f32 %v2421, %v1084
        %v2426 = vmul.f32 %v2424, %v1084
        %v2427 = vsub.f32 %v2415, %v2425
        %v2428 = vsub.f32 %v2416, %v2426
        %v2429 = vmul.f32 %v2427, %v2427
        %v2430 = vmul.f32 %v2428, %v2428
        %v2431 = vsel %vm1071, %v2429, 0.0
        %2432 = vadd.xlane.f32.xlu0 %v2431
        %v2433 = vpop.xlane.xlu0 %2432
        %v2434 = vsel %vm1071, %v2430, 0.0
        %2435 = vadd.xlane.f32.xlu0 %v2434
        %v2436 = vpop.xlane.xlu0 %2435
        %v2437 = vmul.f32 %v2433, 0.032258064
        %v2438 = vmul.f32 %v2436, 0.032258064
        %v2439 = vrsqrt.pop %v2437
        %v2440 = vmul.f32 %v2439, %v2437
        %v2441 = vmul.f32 %v2440, %v2439
        %v2442 = vmul.f32 0.5, %v2441
        %v2443 = vsub.f32 1.5, %v2442
        %v2444 = vmul.f32 %v2439, %v2443
        %v2445 = vmul.f32 %v2437, %v2444
        %vm2446 = vcmp.eq.f32.partialorder %v2437, inf
        %v2447 = vsel %vm2446, %v2437, %v2445
        %vm2448 = vcmp.eq.f32.partialorder %v2437, 0.0
        %v2449 = vand.u32 %v2437, 2147483648
        %v2450 = vsel %vm2448, %v2449, %v2447
        %v2451 = vrsqrt.pop %v2438
        %v2452 = vmul.f32 %v2451, %v2438
        %v2453 = vmul.f32 %v2452, %v2451
        %v2454 = vmul.f32 0.5, %v2453
        %v2455 = vsub.f32 1.5, %v2454
        %v2456 = vmul.f32 %v2451, %v2455
        %v2457 = vmul.f32 %v2438, %v2456
        %vm2458 = vcmp.eq.f32.partialorder %v2438, inf
        %v2459 = vsel %vm2458, %v2438, %v2457
        %vm2460 = vcmp.eq.f32.partialorder %v2438, 0.0
        %v2461 = vand.u32 %v2438, 2147483648
        %v2462 = vsel %vm2460, %v2461, %v2459
        %v2463 = vadd.f32 %v2450, 1e-06
        %v2464 = vadd.f32 %v2462, 1e-06
        %v2465 = vrcp.pop %v2463
        %v2466 = vmul.f32 %v2463, %v2465
        %v2467 = vsub.f32 1.0, %v2466
        %v2468 = vmul.f32 %v2465, %v2467
        %v2469 = vadd.f32 %v2465, %v2468
        %vm2470 = vweird.f32 %v2463
        %vm2471 = vweird.f32 %v2465
        %vm2472 = vmor %vm2470, %vm2471
        %v2473 = vsel %vm2472, %v2465, %v2469
        %v2474 = vand.u32 2147483647, %v2463
        %vm2475 = vcmp.eq.f32.partialorder %v2474, 8.507059e+37
        %v2476 = vand.u32 %v2463, 2147483648
        %v2477 = vor.u32 1.1754944e-38, %v2476
        %v2478 = vsel %vm2475, %v2477, %v2473
        %v2479 = vmul.f32 %v2427, %v2478
        %v2480 = vrcp.pop %v2464
        %v2481 = vmul.f32 %v2464, %v2480
        %v2482 = vsub.f32 1.0, %v2481
        %v2483 = vmul.f32 %v2480, %v2482
        %v2484 = vadd.f32 %v2480, %v2483
        %vm2485 = vweird.f32 %v2464
        %vm2486 = vweird.f32 %v2480
        %vm2487 = vmor %vm2485, %vm2486
        %v2488 = vsel %vm2487, %v2480, %v2484
        %v2489 = vand.u32 2147483647, %v2464
        %vm2490 = vcmp.eq.f32.partialorder %v2489, 8.507059e+37
        %v2491 = vand.u32 %v2464, 2147483648
        %v2492 = vor.u32 1.1754944e-38, %v2491
        %v2493 = vsel %vm2490, %v2492, %v2488
        %v2494 = vmul.f32 %v2428, %v2493
        %v2495 = vperm.slane %v2417, 0
        %v2496 = vmul.f32 %v2495, %v2479
        %v2497 = vmul.f32 %v2495, %v2494
        %v2498 = vperm.slane %v2418, 0
        %v2499 = vadd.f32 %v2496, %v2498
        %v2500 = vadd.f32 %v2497, %v2498
        %v2501 = vpack.c.bf16 %v2500, %v2499
        %v2502 = vld [vmem:[%s1039] sm:$0xf]
        %v2503 = vld [vmem:[%s1039 + $0x4] sm:$0xf]
        %v2504 = vld [vmem:[%s1039 + $0x8] sm:$0xf]
        %v2505 = vld [vmem:[%s1039 + $0xc] sm:$0xf]
        %v2506 = vld [vmem:[%s1042] sm:$0x1]
        %v2508 = vperm.slane %v2506, 0
        %v2514 = vunpack.c.l.b16 %v2502
        %v2515 = vunpack.c.l.b16 %v2503
        %v2516 = vunpack.c.l.b16 %v2504
        %v2517 = vunpack.c.l.b16 %v2505
        %v2518 = vpack.c.b16 %v2515, %v2514
        %v2519 = vpack.c.b16 %v2517, %v2516
        %v2523 = vsel %vm1071, %v2501, 0
        %2525 = vmatpush.bf16.msra.mxu0 0
        %2526 = vmatpush.bf16.msra.mxu0 0
        %2527 = vmatpush.bf16.msra.mxu0 0
        %2528 = vmatpush.bf16.msra.mxu0 0
        %2529 = vmatpush.bf16.msra.mxu0 0
        %2530 = vmatpush.bf16.msra.mxu0 0
        %2531 = vmatpush.bf16.msra.mxu0 %v2519
        %2532 = vmatpush.bf16.msra.mxu0 %v2518
        %2533 = vmatmul.bf16.gmra.mxu0 %v2523
        %v2534 = vpop.f32.mrf.mxu0
        %v2535 = vadd.f32 %v2508, %v2534
        %v2536 = vpop.f32.mrf.mxu0
        %v2537 = vadd.f32 %v2508, %v2536
        %2538 = vdwg.mxu0
        %v2539 = vmax.f32 %v2535, 0.0
        %v2540 = vmax.f32 %v2537, 0.0
        %v2541 = vpack.c.bf16 %v2540, %v2539
        %v2542 = vld [vmem:[%s1047] sm:$0xf]
        %v2543 = vld [vmem:[%s1047 + $0x4] sm:$0xf]
        %v2544 = vld [vmem:[%s1047 + $0x8] sm:$0xf]
        %v2545 = vld [vmem:[%s1047 + $0xc] sm:$0xf]
        %v2546 = vld [vmem:[%s1047 + $0x10] sm:$0xf]
        %v2547 = vld [vmem:[%s1047 + $0x14] sm:$0xf]
        %v2548 = vld [vmem:[%s1047 + $0x18] sm:$0xf]
        %v2549 = vld [vmem:[%s1047 + $0x1c] sm:$0xf]
        %v2550 = vld [vmem:[%s1050] sm:$0x1]
        %v2552 = vperm.slane %v2550, 0
        %v2562 = vunpack.c.l.b16 %v2542
        %v2563 = vunpack.c.l.b16 %v2543
        %v2564 = vunpack.c.l.b16 %v2544
        %v2565 = vunpack.c.l.b16 %v2545
        %v2566 = vunpack.c.l.b16 %v2546
        %v2567 = vunpack.c.l.b16 %v2547
        %v2568 = vunpack.c.l.b16 %v2548
        %v2569 = vunpack.c.l.b16 %v2549
        %v2570 = vpack.c.b16 %v2563, %v2562
        %v2571 = vpack.c.b16 %v2565, %v2564
        %v2572 = vpack.c.b16 %v2567, %v2566
        %v2573 = vpack.c.b16 %v2569, %v2568
        %vm2578 = vcmask 523264
        %v2580 = vsel %vm2578, %v2541, 0
        %2582 = vmatpush.bf16.msra.mxu0 0
        %2583 = vmatpush.bf16.msra.mxu0 0
        %2584 = vmatpush.bf16.msra.mxu0 0
        %2585 = vmatpush.bf16.msra.mxu0 0
        %2586 = vmatpush.bf16.msra.mxu0 %v2573
        %2587 = vmatpush.bf16.msra.mxu0 %v2572
        %2588 = vmatpush.bf16.msra.mxu0 %v2571
        %2589 = vmatpush.bf16.msra.mxu0 %v2570
        %2590 = vmatmul.bf16.gmra.mxu0 %v2580
        %v2591 = vpop.f32.mrf.mxu0
        %v2592 = vadd.f32 %v2552, %v2591
        %v2593 = vpop.f32.mrf.mxu0
        %v2594 = vadd.f32 %v2552, %v2593
        %2595 = vdwg.mxu0
        %v2596 = vadd.f32 %v2415, %v2592
        %v2597 = vadd.f32 %v2416, %v2594
        %2598 = vst.msk [vmem:[#allocation2] sm:$0xff] %vm1071, %v2596
        %2599 = vst.msk [vmem:[#allocation2 + $0x8] sm:$0xff] %vm1071, %v2597
        %p2600 = scmp.eq.s32.totalorder %s40, 1
        // Predicated region
        $region117: #{decoder_forward.1} parent=111 // pred_check
          %p2601 = pneg %p2600
        $region118: #{decoder_forward.1} parent=111 // pred_check_branch
          %2603 = sbr.rel (%p2601) target = $region120
        $region119: #{decoder_forward.1} parent=111 // pred_region
          %v2604 = vld [vmem:[%s21] sm:$0x1]
          %v2605 = vld [vmem:[%s22] sm:$0x1]
          %v2606 = vsel %vm1071, %v2596, 0.0
          %2607 = vadd.xlane.f32.xlu0 %v2606
          %v2608 = vpop.xlane.xlu0 %2607
          %v2609 = vsel %vm1071, %v2597, 0.0
          %2610 = vadd.xlane.f32.xlu0 %v2609
          %v2611 = vpop.xlane.xlu0 %2610
          %v2612 = vmul.f32 %v2608, %v1084
          %v2613 = vmul.f32 %v2611, %v1084
          %v2614 = vsub.f32 %v2596, %v2612
          %v2615 = vsub.f32 %v2597, %v2613
          %v2616 = vmul.f32 %v2614, %v2614
          %v2617 = vmul.f32 %v2615, %v2615
          %v2618 = vsel %vm1071, %v2616, 0.0
          %2619 = vadd.xlane.f32.xlu0 %v2618
          %v2620 = vpop.xlane.xlu0 %2619
          %v2621 = vsel %vm1071, %v2617, 0.0
          %2622 = vadd.xlane.f32.xlu0 %v2621
          %v2623 = vpop.xlane.xlu0 %2622
          %v2624 = vmul.f32 %v2620, 0.032258064
          %v2625 = vmul.f32 %v2623, 0.032258064
          %v2626 = vrsqrt.pop %v2624
          %v2627 = vmul.f32 %v2626, %v2624
          %v2628 = vmul.f32 %v2627, %v2626
          %v2629 = vmul.f32 0.5, %v2628
          %v2630 = vsub.f32 1.5, %v2629
          %v2631 = vmul.f32 %v2626, %v2630
          %v2632 = vmul.f32 %v2624, %v2631
          %vm2633 = vcmp.eq.f32.partialorder %v2624, inf
          %v2634 = vsel %vm2633, %v2624, %v2632
          %vm2635 = vcmp.eq.f32.partialorder %v2624, 0.0
          %v2636 = vand.u32 %v2624, 2147483648
          %v2637 = vsel %vm2635, %v2636, %v2634
          %v2638 = vrsqrt.pop %v2625
          %v2639 = vmul.f32 %v2638, %v2625
          %v2640 = vmul.f32 %v2639, %v2638
          %v2641 = vmul.f32 0.5, %v2640
          %v2642 = vsub.f32 1.5, %v2641
          %v2643 = vmul.f32 %v2638, %v2642
          %v2644 = vmul.f32 %v2625, %v2643
          %vm2645 = vcmp.eq.f32.partialorder %v2625, inf
          %v2646 = vsel %vm2645, %v2625, %v2644
          %vm2647 = vcmp.eq.f32.partialorder %v2625, 0.0
          %v2648 = vand.u32 %v2625, 2147483648
          %v2649 = vsel %vm2647, %v2648, %v2646
          %v2650 = vadd.f32 %v2637, 1e-06
          %v2651 = vadd.f32 %v2649, 1e-06
          %v2652 = vrcp.pop %v2650
          %v2653 = vmul.f32 %v2650, %v2652
          %v2654 = vsub.f32 1.0, %v2653
          %v2655 = vmul.f32 %v2652, %v2654
          %v2656 = vadd.f32 %v2652, %v2655
          %vm2657 = vweird.f32 %v2650
          %vm2658 = vweird.f32 %v2652
          %vm2659 = vmor %vm2657, %vm2658
          %v2660 = vsel %vm2659, %v2652, %v2656
          %v2661 = vand.u32 2147483647, %v2650
          %vm2662 = vcmp.eq.f32.partialorder %v2661, 8.507059e+37
          %v2663 = vand.u32 %v2650, 2147483648
          %v2664 = vor.u32 1.1754944e-38, %v2663
          %v2665 = vsel %vm2662, %v2664, %v2660
          %v2666 = vmul.f32 %v2614, %v2665
          %v2667 = vrcp.pop %v2651
          %v2668 = vmul.f32 %v2651, %v2667
          %v2669 = vsub.f32 1.0, %v2668
          %v2670 = vmul.f32 %v2667, %v2669
          %v2671 = vadd.f32 %v2667, %v2670
          %vm2672 = vweird.f32 %v2651
          %vm2673 = vweird.f32 %v2667
          %vm2674 = vmor %vm2672, %vm2673
          %v2675 = vsel %vm2674, %v2667, %v2671
          %v2676 = vand.u32 2147483647, %v2651
          %vm2677 = vcmp.eq.f32.partialorder %v2676, 8.507059e+37
          %v2678 = vand.u32 %v2651, 2147483648
          %v2679 = vor.u32 1.1754944e-38, %v2678
          %v2680 = vsel %vm2677, %v2679, %v2675
          %v2681 = vmul.f32 %v2615, %v2680
          %v2683 = vperm.slane %v2604, 0
          %v2685 = vmul.f32 %v2683, %v2666
          %v2686 = vmul.f32 %v2683, %v2681
          %v2688 = vperm.slane %v2605, 0
          %v2690 = vadd.f32 %v2685, %v2688
          %v2691 = vadd.f32 %v2686, %v2688
          %2692 = vst.msk [vmem:[#allocation3] sm:$0xff] %vm1071, %v2690
          %2693 = vst.msk [vmem:[#allocation3 + $0x8] sm:$0xff] %vm1071, %v2691
        $region120: #{decoder_forward.1} parent=111 // pred_fallthru
          _
        // Predicated region
        $region121: #{decoder_forward.1} parent=111 // pred_check
          %p2694 = pneg %p648
        $region122: #{decoder_forward.1} parent=111 // pred_check_branch
          %2696 = sbr.rel (%p2694) target = $region124
        $region123: #{decoder_forward.1} parent=111 // pred_region
          %s2697 = smul.u32 2, %s39
          %2699 = vsyncadd [#allocation4], 0
          %s2700 = smul.addr %s2697, 8
          %s2701 = scalar_lea.hbm %s23, %s2700
          %s2702 = sshll.u32 [#allocation3], 4
          %s2703 = int_to_ptr.vmem [resolvable:$true] %s2702
          %s2704 = sshll.u32 %s2701, 4
          %s2705 = int_to_ptr.hbm [resolvable:$true] %s2704
          %2710 = dma.vmem_to_hbm [thread:$0]  %s2703, 256, %s2705, [#allocation4], 128, 128, 8
        $region124: #{decoder_forward.1} parent=111 // pred_fallthru
          _
        // Predicated region
        $region125: #{decoder_forward.1} parent=111 // pred_check
          %p2711 = pneg %p648
        $region126: #{decoder_forward.1} parent=111 // pred_check_branch
          %2713 = sbr.rel (%p2711) target = $region128
        $region127: #{decoder_forward.1} parent=111 // pred_region
          %2715 = dma.done [#allocation4], 256
        $region128: #{decoder_forward.1} parent=111 // pred_fallthru
          _
      $region112: #{decoder_forward.1} parent=5 // pred_fallthru
        _
      %p2716 = scmp.le.s32.totalorder 2, %s30
      // Predicated region
      $region129: #{decoder_forward.1} parent=5 // pred_check
        %p2717 = pneg %p2716
      $region130: #{decoder_forward.1} parent=5 // pred_check_branch
        %2719 = sbr.rel (%p2717) target = $region132
      $region131: #{decoder_forward.1} parent=5 // pred_region
        %s2720 = ssub.s32 %s30, 2
      $region132: #{decoder_forward.1} parent=5 // pred_fallthru
        _
    $region6: #{decoder_forward.1} parent=1 // loop_footer
      %s34 = sadd.s32 1, %s30
    $region7: #{decoder_forward.1} parent=1 // loop_footer_branch
      %29 = sbr.rel target = $region3
    $region8: #{decoder_forward.1} parent=1 // loop_exit
      _
    %2721 = vsyncpa [#allocation4], 1
    %s2722 = scalar_lea.sflag [#allocation4], 1
    %2723 = vsyncpa %s2722, 1

</llo_original>
